<compile_context>
chip_gen: v5e
topology: v5e:2x2
jax: 0.10.0
libtpu: 0.0.40
codegen_flags: <defaults>
</compile_context>

<pallas_src>
import jax
import jax.numpy as jnp
from jax import lax
from jax.experimental import pallas as pl
from jax.experimental.pallas import tpu as pltpu

N_NODES = 200   # Flatten -> Linear(1000, 2)  =>  200 nodes * 5 channels
F_IN = 320
F_H1 = 160
F_H2 = 80
G_C1 = 20
G_C2 = 5
N_CLS = 2


# ---------------------------------------------------------------------------
# Fused kernel (one batch element per grid step)
# ---------------------------------------------------------------------------
def _graph_conv_block(x, w_bf16, b_ref):
    """GraphConv1d: ReLU( softmax_j(-||x_i - x_j||^2) @ (X @ W) + b )."""
    n, cin = x.shape
    # softmax_j(-(|x_i|^2 + |x_j|^2 - 2<x_i,x_j>)) == softmax_j(2<x_i,x_j> - |x_j|^2)
    # (the |x_i|^2 term is constant in j and cancels).  Keep this path in f32:
    # the squared-distance expression cancels catastrophically in bf16.
    gram = lax.dot_general(x, x, (((1,), (1,)), ((), ())),
                           preferred_element_type=jnp.float32)          # (n, n)
    # ones-row matmul keeps |x_j|^2 in lane layout (no (n,)->(1,n) transpose).
    ones_row = jnp.ones((1, cin), jnp.float32)
    sq_row = lax.dot_general(ones_row, x * x, (((1,), (1,)), ((), ())),
                             preferred_element_type=jnp.float32)        # (1, n)
    logits = 2.0 * gram - sq_row
    m = jnp.max(logits, axis=-1, keepdims=True)
    e = jnp.exp(logits - m)
    a = e / jnp.sum(e, axis=-1, keepdims=True)                          # exact
    # Graph convolution on the MXU (bf16 operands, f32 accumulate).
    h = jnp.dot(x.astype(jnp.bfloat16), w_bf16,
                preferred_element_type=jnp.float32)                     # (n, cout)
    y = jnp.dot(a.astype(jnp.bfloat16), h.astype(jnp.bfloat16),
                preferred_element_type=jnp.float32) + b_ref[...]
    return jnp.maximum(y, 0.0)


def _sagcn_kernel(x_ref, w1_ref, b1_ref, w2_ref, b2_ref,
                  gw1_ref, gb1_ref, gw2_ref, gb2_ref,
                  wf_ref, bf_ref, o_ref):
    x = x_ref[0]                                                        # (N, 320)
    # ---- downs: Linear(320,160)+ReLU -> Linear(160,80)+ReLU ---------------
    h = jnp.dot(x.astype(jnp.bfloat16), w1_ref[...],
                preferred_element_type=jnp.float32)
    h = jnp.maximum(h + b1_ref[...], 0.0)                               # (N, 160)
    h = jnp.dot(h.astype(jnp.bfloat16), w2_ref[...],
                preferred_element_type=jnp.float32)
    h = jnp.maximum(h + b2_ref[...], 0.0)                               # (N, 80)
    # ---- convs: GraphConv1d(80,20) -> GraphConv1d(20,5) -------------------
    h = _graph_conv_block(h, gw1_ref[...], gb1_ref)                     # (N, 20)
    h = _graph_conv_block(h, gw2_ref[...], gb2_ref)                     # (N, 5)
    # ---- fc: Flatten -> Linear(1000, 2) -> softmax -------------------------
    # Contraction against wf reshaped to (2, N, 5); the lane-sparse (N,5)
    # activation never leaves VMEM and never needs a relayout to (1,1000).
    # logit[c] = sum_{n,k} h[n,k] * wf[c,n,k] + bf[c]
    p0 = jnp.sum(h * wf_ref[0], axis=-1, keepdims=True)                 # (N, 1)
    p1 = jnp.sum(h * wf_ref[1], axis=-1, keepdims=True)                 # (N, 1)
    l0 = jnp.sum(p0, axis=0, keepdims=True)                             # (1, 1)
    l1 = jnp.sum(p1, axis=0, keepdims=True)                             # (1, 1)
    lane = lax.broadcasted_iota(jnp.int32, (1, N_CLS), 1)
    logits = jnp.where(lane == 0, l0, l1) + bf_ref[...]                 # (1, 2)
    m = jnp.max(logits, axis=-1, keepdims=True)
    e = jnp.exp(logits - m)
    o_ref[0] = e / jnp.sum(e, axis=-1, keepdims=True)                   # exact


# ---------------------------------------------------------------------------
# Wrapper
# ---------------------------------------------------------------------------
def sagcn_forward(params, x):
    B, N, Fin = x.shape
    assert (N, Fin) == (N_NODES, F_IN)

    # MXU weights in bf16 (halves resident VMEM / DMA); biases stay f32.
    w1 = params["w1"].astype(jnp.bfloat16)
    w2 = params["w2"].astype(jnp.bfloat16)
    gw1 = params["gw1"].astype(jnp.bfloat16)
    gw2 = params["gw2"].astype(jnp.bfloat16)
    # (1000, 2) -> (2, 200, 5):  wf[n*5+k, c] multiplies h[n, k].
    wf_r = jnp.transpose(params["wf"].reshape(N_NODES, G_C2, N_CLS), (2, 0, 1))

    flops_per_b = 2 * (N * F_IN * F_H1 + N * F_H1 * F_H2
                       + N * N * F_H2 + N * F_H2 * G_C1 + N * N * G_C1
                       + N * N * G_C1 + N * G_C1 * G_C2 + N * N * G_C2
                       + N * G_C2 * N_CLS)
    param_bytes = sum(int(p.size) * 4 for p in params.values())
    cost = pl.CostEstimate(
        flops=B * flops_per_b,
        transcendentals=B * (2 * N * N + N_CLS),
        bytes_accessed=int(x.size) * 4 + B * N_CLS * 4 + param_bytes,
    )

    out = pl.pallas_call(
        _sagcn_kernel,
        out_shape=jax.ShapeDtypeStruct((B, 1, N_CLS), jnp.float32),
        grid=(B,),
        in_specs=[
            pl.BlockSpec((1, N, F_IN), lambda i: (i, 0, 0)),      # x (per batch)
            pl.BlockSpec((F_IN, F_H1), lambda i: (0, 0)),         # w1 (resident)
            pl.BlockSpec((1, F_H1), lambda i: (0, 0)),            # b1
            pl.BlockSpec((F_H1, F_H2), lambda i: (0, 0)),         # w2
            pl.BlockSpec((1, F_H2), lambda i: (0, 0)),            # b2
            pl.BlockSpec((F_H2, G_C1), lambda i: (0, 0)),         # gw1
            pl.BlockSpec((1, G_C1), lambda i: (0, 0)),            # gb1
            pl.BlockSpec((G_C1, G_C2), lambda i: (0, 0)),         # gw2
            pl.BlockSpec((1, G_C2), lambda i: (0, 0)),            # gb2
            pl.BlockSpec((N_CLS, N, G_C2), lambda i: (0, 0, 0)),  # wf reshaped
            pl.BlockSpec((1, N_CLS), lambda i: (0, 0)),           # bf
        ],
        out_specs=pl.BlockSpec((1, 1, N_CLS), lambda i: (i, 0, 0)),
        compiler_params=pltpu.CompilerParams(
            dimension_semantics=("parallel",)),   # shards batch over v7x's 2 TCs
        cost_estimate=cost,
    )(x, w1, params["b1"], w2, params["b2"],
      gw1, params["gb1"], gw2, params["gb2"],
      wf_r, params["bf"])
    return out.reshape(B, N_CLS)


# ---------------------------------------------------------------------------
# Deterministic parameter init (PyTorch Linear-style uniform +/- 1/sqrt(fan_in))
# ---------------------------------------------------------------------------
def _linear_init(key, fan_in, fan_out):
    kw, kb = jax.random.split(key)
    bound = 1.0 / float(fan_in) ** 0.5
    w = jax.random.uniform(kw, (fan_in, fan_out), jnp.float32, -bound, bound)
    b = jax.random.uniform(kb, (1, fan_out), jnp.float32, -bound, bound)
    return w, b


def init_params(key):
    keys = jax.random.split(key, 5)
    w1, b1 = _linear_init(keys[0], F_IN, F_H1)
    w2, b2 = _linear_init(keys[1], F_H1, F_H2)
    gw1, gb1 = _linear_init(keys[2], F_H2, G_C1)
    gw2, gb2 = _linear_init(keys[3], G_C1, G_C2)
    wf, bf = _linear_init(keys[4], N_NODES * G_C2, N_CLS)
    return dict(w1=w1, b1=b1, w2=w2, b2=b2,
                gw1=gw1, gb1=gb1, gw2=gw2, gb2=gb2,
                wf=wf, bf=bf)


if __name__ == "__main__":
    key = jax.random.PRNGKey(0)
    kx, kp = jax.random.split(key)
    B = 2
    x = jax.random.normal(kx, (B, N_NODES, F_IN), dtype=jnp.float32)
    params = init_params(kp)

    out = jax.jit(sagcn_forward)(params, x)
    out = jax.block_until_ready(out)

    assert out.shape == (B, N_CLS)
    assert bool(jnp.all(jnp.isfinite(out)))
    assert bool(jnp.all(out >= 0.0))
    # exact-division softmax -> rows sum to 1 up to f32 roundoff
    assert bool(jnp.allclose(jnp.sum(out, axis=-1), 1.0, atol=1e-5))
    print("KERNEL_OK")
</pallas_src>

<mosaic_0001>
module attributes {stable_mosaic.version = 11 : i64} {
  func.func @_sagcn_kernel(%arg0: i32, %arg1: memref<1x200x320xf32, #tpu.memory_space<vmem>>, %arg2: memref<320x160xbf16, #tpu.memory_space<vmem>>, %arg3: memref<1x160xf32, #tpu.memory_space<vmem>>, %arg4: memref<160x80xbf16, #tpu.memory_space<vmem>>, %arg5: memref<1x80xf32, #tpu.memory_space<vmem>>, %arg6: memref<80x20xbf16, #tpu.memory_space<vmem>>, %arg7: memref<1x20xf32, #tpu.memory_space<vmem>>, %arg8: memref<20x5xbf16, #tpu.memory_space<vmem>>, %arg9: memref<1x5xf32, #tpu.memory_space<vmem>>, %arg10: memref<2x200x5xf32, #tpu.memory_space<vmem>>, %arg11: memref<1x2xf32, #tpu.memory_space<vmem>>, %arg12: memref<1x1x2xf32, #tpu.memory_space<vmem>>) attributes {dimension_semantics = [#tpu.dimension_semantics<parallel>], iteration_bounds = array<i64: 2>, scalar_prefetch = 0 : i64, scratch_operands = 0 : i64, tpu.core_type = #tpu.core_type<tc>, window_params = [{transform_indices = @transform_0, window_bounds = array<i64: 1, 200, 320>}, {pipeline_mode = #tpu.pipeline_mode<synchronous>, transform_indices = @transform_1, window_bounds = array<i64: 320, 160>}, {pipeline_mode = #tpu.pipeline_mode<synchronous>, transform_indices = @transform_2, window_bounds = array<i64: 1, 160>}, {pipeline_mode = #tpu.pipeline_mode<synchronous>, transform_indices = @transform_3, window_bounds = array<i64: 160, 80>}, {pipeline_mode = #tpu.pipeline_mode<synchronous>, transform_indices = @transform_4, window_bounds = array<i64: 1, 80>}, {pipeline_mode = #tpu.pipeline_mode<synchronous>, transform_indices = @transform_5, window_bounds = array<i64: 80, 20>}, {pipeline_mode = #tpu.pipeline_mode<synchronous>, transform_indices = @transform_6, window_bounds = array<i64: 1, 20>}, {pipeline_mode = #tpu.pipeline_mode<synchronous>, transform_indices = @transform_7, window_bounds = array<i64: 20, 5>}, {pipeline_mode = #tpu.pipeline_mode<synchronous>, transform_indices = @transform_8, window_bounds = array<i64: 1, 5>}, {pipeline_mode = #tpu.pipeline_mode<synchronous>, transform_indices = @transform_9, window_bounds = array<i64: 2, 200, 5>}, {pipeline_mode = #tpu.pipeline_mode<synchronous>, transform_indices = @transform_10, window_bounds = array<i64: 1, 2>}, {transform_indices = @transform_11, window_bounds = array<i64: 1, 1, 2>}]} {
    %c0 = arith.constant 0 : index
    %c0_0 = arith.constant 0 : index
    %c0_1 = arith.constant 0 : index
    %0 = vector.load %arg1[%c0, %c0_0, %c0_1] : memref<1x200x320xf32, #tpu.memory_space<vmem>>, vector<1x200x320xf32>
    %1 = vector.shape_cast %0 : vector<1x200x320xf32> to vector<200x320xf32>
    %2 = arith.truncf %1 : vector<200x320xf32> to vector<200x320xbf16>
    %c0_2 = arith.constant 0 : index
    %c0_3 = arith.constant 0 : index
    %3 = vector.load %arg2[%c0_2, %c0_3] : memref<320x160xbf16, #tpu.memory_space<vmem>>, vector<320x160xbf16>
    %cst = arith.constant dense<0.000000e+00> : vector<200x160xf32>
    %4 = tpu.matmul %2, %3, %cst {dimension_numbers = #tpu.dot_dimension_numbers<[1], [0], [0], [1], [0, 0, 1, 1], [], []>} : vector<200x320xbf16>, vector<320x160xbf16>, vector<200x160xf32> -> vector<200x160xf32>
    %c0_4 = arith.constant 0 : index
    %c0_5 = arith.constant 0 : index
    %5 = vector.load %arg3[%c0_4, %c0_5] : memref<1x160xf32, #tpu.memory_space<vmem>>, vector<1x160xf32>
    %6 = vector.broadcast %5 : vector<1x160xf32> to vector<200x160xf32>
    %7 = arith.addf %4, %6 : vector<200x160xf32>
    %cst_6 = arith.constant 0.000000e+00 : f32
    %8 = vector.broadcast %cst_6 : f32 to vector<200x160xf32>
    %9 = arith.maximumf %7, %8 : vector<200x160xf32>
    %10 = arith.truncf %9 : vector<200x160xf32> to vector<200x160xbf16>
    %c0_7 = arith.constant 0 : index
    %c0_8 = arith.constant 0 : index
    %11 = vector.load %arg4[%c0_7, %c0_8] : memref<160x80xbf16, #tpu.memory_space<vmem>>, vector<160x80xbf16>
    %cst_9 = arith.constant dense<0.000000e+00> : vector<200x80xf32>
    %12 = tpu.matmul %10, %11, %cst_9 {dimension_numbers = #tpu.dot_dimension_numbers<[1], [0], [0], [1], [0, 0, 1, 1], [], []>} : vector<200x160xbf16>, vector<160x80xbf16>, vector<200x80xf32> -> vector<200x80xf32>
    %c0_10 = arith.constant 0 : index
    %c0_11 = arith.constant 0 : index
    %13 = vector.load %arg5[%c0_10, %c0_11] : memref<1x80xf32, #tpu.memory_space<vmem>>, vector<1x80xf32>
    %14 = vector.broadcast %13 : vector<1x80xf32> to vector<200x80xf32>
    %15 = arith.addf %12, %14 : vector<200x80xf32>
    %cst_12 = arith.constant 0.000000e+00 : f32
    %16 = vector.broadcast %cst_12 : f32 to vector<200x80xf32>
    %17 = arith.maximumf %15, %16 : vector<200x80xf32>
    %c0_13 = arith.constant 0 : index
    %c0_14 = arith.constant 0 : index
    %18 = vector.load %arg6[%c0_13, %c0_14] : memref<80x20xbf16, #tpu.memory_space<vmem>>, vector<80x20xbf16>
    %cst_15 = arith.constant dense<0.000000e+00> : vector<200x200xf32>
    %19 = tpu.matmul %17, %17, %cst_15 {dimension_numbers = #tpu.dot_dimension_numbers<[1], [1], [0], [0], [0, 0, 1, 0], [], []>} : vector<200x80xf32>, vector<200x80xf32>, vector<200x200xf32> -> vector<200x200xf32>
    %cst_16 = arith.constant 1.000000e+00 : f32
    %20 = vector.broadcast %cst_16 : f32 to vector<1x80xf32>
    %21 = arith.mulf %17, %17 : vector<200x80xf32>
    %cst_17 = arith.constant dense<0.000000e+00> : vector<1x200xf32>
    %22 = tpu.matmul %20, %21, %cst_17 {dimension_numbers = #tpu.dot_dimension_numbers<[1], [1], [0], [0], [0, 0, 1, 0], [], []>} : vector<1x80xf32>, vector<200x80xf32>, vector<1x200xf32> -> vector<1x200xf32>
    %cst_18 = arith.constant 2.000000e+00 : f32
    %23 = vector.broadcast %cst_18 : f32 to vector<200x200xf32>
    %24 = arith.mulf %23, %19 : vector<200x200xf32>
    %25 = vector.broadcast %22 : vector<1x200xf32> to vector<200x200xf32>
    %26 = arith.subf %24, %25 : vector<200x200xf32>
    %cst_19 = arith.constant dense<0xFF800000> : vector<200xf32>
    %27 = vector.multi_reduction <maximumf>, %26, %cst_19 [1] : vector<200x200xf32> to vector<200xf32>
    %28 = vector.shape_cast %27 : vector<200xf32> to vector<200x1xf32>
    %29 = vector.broadcast %28 : vector<200x1xf32> to vector<200x200xf32>
    %30 = arith.subf %26, %29 : vector<200x200xf32>
    %31 = math.exp %30 : vector<200x200xf32>
    %cst_20 = arith.constant dense<0.000000e+00> : vector<200xf32>
    %32 = vector.multi_reduction <add>, %31, %cst_20 [1] : vector<200x200xf32> to vector<200xf32>
    %33 = vector.shape_cast %32 : vector<200xf32> to vector<200x1xf32>
    %34 = vector.broadcast %33 : vector<200x1xf32> to vector<200x200xf32>
    %35 = arith.divf %31, %34 : vector<200x200xf32>
    %36 = arith.truncf %17 : vector<200x80xf32> to vector<200x80xbf16>
    %cst_21 = arith.constant dense<0.000000e+00> : vector<200x20xf32>
    %37 = tpu.matmul %36, %18, %cst_21 {dimension_numbers = #tpu.dot_dimension_numbers<[1], [0], [0], [1], [0, 0, 1, 1], [], []>} : vector<200x80xbf16>, vector<80x20xbf16>, vector<200x20xf32> -> vector<200x20xf32>
    %38 = arith.truncf %35 : vector<200x200xf32> to vector<200x200xbf16>
    %39 = arith.truncf %37 : vector<200x20xf32> to vector<200x20xbf16>
    %cst_22 = arith.constant dense<0.000000e+00> : vector<200x20xf32>
    %40 = tpu.matmul %38, %39, %cst_22 {dimension_numbers = #tpu.dot_dimension_numbers<[1], [0], [0], [1], [0, 0, 1, 1], [], []>} : vector<200x200xbf16>, vector<200x20xbf16>, vector<200x20xf32> -> vector<200x20xf32>
    %c0_23 = arith.constant 0 : index
    %c0_24 = arith.constant 0 : index
    %41 = vector.load %arg7[%c0_23, %c0_24] : memref<1x20xf32, #tpu.memory_space<vmem>>, vector<1x20xf32>
    %42 = vector.broadcast %41 : vector<1x20xf32> to vector<200x20xf32>
    %43 = arith.addf %40, %42 : vector<200x20xf32>
    %cst_25 = arith.constant 0.000000e+00 : f32
    %44 = vector.broadcast %cst_25 : f32 to vector<200x20xf32>
    %45 = arith.maximumf %43, %44 : vector<200x20xf32>
    %c0_26 = arith.constant 0 : index
    %c0_27 = arith.constant 0 : index
    %46 = vector.load %arg8[%c0_26, %c0_27] : memref<20x5xbf16, #tpu.memory_space<vmem>>, vector<20x5xbf16>
    %cst_28 = arith.constant dense<0.000000e+00> : vector<200x200xf32>
    %47 = tpu.matmul %45, %45, %cst_28 {dimension_numbers = #tpu.dot_dimension_numbers<[1], [1], [0], [0], [0, 0, 1, 0], [], []>} : vector<200x20xf32>, vector<200x20xf32>, vector<200x200xf32> -> vector<200x200xf32>
    %cst_29 = arith.constant 1.000000e+00 : f32
    %48 = vector.broadcast %cst_29 : f32 to vector<1x20xf32>
    %49 = arith.mulf %45, %45 : vector<200x20xf32>
    %cst_30 = arith.constant dense<0.000000e+00> : vector<1x200xf32>
    %50 = tpu.matmul %48, %49, %cst_30 {dimension_numbers = #tpu.dot_dimension_numbers<[1], [1], [0], [0], [0, 0, 1, 0], [], []>} : vector<1x20xf32>, vector<200x20xf32>, vector<1x200xf32> -> vector<1x200xf32>
    %cst_31 = arith.constant 2.000000e+00 : f32
    %51 = vector.broadcast %cst_31 : f32 to vector<200x200xf32>
    %52 = arith.mulf %51, %47 : vector<200x200xf32>
    %53 = vector.broadcast %50 : vector<1x200xf32> to vector<200x200xf32>
    %54 = arith.subf %52, %53 : vector<200x200xf32>
    %cst_32 = arith.constant dense<0xFF800000> : vector<200xf32>
    %55 = vector.multi_reduction <maximumf>, %54, %cst_32 [1] : vector<200x200xf32> to vector<200xf32>
    %56 = vector.shape_cast %55 : vector<200xf32> to vector<200x1xf32>
    %57 = vector.broadcast %56 : vector<200x1xf32> to vector<200x200xf32>
    %58 = arith.subf %54, %57 : vector<200x200xf32>
    %59 = math.exp %58 : vector<200x200xf32>
    %cst_33 = arith.constant dense<0.000000e+00> : vector<200xf32>
    %60 = vector.multi_reduction <add>, %59, %cst_33 [1] : vector<200x200xf32> to vector<200xf32>
    %61 = vector.shape_cast %60 : vector<200xf32> to vector<200x1xf32>
    %62 = vector.broadcast %61 : vector<200x1xf32> to vector<200x200xf32>
    %63 = arith.divf %59, %62 : vector<200x200xf32>
    %64 = arith.truncf %45 : vector<200x20xf32> to vector<200x20xbf16>
    %cst_34 = arith.constant dense<0.000000e+00> : vector<200x5xf32>
    %65 = tpu.matmul %64, %46, %cst_34 {dimension_numbers = #tpu.dot_dimension_numbers<[1], [0], [0], [1], [0, 0, 1, 1], [], []>} : vector<200x20xbf16>, vector<20x5xbf16>, vector<200x5xf32> -> vector<200x5xf32>
    %66 = arith.truncf %63 : vector<200x200xf32> to vector<200x200xbf16>
    %67 = arith.truncf %65 : vector<200x5xf32> to vector<200x5xbf16>
    %cst_35 = arith.constant dense<0.000000e+00> : vector<200x5xf32>
    %68 = tpu.matmul %66, %67, %cst_35 {dimension_numbers = #tpu.dot_dimension_numbers<[1], [0], [0], [1], [0, 0, 1, 1], [], []>} : vector<200x200xbf16>, vector<200x5xbf16>, vector<200x5xf32> -> vector<200x5xf32>
    %c0_36 = arith.constant 0 : index
    %c0_37 = arith.constant 0 : index
    %69 = vector.load %arg9[%c0_36, %c0_37] : memref<1x5xf32, #tpu.memory_space<vmem>>, vector<1x5xf32>
    %70 = vector.broadcast %69 : vector<1x5xf32> to vector<200x5xf32>
    %71 = arith.addf %68, %70 : vector<200x5xf32>
    %cst_38 = arith.constant 0.000000e+00 : f32
    %72 = vector.broadcast %cst_38 : f32 to vector<200x5xf32>
    %73 = arith.maximumf %71, %72 : vector<200x5xf32>
    %c0_39 = arith.constant 0 : index
    %c0_40 = arith.constant 0 : index
    %c0_41 = arith.constant 0 : index
    %74 = vector.load %arg10[%c0_39, %c0_40, %c0_41] : memref<2x200x5xf32, #tpu.memory_space<vmem>>, vector<1x200x5xf32>
    %75 = vector.shape_cast %74 : vector<1x200x5xf32> to vector<200x5xf32>
    %76 = arith.mulf %73, %75 : vector<200x5xf32>
    %cst_42 = arith.constant dense<0.000000e+00> : vector<200xf32>
    %77 = vector.multi_reduction <add>, %76, %cst_42 [1] : vector<200x5xf32> to vector<200xf32>
    %78 = vector.shape_cast %77 : vector<200xf32> to vector<200x1xf32>
    %c1 = arith.constant 1 : index
    %c0_43 = arith.constant 0 : index
    %c0_44 = arith.constant 0 : index
    %79 = vector.load %arg10[%c1, %c0_43, %c0_44] : memref<2x200x5xf32, #tpu.memory_space<vmem>>, vector<1x200x5xf32>
    %80 = vector.shape_cast %79 : vector<1x200x5xf32> to vector<200x5xf32>
    %81 = arith.mulf %73, %80 : vector<200x5xf32>
    %cst_45 = arith.constant dense<0.000000e+00> : vector<200xf32>
    %82 = vector.multi_reduction <add>, %81, %cst_45 [1] : vector<200x5xf32> to vector<200xf32>
    %83 = vector.shape_cast %82 : vector<200xf32> to vector<200x1xf32>
    %cst_46 = arith.constant dense<0.000000e+00> : vector<1xf32>
    %84 = vector.multi_reduction <add>, %78, %cst_46 [0] : vector<200x1xf32> to vector<1xf32>
    %85 = vector.shape_cast %84 : vector<1xf32> to vector<1x1xf32>
    %cst_47 = arith.constant dense<0.000000e+00> : vector<1xf32>
    %86 = vector.multi_reduction <add>, %83, %cst_47 [0] : vector<200x1xf32> to vector<1xf32>
    %87 = vector.shape_cast %86 : vector<1xf32> to vector<1x1xf32>
    %88 = tpu.iota {dimensions = array<i32: 1>} : vector<1x2xi32>
    %c0_i32 = arith.constant 0 : i32
    %89 = vector.broadcast %c0_i32 : i32 to vector<1x2xi32>
    %90 = arith.cmpi eq, %88, %89 : vector<1x2xi32>
    %91 = vector.shape_cast %85 : vector<1x1xf32> to vector<1x1xf32>
    %92 = vector.broadcast %91 : vector<1x1xf32> to vector<1x2xf32>
    %93 = vector.shape_cast %87 : vector<1x1xf32> to vector<1x1xf32>
    %94 = vector.broadcast %93 : vector<1x1xf32> to vector<1x2xf32>
    %95 = arith.select %90, %92, %94 : vector<1x2xi1>, vector<1x2xf32>
    %c0_48 = arith.constant 0 : index
    %c0_49 = arith.constant 0 : index
    %96 = vector.load %arg11[%c0_48, %c0_49] : memref<1x2xf32, #tpu.memory_space<vmem>>, vector<1x2xf32>
    %97 = arith.addf %95, %96 : vector<1x2xf32>
    %cst_50 = arith.constant dense<0xFF800000> : vector<1xf32>
    %98 = vector.multi_reduction <maximumf>, %97, %cst_50 [1] : vector<1x2xf32> to vector<1xf32>
    %99 = vector.shape_cast %98 : vector<1xf32> to vector<1x1xf32>
    %100 = vector.broadcast %99 : vector<1x1xf32> to vector<1x2xf32>
    %101 = arith.subf %97, %100 : vector<1x2xf32>
    %102 = math.exp %101 : vector<1x2xf32>
    %cst_51 = arith.constant dense<0.000000e+00> : vector<1xf32>
    %103 = vector.multi_reduction <add>, %102, %cst_51 [1] : vector<1x2xf32> to vector<1xf32>
    %104 = vector.shape_cast %103 : vector<1xf32> to vector<1x1xf32>
    %105 = vector.broadcast %104 : vector<1x1xf32> to vector<1x2xf32>
    %106 = arith.divf %102, %105 : vector<1x2xf32>
    %c0_52 = arith.constant 0 : index
    %c0_53 = arith.constant 0 : index
    %c0_54 = arith.constant 0 : index
    %107 = vector.load %arg12[%c0_52, %c0_53, %c0_54] : memref<1x1x2xf32, #tpu.memory_space<vmem>>, vector<1x1x2xf32>
    %108 = vector.shape_cast %107 : vector<1x1x2xf32> to vector<1x2xf32>
    %109 = vector.shape_cast %106 : vector<1x2xf32> to vector<1x1x2xf32>
    tpu.vector_store %arg12[%c0_52, %c0_53, %c0_54], %109 {strides = array<i32>} : memref<1x1x2xf32, #tpu.memory_space<vmem>>, vector<1x1x2xf32>,
    return
  }
  func.func @transform_0(%arg0: i32) -> (i32, i32, i32) {
    %c0_i32 = arith.constant 0 : i32
    %c0_i32_0 = arith.constant 0 : i32
    %c0_i32_1 = arith.constant 0 : i32
    return %arg0, %c0_i32, %c0_i32_0 : i32, i32, i32
  }
  func.func @transform_1(%arg0: i32) -> (i32, i32) {
    %c0_i32 = arith.constant 0 : i32
    %c0_i32_0 = arith.constant 0 : i32
    %c0_i32_1 = arith.constant 0 : i32
    return %c0_i32, %c0_i32_0 : i32, i32
  }
  func.func @transform_2(%arg0: i32) -> (i32, i32) {
    %c0_i32 = arith.constant 0 : i32
    %c0_i32_0 = arith.constant 0 : i32
    %c0_i32_1 = arith.constant 0 : i32
    return %c0_i32, %c0_i32_0 : i32, i32
  }
  func.func @transform_3(%arg0: i32) -> (i32, i32) {
    %c0_i32 = arith.constant 0 : i32
    %c0_i32_0 = arith.constant 0 : i32
    %c0_i32_1 = arith.constant 0 : i32
    return %c0_i32, %c0_i32_0 : i32, i32
  }
  func.func @transform_4(%arg0: i32) -> (i32, i32) {
    %c0_i32 = arith.constant 0 : i32
    %c0_i32_0 = arith.constant 0 : i32
    %c0_i32_1 = arith.constant 0 : i32
    return %c0_i32, %c0_i32_0 : i32, i32
  }
  func.func @transform_5(%arg0: i32) -> (i32, i32) {
    %c0_i32 = arith.constant 0 : i32
    %c0_i32_0 = arith.constant 0 : i32
    %c0_i32_1 = arith.constant 0 : i32
    return %c0_i32, %c0_i32_0 : i32, i32
  }
  func.func @transform_6(%arg0: i32) -> (i32, i32) {
    %c0_i32 = arith.constant 0 : i32
    %c0_i32_0 = arith.constant 0 : i32
    %c0_i32_1 = arith.constant 0 : i32
    return %c0_i32, %c0_i32_0 : i32, i32
  }
  func.func @transform_7(%arg0: i32) -> (i32, i32) {
    %c0_i32 = arith.constant 0 : i32
    %c0_i32_0 = arith.constant 0 : i32
    %c0_i32_1 = arith.constant 0 : i32
    return %c0_i32, %c0_i32_0 : i32, i32
  }
  func.func @transform_8(%arg0: i32) -> (i32, i32) {
    %c0_i32 = arith.constant 0 : i32
    %c0_i32_0 = arith.constant 0 : i32
    %c0_i32_1 = arith.constant 0 : i32
    return %c0_i32, %c0_i32_0 : i32, i32
  }
  func.func @transform_9(%arg0: i32) -> (i32, i32, i32) {
    %c0_i32 = arith.constant 0 : i32
    %c0_i32_0 = arith.constant 0 : i32
    %c0_i32_1 = arith.constant 0 : i32
    %c0_i32_2 = arith.constant 0 : i32
    return %c0_i32, %c0_i32_0, %c0_i32_1 : i32, i32, i32
  }
  func.func @transform_10(%arg0: i32) -> (i32, i32) {
    %c0_i32 = arith.constant 0 : i32
    %c0_i32_0 = arith.constant 0 : i32
    %c0_i32_1 = arith.constant 0 : i32
    return %c0_i32, %c0_i32_0 : i32, i32
  }
  func.func @transform_11(%arg0: i32) -> (i32, i32, i32) {
    %c0_i32 = arith.constant 0 : i32
    %c0_i32_0 = arith.constant 0 : i32
    %c0_i32_1 = arith.constant 0 : i32
    return %arg0, %c0_i32, %c0_i32_0 : i32, i32, i32
  }
}

</mosaic_0001>

<llo_original>
// kernel: sagcn_forward.1
$region0: #{sagcn_forward.1}
  #allocation0 [shape = 'u32[]', space=smem, size = 0x4, offset = 0x4, fixed_abs, tag = 'smem constant byte address 0x4 - core index']
  #allocation1 [shape = 'u32[72,128]{1,0:T(1,128)}', space=vmem, size = 0x9000, scoped, tag = 'internal scratch']
  %s0 = inlined_call_operand.vmem [shape: f32[2,200,320], index: 0, kind: input, shape index: {}]
  %s1 = inlined_call_operand.vmem [shape: bf16[320,160], index: 1, kind: input, shape index: {}]
  %s2 = inlined_call_operand.vmem [shape: f32[1,160], index: 2, kind: input, shape index: {}]
  %s3 = inlined_call_operand.vmem [shape: bf16[160,80], index: 3, kind: input, shape index: {}]
  %s4 = inlined_call_operand.vmem [shape: f32[1,80], index: 4, kind: input, shape index: {}]
  %s5 = inlined_call_operand.vmem [shape: bf16[80,20], index: 5, kind: input, shape index: {}]
  %s6 = inlined_call_operand.vmem [shape: f32[1,20], index: 6, kind: input, shape index: {}]
  %s7 = inlined_call_operand.vmem [shape: bf16[20,5], index: 7, kind: input, shape index: {}]
  %s8 = inlined_call_operand.vmem [shape: f32[1,5], index: 8, kind: input, shape index: {}]
  %s9 = inlined_call_operand.vmem [shape: f32[2,200,5], index: 9, kind: input, shape index: {}]
  %s10 = inlined_call_operand.vmem [shape: f32[1,2], index: 10, kind: input, shape index: {}]
  %s11 = inlined_call_operand.hbm [shape: f32[2,1,2], index: 11, kind: output, shape index: {}]
  %s12 = sld [smem:[#allocation0]]
  $region77: #{sagcn_forward.1} parent=0
    _
  %s14 = ssub.s32 1, %s12
  %s15 = scalar_select 0, %s14, %s12
  $region1: #{sagcn_forward.1} parent=0
    #allocation2 [shape = 'u8[1024]{0}', space=vmem, size = 0x400, scoped, tag = 'output window, operand 0']
    #allocation3 [shape = 's32[2]{0}', space=sflag, size = 0x8, scoped, tag = 'scoped memory for sagcn_forward.1']
    %16 = vsyncpa [#allocation3], 0
    %s17 = scalar_lea.sflag [#allocation3], 1
    %18 = vsyncpa %s17, 0
    loop: start=0, step=1, limit=4
    $region2: #{sagcn_forward.1} parent=1 // loop_pre_header
      _
    $region3: #{sagcn_forward.1} parent=1 // loop_header
      %s20 = sphi 0, %s24
      %p21 = scmp.ge.s32.totalorder %s20, 4
      %s30 = sphi 0, %s32
      %s33 = sphi 0, %s30
      %s34 = sphi 0, %s33
      %s50 = sphi 0, %s34
      %s54 = sphi 0, %s54
      %s56 = sphi 0, %s54
      %s57 = sphi 0, %s56
      %s71 = sphi 0, %s57
      %s75 = sphi 0, %s75
      %s77 = sphi 0, %s75
      %s78 = sphi 0, %s77
      %s92 = sphi 0, %s78
      %s96 = sphi 0, %s96
      %s98 = sphi 0, %s96
      %s99 = sphi 0, %s98
      %s113 = sphi 0, %s99
      %s117 = sphi 0, %s117
      %s119 = sphi 0, %s117
      %s120 = sphi 0, %s119
      %s134 = sphi 0, %s120
      %s138 = sphi 0, %s138
      %s140 = sphi 0, %s138
      %s141 = sphi 0, %s140
      %s155 = sphi 0, %s141
      %s159 = sphi 0, %s159
      %s161 = sphi 0, %s159
      %s162 = sphi 0, %s161
      %s176 = sphi 0, %s162
      %s180 = sphi 0, %s180
      %s182 = sphi 0, %s180
      %s183 = sphi 0, %s182
      %s197 = sphi 0, %s183
      %s201 = sphi 0, %s201
      %s203 = sphi 0, %s201
      %s204 = sphi 0, %s203
      %s218 = sphi 0, %s204
      %s222 = sphi 0, %s222
      %s224 = sphi 0, %s222
      %s225 = sphi 0, %s224
      %s239 = sphi 0, %s225
      %s243 = sphi 0, %s243
      %s245 = sphi 0, %s243
      %s246 = sphi 0, %s245
      %s260 = sphi 0, %s246
      %s266 = sphi 0, %s268
      %s269 = sphi 0, %s266
      %s270 = sphi 0, %s269
      %s286 = sphi 0, %s270
    $region4: #{sagcn_forward.1} parent=1 // loop_header_branch
      %23 = sbr.rel (%p21) target = $region8
    $region5: #{sagcn_forward.1} parent=1 // loop_body
      %s25 = ssub.s32 %s20, 1
      %s26 = ssub.s32 %s20, 2
      %s27 = sadd.s32 %s20, 1
      %s28 = ssub.s32 %s20, %s27
      %p29 = scmp.eq.s32.totalorder %s28, 0
      %s31 = sadd.s32 %s30, 1
      %s32 = scalar_select %p29, %s30, %s31
      %p35 = pneg %p29
      %p36 = scmp.eq.s32.totalorder %s20, 1
      %p37 = por %p35, %p36
      %p38 = scmp.ne.s32.totalorder %s30, %s33
      %p39 = scmp.eq.s32.totalorder %s20, 0
      %p40 = por %p38, %p39
      %p41 = scmp.ne.s32.totalorder %s30, %s33
      %p42 = scmp.eq.s32.totalorder %s25, 1
      %p43 = por %p41, %p42
      %p44 = scmp.ne.s32.totalorder %s33, %s34
      %p45 = scmp.eq.s32.totalorder %s25, 0
      %p46 = por %p44, %p45
      %p47 = scmp.ne.s32.totalorder %s33, %s34
      %p48 = scmp.eq.s32.totalorder %s26, 1
      %p49 = por %p47, %p48
      %p51 = scmp.ne.s32.totalorder %s34, %s50
      %p52 = scmp.eq.s32.totalorder %s26, 0
      %p53 = por %p51, %p52
      %s55 = sadd.s32 %s54, 1
      %p58 = scmp.eq.s32.totalorder %s20, 1
      %p59 = scmp.ne.s32.totalorder %s54, %s56
      %p60 = scmp.eq.s32.totalorder %s20, 0
      %p61 = por %p59, %p60
      %p62 = scmp.ne.s32.totalorder %s54, %s56
      %p63 = scmp.eq.s32.totalorder %s25, 1
      %p64 = por %p62, %p63
      %p65 = scmp.ne.s32.totalorder %s56, %s57
      %p66 = scmp.eq.s32.totalorder %s25, 0
      %p67 = por %p65, %p66
      %p68 = scmp.ne.s32.totalorder %s56, %s57
      %p69 = scmp.eq.s32.totalorder %s26, 1
      %p70 = por %p68, %p69
      %p72 = scmp.ne.s32.totalorder %s57, %s71
      %p73 = scmp.eq.s32.totalorder %s26, 0
      %p74 = por %p72, %p73
      %s76 = sadd.s32 %s75, 1
      %p79 = scmp.eq.s32.totalorder %s20, 1
      %p80 = scmp.ne.s32.totalorder %s75, %s77
      %p81 = scmp.eq.s32.totalorder %s20, 0
      %p82 = por %p80, %p81
      %p83 = scmp.ne.s32.totalorder %s75, %s77
      %p84 = scmp.eq.s32.totalorder %s25, 1
      %p85 = por %p83, %p84
      %p86 = scmp.ne.s32.totalorder %s77, %s78
      %p87 = scmp.eq.s32.totalorder %s25, 0
      %p88 = por %p86, %p87
      %p89 = scmp.ne.s32.totalorder %s77, %s78
      %p90 = scmp.eq.s32.totalorder %s26, 1
      %p91 = por %p89, %p90
      %p93 = scmp.ne.s32.totalorder %s78, %s92
      %p94 = scmp.eq.s32.totalorder %s26, 0
      %p95 = por %p93, %p94
      %s97 = sadd.s32 %s96, 1
      %p100 = scmp.eq.s32.totalorder %s20, 1
      %p101 = scmp.ne.s32.totalorder %s96, %s98
      %p102 = scmp.eq.s32.totalorder %s20, 0
      %p103 = por %p101, %p102
      %p104 = scmp.ne.s32.totalorder %s96, %s98
      %p105 = scmp.eq.s32.totalorder %s25, 1
      %p106 = por %p104, %p105
      %p107 = scmp.ne.s32.totalorder %s98, %s99
      %p108 = scmp.eq.s32.totalorder %s25, 0
      %p109 = por %p107, %p108
      %p110 = scmp.ne.s32.totalorder %s98, %s99
      %p111 = scmp.eq.s32.totalorder %s26, 1
      %p112 = por %p110, %p111
      %p114 = scmp.ne.s32.totalorder %s99, %s113
      %p115 = scmp.eq.s32.totalorder %s26, 0
      %p116 = por %p114, %p115
      %s118 = sadd.s32 %s117, 1
      %p121 = scmp.eq.s32.totalorder %s20, 1
      %p122 = scmp.ne.s32.totalorder %s117, %s119
      %p123 = scmp.eq.s32.totalorder %s20, 0
      %p124 = por %p122, %p123
      %p125 = scmp.ne.s32.totalorder %s117, %s119
      %p126 = scmp.eq.s32.totalorder %s25, 1
      %p127 = por %p125, %p126
      %p128 = scmp.ne.s32.totalorder %s119, %s120
      %p129 = scmp.eq.s32.totalorder %s25, 0
      %p130 = por %p128, %p129
      %p131 = scmp.ne.s32.totalorder %s119, %s120
      %p132 = scmp.eq.s32.totalorder %s26, 1
      %p133 = por %p131, %p132
      %p135 = scmp.ne.s32.totalorder %s120, %s134
      %p136 = scmp.eq.s32.totalorder %s26, 0
      %p137 = por %p135, %p136
      %s139 = sadd.s32 %s138, 1
      %p142 = scmp.eq.s32.totalorder %s20, 1
      %p143 = scmp.ne.s32.totalorder %s138, %s140
      %p144 = scmp.eq.s32.totalorder %s20, 0
      %p145 = por %p143, %p144
      %p146 = scmp.ne.s32.totalorder %s138, %s140
      %p147 = scmp.eq.s32.totalorder %s25, 1
      %p148 = por %p146, %p147
      %p149 = scmp.ne.s32.totalorder %s140, %s141
      %p150 = scmp.eq.s32.totalorder %s25, 0
      %p151 = por %p149, %p150
      %p152 = scmp.ne.s32.totalorder %s140, %s141
      %p153 = scmp.eq.s32.totalorder %s26, 1
      %p154 = por %p152, %p153
      %p156 = scmp.ne.s32.totalorder %s141, %s155
      %p157 = scmp.eq.s32.totalorder %s26, 0
      %p158 = por %p156, %p157
      %s160 = sadd.s32 %s159, 1
      %p163 = scmp.eq.s32.totalorder %s20, 1
      %p164 = scmp.ne.s32.totalorder %s159, %s161
      %p165 = scmp.eq.s32.totalorder %s20, 0
      %p166 = por %p164, %p165
      %p167 = scmp.ne.s32.totalorder %s159, %s161
      %p168 = scmp.eq.s32.totalorder %s25, 1
      %p169 = por %p167, %p168
      %p170 = scmp.ne.s32.totalorder %s161, %s162
      %p171 = scmp.eq.s32.totalorder %s25, 0
      %p172 = por %p170, %p171
      %p173 = scmp.ne.s32.totalorder %s161, %s162
      %p174 = scmp.eq.s32.totalorder %s26, 1
      %p175 = por %p173, %p174
      %p177 = scmp.ne.s32.totalorder %s162, %s176
      %p178 = scmp.eq.s32.totalorder %s26, 0
      %p179 = por %p177, %p178
      %s181 = sadd.s32 %s180, 1
      %p184 = scmp.eq.s32.totalorder %s20, 1
      %p185 = scmp.ne.s32.totalorder %s180, %s182
      %p186 = scmp.eq.s32.totalorder %s20, 0
      %p187 = por %p185, %p186
      %p188 = scmp.ne.s32.totalorder %s180, %s182
      %p189 = scmp.eq.s32.totalorder %s25, 1
      %p190 = por %p188, %p189
      %p191 = scmp.ne.s32.totalorder %s182, %s183
      %p192 = scmp.eq.s32.totalorder %s25, 0
      %p193 = por %p191, %p192
      %p194 = scmp.ne.s32.totalorder %s182, %s183
      %p195 = scmp.eq.s32.totalorder %s26, 1
      %p196 = por %p194, %p195
      %p198 = scmp.ne.s32.totalorder %s183, %s197
      %p199 = scmp.eq.s32.totalorder %s26, 0
      %p200 = por %p198, %p199
      %s202 = sadd.s32 %s201, 1
      %p205 = scmp.eq.s32.totalorder %s20, 1
      %p206 = scmp.ne.s32.totalorder %s201, %s203
      %p207 = scmp.eq.s32.totalorder %s20, 0
      %p208 = por %p206, %p207
      %p209 = scmp.ne.s32.totalorder %s201, %s203
      %p210 = scmp.eq.s32.totalorder %s25, 1
      %p211 = por %p209, %p210
      %p212 = scmp.ne.s32.totalorder %s203, %s204
      %p213 = scmp.eq.s32.totalorder %s25, 0
      %p214 = por %p212, %p213
      %p215 = scmp.ne.s32.totalorder %s203, %s204
      %p216 = scmp.eq.s32.totalorder %s26, 1
      %p217 = por %p215, %p216
      %p219 = scmp.ne.s32.totalorder %s204, %s218
      %p220 = scmp.eq.s32.totalorder %s26, 0
      %p221 = por %p219, %p220
      %s223 = sadd.s32 %s222, 1
      %p226 = scmp.eq.s32.totalorder %s20, 1
      %p227 = scmp.ne.s32.totalorder %s222, %s224
      %p228 = scmp.eq.s32.totalorder %s20, 0
      %p229 = por %p227, %p228
      %p230 = scmp.ne.s32.totalorder %s222, %s224
      %p231 = scmp.eq.s32.totalorder %s25, 1
      %p232 = por %p230, %p231
      %p233 = scmp.ne.s32.totalorder %s224, %s225
      %p234 = scmp.eq.s32.totalorder %s25, 0
      %p235 = por %p233, %p234
      %p236 = scmp.ne.s32.totalorder %s224, %s225
      %p237 = scmp.eq.s32.totalorder %s26, 1
      %p238 = por %p236, %p237
      %p240 = scmp.ne.s32.totalorder %s225, %s239
      %p241 = scmp.eq.s32.totalorder %s26, 0
      %p242 = por %p240, %p241
      %s244 = sadd.s32 %s243, 1
      %p247 = scmp.eq.s32.totalorder %s20, 1
      %p248 = scmp.ne.s32.totalorder %s243, %s245
      %p249 = scmp.eq.s32.totalorder %s20, 0
      %p250 = por %p248, %p249
      %p251 = scmp.ne.s32.totalorder %s243, %s245
      %p252 = scmp.eq.s32.totalorder %s25, 1
      %p253 = por %p251, %p252
      %p254 = scmp.ne.s32.totalorder %s245, %s246
      %p255 = scmp.eq.s32.totalorder %s25, 0
      %p256 = por %p254, %p255
      %p257 = scmp.ne.s32.totalorder %s245, %s246
      %p258 = scmp.eq.s32.totalorder %s26, 1
      %p259 = por %p257, %p258
      %p261 = scmp.ne.s32.totalorder %s246, %s260
      %p262 = scmp.eq.s32.totalorder %s26, 0
      %p263 = por %p261, %p262
      %s264 = ssub.s32 %s20, %s27
      %p265 = scmp.eq.s32.totalorder %s264, 0
      %s267 = sadd.s32 %s266, 1
      %s268 = scalar_select %p265, %s266, %s267
      %p271 = pneg %p265
      %p272 = scmp.eq.s32.totalorder %s20, 1
      %p273 = por %p271, %p272
      %p274 = scmp.ne.s32.totalorder %s266, %s269
      %p275 = scmp.eq.s32.totalorder %s20, 0
      %p276 = por %p274, %p275
      %p277 = scmp.ne.s32.totalorder %s266, %s269
      %p278 = scmp.eq.s32.totalorder %s25, 1
      %p279 = por %p277, %p278
      %p280 = scmp.ne.s32.totalorder %s269, %s270
      %p281 = scmp.eq.s32.totalorder %s25, 0
      %p282 = por %p280, %p281
      %p283 = scmp.ne.s32.totalorder %s269, %s270
      %p284 = scmp.eq.s32.totalorder %s26, 1
      %p285 = por %p283, %p284
      %p287 = scmp.ne.s32.totalorder %s270, %s286
      %p288 = scmp.eq.s32.totalorder %s26, 0
      %p289 = por %p287, %p288
      %p290 = scmp.le.s32.totalorder 1, %s20
      %p291 = scmp.lt.s32.totalorder %s20, 3
      %p292 = pnand %p290, %p291
      %p293 = pneg %p292
      // Predicated region
      $region9: #{sagcn_forward.1} parent=5 // pred_check
        _
      $region10: #{sagcn_forward.1} parent=5 // pred_check_branch
        %295 = sbr.rel (%p292) target = $region12
      $region11: #{sagcn_forward.1} parent=5 // pred_region
        %s296 = ssub.s32 %s20, 1
        // Predicated region
        $region13: #{sagcn_forward.1} parent=11 // pred_check
          %p297 = pneg %p67
        $region14: #{sagcn_forward.1} parent=11 // pred_check_branch
          %299 = sbr.rel (%p297) target = $region16
        $region15: #{sagcn_forward.1} parent=11 // pred_region
          _
        $region16: #{sagcn_forward.1} parent=11 // pred_fallthru
          _
        // Predicated region
        $region17: #{sagcn_forward.1} parent=11 // pred_check
          %p300 = pneg %p88
        $region18: #{sagcn_forward.1} parent=11 // pred_check_branch
          %302 = sbr.rel (%p300) target = $region20
        $region19: #{sagcn_forward.1} parent=11 // pred_region
          _
        $region20: #{sagcn_forward.1} parent=11 // pred_fallthru
          _
        // Predicated region
        $region21: #{sagcn_forward.1} parent=11 // pred_check
          %p303 = pneg %p109
        $region22: #{sagcn_forward.1} parent=11 // pred_check_branch
          %305 = sbr.rel (%p303) target = $region24
        $region23: #{sagcn_forward.1} parent=11 // pred_region
          _
        $region24: #{sagcn_forward.1} parent=11 // pred_fallthru
          _
        // Predicated region
        $region25: #{sagcn_forward.1} parent=11 // pred_check
          %p306 = pneg %p130
        $region26: #{sagcn_forward.1} parent=11 // pred_check_branch
          %308 = sbr.rel (%p306) target = $region28
        $region27: #{sagcn_forward.1} parent=11 // pred_region
          _
        $region28: #{sagcn_forward.1} parent=11 // pred_fallthru
          _
        // Predicated region
        $region29: #{sagcn_forward.1} parent=11 // pred_check
          %p309 = pneg %p151
        $region30: #{sagcn_forward.1} parent=11 // pred_check_branch
          %311 = sbr.rel (%p309) target = $region32
        $region31: #{sagcn_forward.1} parent=11 // pred_region
          _
        $region32: #{sagcn_forward.1} parent=11 // pred_fallthru
          _
        // Predicated region
        $region33: #{sagcn_forward.1} parent=11 // pred_check
          %p312 = pneg %p172
        $region34: #{sagcn_forward.1} parent=11 // pred_check_branch
          %314 = sbr.rel (%p312) target = $region36
        $region35: #{sagcn_forward.1} parent=11 // pred_region
          _
        $region36: #{sagcn_forward.1} parent=11 // pred_fallthru
          _
        // Predicated region
        $region37: #{sagcn_forward.1} parent=11 // pred_check
          %p315 = pneg %p193
        $region38: #{sagcn_forward.1} parent=11 // pred_check_branch
          %317 = sbr.rel (%p315) target = $region40
        $region39: #{sagcn_forward.1} parent=11 // pred_region
          _
        $region40: #{sagcn_forward.1} parent=11 // pred_fallthru
          _
        // Predicated region
        $region41: #{sagcn_forward.1} parent=11 // pred_check
          %p318 = pneg %p214
        $region42: #{sagcn_forward.1} parent=11 // pred_check_branch
          %320 = sbr.rel (%p318) target = $region44
        $region43: #{sagcn_forward.1} parent=11 // pred_region
          _
        $region44: #{sagcn_forward.1} parent=11 // pred_fallthru
          _
        // Predicated region
        $region45: #{sagcn_forward.1} parent=11 // pred_check
          %p321 = pneg %p235
        $region46: #{sagcn_forward.1} parent=11 // pred_check_branch
          %323 = sbr.rel (%p321) target = $region48
        $region47: #{sagcn_forward.1} parent=11 // pred_region
          _
        $region48: #{sagcn_forward.1} parent=11 // pred_fallthru
          _
        // Predicated region
        $region49: #{sagcn_forward.1} parent=11 // pred_check
          %p324 = pneg %p256
        $region50: #{sagcn_forward.1} parent=11 // pred_check_branch
          %326 = sbr.rel (%p324) target = $region52
        $region51: #{sagcn_forward.1} parent=11 // pred_region
          _
        $region52: #{sagcn_forward.1} parent=11 // pred_fallthru
          _
      $region12: #{sagcn_forward.1} parent=5 // pred_fallthru
        _
      %p327 = scmp.lt.s32.totalorder %s20, 2
      // Predicated region
      $region53: #{sagcn_forward.1} parent=5 // pred_check
        %p328 = pneg %p327
      $region54: #{sagcn_forward.1} parent=5 // pred_check_branch
        %330 = sbr.rel (%p328) target = $region56
      $region55: #{sagcn_forward.1} parent=5 // pred_region
        // Predicated region
        $region57: #{sagcn_forward.1} parent=55 // pred_check
          %p331 = pneg %p40
        $region58: #{sagcn_forward.1} parent=55 // pred_check_branch
          %333 = sbr.rel (%p331) target = $region60
        $region59: #{sagcn_forward.1} parent=55 // pred_region
          %p334 = scmp.lt.s32.totalorder %s20, 1
          %s335 = scalar_select %p334, %s20, 1
          %s336 = smul.addr %s335, 75
          %s337 = smul.addr %s336, 8
          %s338 = scalar_lea.vmem %s0, %s337
        $region60: #{sagcn_forward.1} parent=55 // pred_fallthru
          _
      $region56: #{sagcn_forward.1} parent=5 // pred_fallthru
        _
      %p339 = scmp.le.s32.totalorder 1, %s20
      %p340 = scmp.lt.s32.totalorder %s20, 3
      %p341 = pnand %p339, %p340
      %p342 = pneg %p341
      // Predicated region
      $region61: #{sagcn_forward.1} parent=5 // pred_check
        _
      $region62: #{sagcn_forward.1} parent=5 // pred_check_branch
        %344 = sbr.rel (%p341) target = $region64
      $region63: #{sagcn_forward.1} parent=5 // pred_region
        %s345 = ssub.s32 %s20, 1
        %p346 = scmp.lt.s32.totalorder %s25, 1
        %s347 = scalar_select %p346, %s25, 1
        %s348 = smul.addr %s347, 75
        %s349 = smul.addr %s348, 8
        %s350 = scalar_lea.vmem %s0, %s349
        %p351 = pneg %p46
        %p352 = pneg %p43
        %p353 = pneg %p67
        %p354 = pneg %p64
        %p355 = pneg %p88
        %p356 = pneg %p85
        %p357 = pneg %p109
        %p358 = pneg %p106
        %p359 = pneg %p130
        %p360 = pneg %p127
        %p361 = pneg %p151
        %p362 = pneg %p148
        %p363 = pneg %p172
        %p364 = pneg %p169
        %p365 = pneg %p193
        %p366 = pneg %p190
        %p367 = pneg %p214
        %p368 = pneg %p211
        %p369 = pneg %p235
        %p370 = pneg %p232
        %p371 = pneg %p256
        %p372 = pneg %p253
        %p373 = pneg %p282
        %p374 = pneg %p279
        %s375 = sand.u32 %s269, 1
        %s376 = scalar_lea.sflag [#allocation3], %s375
        %s377 = sand.u32 %s269, 1
        %s378 = scalar_lea.vmem [#allocation2], %s377
        %p379 = scmp.lt.s32.totalorder %s25, 1
        %s380 = scalar_select %p379, %s25, 1
        %s381 = smul.addr %s380, 75
        %s382 = smul.addr %s381, 8
        %s383 = scalar_lea.vmem %s0, %s382
        %v385 = vld [vmem:[%s383] sm:$0xff]
        %v386 = vld [vmem:[%s383 + $0x8] sm:$0xff]
        %v387 = vld [vmem:[%s383 + $0x10] sm:$0xff]
        %v388 = vld [vmem:[%s383 + $0x18] sm:$0xff]
        %v389 = vld [vmem:[%s383 + $0x20] sm:$0xff]
        %v390 = vld [vmem:[%s383 + $0x28] sm:$0xff]
        %v391 = vld [vmem:[%s383 + $0x30] sm:$0xff]
        %v392 = vld [vmem:[%s383 + $0x38] sm:$0xff]
        %v393 = vld [vmem:[%s383 + $0x40] sm:$0xff]
        %v394 = vld [vmem:[%s383 + $0x48] sm:$0xff]
        %v395 = vld [vmem:[%s383 + $0x50] sm:$0xff]
        %v396 = vld [vmem:[%s383 + $0x58] sm:$0xff]
        %v397 = vld [vmem:[%s383 + $0x60] sm:$0xff]
        %v398 = vld [vmem:[%s383 + $0x68] sm:$0xff]
        %v399 = vld [vmem:[%s383 + $0x70] sm:$0xff]
        %v400 = vld [vmem:[%s383 + $0x78] sm:$0xff]
        %v401 = vld [vmem:[%s383 + $0x80] sm:$0xff]
        %v402 = vld [vmem:[%s383 + $0x88] sm:$0xff]
        %v403 = vld [vmem:[%s383 + $0x90] sm:$0xff]
        %v404 = vld [vmem:[%s383 + $0x98] sm:$0xff]
        %v405 = vld [vmem:[%s383 + $0xa0] sm:$0xff]
        %v406 = vld [vmem:[%s383 + $0xa8] sm:$0xff]
        %v407 = vld [vmem:[%s383 + $0xb0] sm:$0xff]
        %v408 = vld [vmem:[%s383 + $0xb8] sm:$0xff]
        %v409 = vld [vmem:[%s383 + $0xc0] sm:$0xff]
        %v410 = vld [vmem:[%s383 + $0xc8] sm:$0xff]
        %v411 = vld [vmem:[%s383 + $0xd0] sm:$0xff]
        %v412 = vld [vmem:[%s383 + $0xd8] sm:$0xff]
        %v413 = vld [vmem:[%s383 + $0xe0] sm:$0xff]
        %v414 = vld [vmem:[%s383 + $0xe8] sm:$0xff]
        %v415 = vld [vmem:[%s383 + $0xf0] sm:$0xff]
        %v416 = vld [vmem:[%s383 + $0xf8] sm:$0xff]
        %v417 = vld [vmem:[%s383 + $0x100] sm:$0xff]
        %v418 = vld [vmem:[%s383 + $0x108] sm:$0xff]
        %v419 = vld [vmem:[%s383 + $0x110] sm:$0xff]
        %v420 = vld [vmem:[%s383 + $0x118] sm:$0xff]
        %v421 = vld [vmem:[%s383 + $0x120] sm:$0xff]
        %v422 = vld [vmem:[%s383 + $0x128] sm:$0xff]
        %v423 = vld [vmem:[%s383 + $0x130] sm:$0xff]
        %v424 = vld [vmem:[%s383 + $0x138] sm:$0xff]
        %v425 = vld [vmem:[%s383 + $0x140] sm:$0xff]
        %v426 = vld [vmem:[%s383 + $0x148] sm:$0xff]
        %v427 = vld [vmem:[%s383 + $0x150] sm:$0xff]
        %v428 = vld [vmem:[%s383 + $0x158] sm:$0xff]
        %v429 = vld [vmem:[%s383 + $0x160] sm:$0xff]
        %v430 = vld [vmem:[%s383 + $0x168] sm:$0xff]
        %v431 = vld [vmem:[%s383 + $0x170] sm:$0xff]
        %v432 = vld [vmem:[%s383 + $0x178] sm:$0xff]
        %v433 = vld [vmem:[%s383 + $0x180] sm:$0xff]
        %v434 = vld [vmem:[%s383 + $0x188] sm:$0xff]
        %v435 = vld [vmem:[%s383 + $0x190] sm:$0xff]
        %v436 = vld [vmem:[%s383 + $0x198] sm:$0xff]
        %v437 = vld [vmem:[%s383 + $0x1a0] sm:$0xff]
        %v438 = vld [vmem:[%s383 + $0x1a8] sm:$0xff]
        %v439 = vld [vmem:[%s383 + $0x1b0] sm:$0xff]
        %v440 = vld [vmem:[%s383 + $0x1b8] sm:$0xff]
        %v441 = vld [vmem:[%s383 + $0x1c0] sm:$0xff]
        %v442 = vld [vmem:[%s383 + $0x1c8] sm:$0xff]
        %v443 = vld [vmem:[%s383 + $0x1d0] sm:$0xff]
        %v444 = vld [vmem:[%s383 + $0x1d8] sm:$0xff]
        %v445 = vld [vmem:[%s383 + $0x1e0] sm:$0xff]
        %v446 = vld [vmem:[%s383 + $0x1e8] sm:$0xff]
        %v447 = vld [vmem:[%s383 + $0x1f0] sm:$0xff]
        %v448 = vld [vmem:[%s383 + $0x1f8] sm:$0xff]
        %v449 = vld [vmem:[%s383 + $0x200] sm:$0xff]
        %v450 = vld [vmem:[%s383 + $0x208] sm:$0xff]
        %v451 = vld [vmem:[%s383 + $0x210] sm:$0xff]
        %v452 = vld [vmem:[%s383 + $0x218] sm:$0xff]
        %v453 = vld [vmem:[%s383 + $0x220] sm:$0xff]
        %v454 = vld [vmem:[%s383 + $0x228] sm:$0xff]
        %v455 = vld [vmem:[%s383 + $0x230] sm:$0xff]
        %v456 = vld [vmem:[%s383 + $0x238] sm:$0xff]
        %v457 = vld [vmem:[%s383 + $0x240] sm:$0xff]
        %v458 = vld [vmem:[%s383 + $0x248] sm:$0xff]
        %v459 = vld [vmem:[%s383 + $0x250] sm:$0xff]
        %v460 = vpack.c.bf16 %v388, %v385
        %v461 = vpack.c.bf16 %v389, %v386
        %v462 = vpack.c.bf16 %v390, %v387
        %v463 = vpack.c.bf16 %v394, %v391
        %v464 = vpack.c.bf16 %v395, %v392
        %v465 = vpack.c.bf16 %v396, %v393
        %v466 = vpack.c.bf16 %v400, %v397
        %v467 = vpack.c.bf16 %v401, %v398
        %v468 = vpack.c.bf16 %v402, %v399
        %v469 = vpack.c.bf16 %v406, %v403
        %v470 = vpack.c.bf16 %v407, %v404
        %v471 = vpack.c.bf16 %v408, %v405
        %v472 = vpack.c.bf16 %v412, %v409
        %v473 = vpack.c.bf16 %v413, %v410
        %v474 = vpack.c.bf16 %v414, %v411
        %v475 = vpack.c.bf16 %v418, %v415
        %v476 = vpack.c.bf16 %v419, %v416
        %v477 = vpack.c.bf16 %v420, %v417
        %v478 = vpack.c.bf16 %v424, %v421
        %v479 = vpack.c.bf16 %v425, %v422
        %v480 = vpack.c.bf16 %v426, %v423
        %v481 = vpack.c.bf16 %v430, %v427
        %v482 = vpack.c.bf16 %v431, %v428
        %v483 = vpack.c.bf16 %v432, %v429
        %v484 = vpack.c.bf16 %v436, %v433
        %v485 = vpack.c.bf16 %v437, %v434
        %v486 = vpack.c.bf16 %v438, %v435
        %v487 = vpack.c.bf16 %v442, %v439
        %v488 = vpack.c.bf16 %v443, %v440
        %v489 = vpack.c.bf16 %v444, %v441
        %v490 = vpack.c.bf16 %v448, %v445
        %v491 = vpack.c.bf16 %v449, %v446
        %v492 = vpack.c.bf16 %v450, %v447
        %v493 = vpack.c.bf16 %v454, %v451
        %v494 = vpack.c.bf16 %v455, %v452
        %v495 = vpack.c.bf16 %v456, %v453
        %v496 = vpack.c.bf16 %v457, %v457
        %v497 = vpack.c.bf16 %v458, %v458
        %v498 = vpack.c.bf16 %v459, %v459
        %v499 = vld [vmem:[%s1] sm:$0xff]
        %v500 = vld [vmem:[%s1 + $0x8] sm:$0xff]
        %v501 = vld [vmem:[%s1 + $0x10] sm:$0xff]
        %v502 = vld [vmem:[%s1 + $0x18] sm:$0xff]
        %v503 = vld [vmem:[%s1 + $0x20] sm:$0xff]
        %v504 = vld [vmem:[%s1 + $0x28] sm:$0xff]
        %v505 = vld [vmem:[%s1 + $0x30] sm:$0xff]
        %v506 = vld [vmem:[%s1 + $0x38] sm:$0xff]
        %v507 = vld [vmem:[%s1 + $0x40] sm:$0xff]
        %v508 = vld [vmem:[%s1 + $0x48] sm:$0xff]
        %v509 = vld [vmem:[%s1 + $0x50] sm:$0xff]
        %v510 = vld [vmem:[%s1 + $0x58] sm:$0xff]
        %v511 = vld [vmem:[%s1 + $0x60] sm:$0xff]
        %v512 = vld [vmem:[%s1 + $0x68] sm:$0xff]
        %v513 = vld [vmem:[%s1 + $0x70] sm:$0xff]
        %v514 = vld [vmem:[%s1 + $0x78] sm:$0xff]
        %v515 = vld [vmem:[%s1 + $0x80] sm:$0xff]
        %v516 = vld [vmem:[%s1 + $0x88] sm:$0xff]
        %v517 = vld [vmem:[%s1 + $0x90] sm:$0xff]
        %v518 = vld [vmem:[%s1 + $0x98] sm:$0xff]
        %v519 = vld [vmem:[%s1 + $0xa0] sm:$0xff]
        %v520 = vld [vmem:[%s1 + $0xa8] sm:$0xff]
        %v521 = vld [vmem:[%s1 + $0xb0] sm:$0xff]
        %v522 = vld [vmem:[%s1 + $0xb8] sm:$0xff]
        %v523 = vld [vmem:[%s1 + $0xc0] sm:$0xff]
        %v524 = vld [vmem:[%s1 + $0xc8] sm:$0xff]
        %v525 = vld [vmem:[%s1 + $0xd0] sm:$0xff]
        %v526 = vld [vmem:[%s1 + $0xd8] sm:$0xff]
        %v527 = vld [vmem:[%s1 + $0xe0] sm:$0xff]
        %v528 = vld [vmem:[%s1 + $0xe8] sm:$0xff]
        %v529 = vld [vmem:[%s1 + $0xf0] sm:$0xff]
        %v530 = vld [vmem:[%s1 + $0xf8] sm:$0xff]
        %v531 = vld [vmem:[%s1 + $0x100] sm:$0xff]
        %v532 = vld [vmem:[%s1 + $0x108] sm:$0xff]
        %v533 = vld [vmem:[%s1 + $0x110] sm:$0xff]
        %v534 = vld [vmem:[%s1 + $0x118] sm:$0xff]
        %v535 = vld [vmem:[%s1 + $0x120] sm:$0xff]
        %v536 = vld [vmem:[%s1 + $0x128] sm:$0xff]
        %v537 = vld [vmem:[%s1 + $0x130] sm:$0xff]
        %v538 = vld [vmem:[%s1 + $0x138] sm:$0xff]
        %v539 = vld [vmem:[%s2] sm:$0x3]
        %v541 = vperm.slane %v539, 0
        %v542 = vperm.slane %v539, 1
        %v585 = vunpack.c.l.b16 %v499
        %v586 = vunpack.c.h.b16 %v499
        %v587 = vunpack.c.l.b16 %v500
        %v588 = vunpack.c.h.b16 %v500
        %v589 = vunpack.c.l.b16 %v501
        %v590 = vunpack.c.h.b16 %v501
        %v591 = vunpack.c.l.b16 %v502
        %v592 = vunpack.c.h.b16 %v502
        %v593 = vunpack.c.l.b16 %v503
        %v594 = vunpack.c.h.b16 %v503
        %v595 = vunpack.c.l.b16 %v504
        %v596 = vunpack.c.h.b16 %v504
        %v597 = vunpack.c.l.b16 %v505
        %v598 = vunpack.c.h.b16 %v505
        %v599 = vunpack.c.l.b16 %v506
        %v600 = vunpack.c.h.b16 %v506
        %v601 = vunpack.c.l.b16 %v507
        %v602 = vunpack.c.h.b16 %v507
        %v603 = vunpack.c.l.b16 %v508
        %v604 = vunpack.c.h.b16 %v508
        %v605 = vunpack.c.l.b16 %v509
        %v606 = vunpack.c.h.b16 %v509
        %v607 = vunpack.c.l.b16 %v510
        %v608 = vunpack.c.h.b16 %v510
        %v609 = vunpack.c.l.b16 %v511
        %v610 = vunpack.c.h.b16 %v511
        %v611 = vunpack.c.l.b16 %v512
        %v612 = vunpack.c.h.b16 %v512
        %v613 = vunpack.c.l.b16 %v513
        %v614 = vunpack.c.h.b16 %v513
        %v615 = vunpack.c.l.b16 %v514
        %v616 = vunpack.c.h.b16 %v514
        %v617 = vunpack.c.l.b16 %v515
        %v618 = vunpack.c.h.b16 %v515
        %v619 = vunpack.c.l.b16 %v516
        %v620 = vunpack.c.h.b16 %v516
        %v621 = vunpack.c.l.b16 %v517
        %v622 = vunpack.c.h.b16 %v517
        %v623 = vunpack.c.l.b16 %v518
        %v624 = vunpack.c.h.b16 %v518
        %v625 = vunpack.c.l.b16 %v519
        %v626 = vunpack.c.h.b16 %v519
        %v627 = vunpack.c.l.b16 %v520
        %v628 = vunpack.c.h.b16 %v520
        %v629 = vunpack.c.l.b16 %v521
        %v630 = vunpack.c.h.b16 %v521
        %v631 = vunpack.c.l.b16 %v522
        %v632 = vunpack.c.h.b16 %v522
        %v633 = vunpack.c.l.b16 %v523
        %v634 = vunpack.c.h.b16 %v523
        %v635 = vunpack.c.l.b16 %v524
        %v636 = vunpack.c.h.b16 %v524
        %v637 = vunpack.c.l.b16 %v525
        %v638 = vunpack.c.h.b16 %v525
        %v639 = vunpack.c.l.b16 %v526
        %v640 = vunpack.c.h.b16 %v526
        %v641 = vunpack.c.l.b16 %v527
        %v642 = vunpack.c.h.b16 %v527
        %v643 = vunpack.c.l.b16 %v528
        %v644 = vunpack.c.h.b16 %v528
        %v645 = vunpack.c.l.b16 %v529
        %v646 = vunpack.c.h.b16 %v529
        %v647 = vunpack.c.l.b16 %v530
        %v648 = vunpack.c.h.b16 %v530
        %v649 = vunpack.c.l.b16 %v531
        %v650 = vunpack.c.h.b16 %v531
        %v651 = vunpack.c.l.b16 %v532
        %v652 = vunpack.c.h.b16 %v532
        %v653 = vunpack.c.l.b16 %v533
        %v654 = vunpack.c.h.b16 %v533
        %v655 = vunpack.c.l.b16 %v534
        %v656 = vunpack.c.h.b16 %v534
        %v657 = vunpack.c.l.b16 %v535
        %v658 = vunpack.c.h.b16 %v535
        %v659 = vunpack.c.l.b16 %v536
        %v660 = vunpack.c.h.b16 %v536
        %v661 = vunpack.c.l.b16 %v537
        %v662 = vunpack.c.h.b16 %v537
        %v663 = vunpack.c.l.b16 %v538
        %v664 = vunpack.c.h.b16 %v538
        %v665 = vpack.c.b16 %v587, %v585
        %v666 = vpack.c.b16 %v588, %v586
        %v667 = vpack.c.b16 %v591, %v589
        %v668 = vpack.c.b16 %v592, %v590
        %v669 = vpack.c.b16 %v595, %v593
        %v670 = vpack.c.b16 %v596, %v594
        %v671 = vpack.c.b16 %v599, %v597
        %v672 = vpack.c.b16 %v600, %v598
        %v673 = vpack.c.b16 %v603, %v601
        %v674 = vpack.c.b16 %v604, %v602
        %v675 = vpack.c.b16 %v607, %v605
        %v676 = vpack.c.b16 %v608, %v606
        %v677 = vpack.c.b16 %v611, %v609
        %v678 = vpack.c.b16 %v612, %v610
        %v679 = vpack.c.b16 %v615, %v613
        %v680 = vpack.c.b16 %v616, %v614
        %v681 = vpack.c.b16 %v619, %v617
        %v682 = vpack.c.b16 %v620, %v618
        %v683 = vpack.c.b16 %v623, %v621
        %v684 = vpack.c.b16 %v624, %v622
        %v685 = vpack.c.b16 %v627, %v625
        %v686 = vpack.c.b16 %v628, %v626
        %v687 = vpack.c.b16 %v631, %v629
        %v688 = vpack.c.b16 %v632, %v630
        %v689 = vpack.c.b16 %v635, %v633
        %v690 = vpack.c.b16 %v636, %v634
        %v691 = vpack.c.b16 %v639, %v637
        %v692 = vpack.c.b16 %v640, %v638
        %v693 = vpack.c.b16 %v643, %v641
        %v694 = vpack.c.b16 %v644, %v642
        %v695 = vpack.c.b16 %v647, %v645
        %v696 = vpack.c.b16 %v648, %v646
        %v697 = vpack.c.b16 %v651, %v649
        %v698 = vpack.c.b16 %v652, %v650
        %v699 = vpack.c.b16 %v655, %v653
        %v700 = vpack.c.b16 %v656, %v654
        %v701 = vpack.c.b16 %v659, %v657
        %v702 = vpack.c.b16 %v660, %v658
        %v703 = vpack.c.b16 %v663, %v661
        %v704 = vpack.c.b16 %v664, %v662
        %vm745 = vcmask 523264
        %v747 = vsel %vm745, %v462, 0
        %v750 = vsel %vm745, %v465, 0
        %v753 = vsel %vm745, %v468, 0
        %v756 = vsel %vm745, %v471, 0
        %v759 = vsel %vm745, %v474, 0
        %v762 = vsel %vm745, %v477, 0
        %v765 = vsel %vm745, %v480, 0
        %v768 = vsel %vm745, %v483, 0
        %v771 = vsel %vm745, %v486, 0
        %v774 = vsel %vm745, %v489, 0
        %v777 = vsel %vm745, %v492, 0
        %v780 = vsel %vm745, %v495, 0
        %v783 = vsel %vm745, %v498, 0
        %785 = vmatpush.bf16.msra.mxu0 %v679
        %786 = vmatpush.bf16.msra.mxu0 %v677
        %787 = vmatpush.bf16.msra.mxu0 %v675
        %788 = vmatpush.bf16.msra.mxu0 %v673
        %789 = vmatpush.bf16.msra.mxu0 %v671
        %790 = vmatpush.bf16.msra.mxu0 %v669
        %791 = vmatpush.bf16.msra.mxu0 %v667
        %792 = vmatpush.bf16.msra.mxu0 %v665
        %793 = vmatmul.bf16.gmra.mxu0 %v460
        %v794 = vpop.f32.mrf.mxu0
        %v795 = vadd.f32 %v541, %v794
        %v796 = vpop.f32.mrf.mxu0
        %v797 = vadd.f32 %v541, %v796
        %798 = vmatmul.bf16.gmra.mxu0 %v463
        %v799 = vpop.f32.mrf.mxu0
        %v800 = vadd.f32 %v541, %v799
        %v801 = vpop.f32.mrf.mxu0
        %v802 = vadd.f32 %v541, %v801
        %803 = vmatmul.bf16.gmra.mxu0 %v466
        %v804 = vpop.f32.mrf.mxu0
        %v805 = vadd.f32 %v541, %v804
        %v806 = vpop.f32.mrf.mxu0
        %v807 = vadd.f32 %v541, %v806
        %808 = vmatmul.bf16.gmra.mxu0 %v469
        %v809 = vpop.f32.mrf.mxu0
        %v810 = vadd.f32 %v541, %v809
        %v811 = vpop.f32.mrf.mxu0
        %v812 = vadd.f32 %v541, %v811
        %813 = vmatmul.bf16.gmra.mxu0 %v472
        %v814 = vpop.f32.mrf.mxu0
        %v815 = vadd.f32 %v541, %v814
        %v816 = vpop.f32.mrf.mxu0
        %v817 = vadd.f32 %v541, %v816
        %818 = vmatmul.bf16.gmra.mxu0 %v475
        %v819 = vpop.f32.mrf.mxu0
        %v820 = vadd.f32 %v541, %v819
        %v821 = vpop.f32.mrf.mxu0
        %v822 = vadd.f32 %v541, %v821
        %823 = vmatmul.bf16.gmra.mxu0 %v478
        %v824 = vpop.f32.mrf.mxu0
        %v825 = vadd.f32 %v541, %v824
        %v826 = vpop.f32.mrf.mxu0
        %v827 = vadd.f32 %v541, %v826
        %828 = vmatmul.bf16.gmra.mxu0 %v481
        %v829 = vpop.f32.mrf.mxu0
        %v830 = vadd.f32 %v541, %v829
        %v831 = vpop.f32.mrf.mxu0
        %v832 = vadd.f32 %v541, %v831
        %833 = vmatmul.bf16.gmra.mxu0 %v484
        %v834 = vpop.f32.mrf.mxu0
        %v835 = vadd.f32 %v541, %v834
        %v836 = vpop.f32.mrf.mxu0
        %v837 = vadd.f32 %v541, %v836
        %838 = vmatmul.bf16.gmra.mxu0 %v487
        %v839 = vpop.f32.mrf.mxu0
        %v840 = vadd.f32 %v541, %v839
        %v841 = vpop.f32.mrf.mxu0
        %v842 = vadd.f32 %v541, %v841
        %843 = vmatmul.bf16.gmra.mxu0 %v490
        %v844 = vpop.f32.mrf.mxu0
        %v845 = vadd.f32 %v541, %v844
        %v846 = vpop.f32.mrf.mxu0
        %v847 = vadd.f32 %v541, %v846
        %848 = vmatmul.bf16.gmra.mxu0 %v493
        %v849 = vpop.f32.mrf.mxu0
        %v850 = vadd.f32 %v541, %v849
        %v851 = vpop.f32.mrf.mxu0
        %v852 = vadd.f32 %v541, %v851
        %853 = vmatmul.bf16.gmra.mxu0 %v496
        %v854 = vpop.f32.mrf.mxu0
        %v855 = vadd.f32 %v541, %v854
        %v856 = vpop.f32.mrf.mxu0
        %857 = vdwg.mxu0
        %858 = vmatpush.bf16.msra.mxu0 %v695
        %859 = vmatpush.bf16.msra.mxu0 %v693
        %860 = vmatpush.bf16.msra.mxu0 %v691
        %861 = vmatpush.bf16.msra.mxu0 %v689
        %862 = vmatpush.bf16.msra.mxu0 %v687
        %863 = vmatpush.bf16.msra.mxu0 %v685
        %864 = vmatpush.bf16.msra.mxu0 %v683
        %865 = vmatpush.bf16.msra.mxu0 %v681
        %866 = vmatmul.bf16.gmra.mxu0 %v461
        %v867 = vpop.f32.mrf.mxu0
        %v868 = vadd.f32 %v795, %v867
        %v869 = vpop.f32.mrf.mxu0
        %v870 = vadd.f32 %v797, %v869
        %871 = vmatmul.bf16.gmra.mxu0 %v464
        %v872 = vpop.f32.mrf.mxu0
        %v873 = vadd.f32 %v800, %v872
        %v874 = vpop.f32.mrf.mxu0
        %v875 = vadd.f32 %v802, %v874
        %876 = vmatmul.bf16.gmra.mxu0 %v467
        %v877 = vpop.f32.mrf.mxu0
        %v878 = vadd.f32 %v805, %v877
        %v879 = vpop.f32.mrf.mxu0
        %v880 = vadd.f32 %v807, %v879
        %881 = vmatmul.bf16.gmra.mxu0 %v470
        %v882 = vpop.f32.mrf.mxu0
        %v883 = vadd.f32 %v810, %v882
        %v884 = vpop.f32.mrf.mxu0
        %v885 = vadd.f32 %v812, %v884
        %886 = vmatmul.bf16.gmra.mxu0 %v473
        %v887 = vpop.f32.mrf.mxu0
        %v888 = vadd.f32 %v815, %v887
        %v889 = vpop.f32.mrf.mxu0
        %v890 = vadd.f32 %v817, %v889
        %891 = vmatmul.bf16.gmra.mxu0 %v476
        %v892 = vpop.f32.mrf.mxu0
        %v893 = vadd.f32 %v820, %v892
        %v894 = vpop.f32.mrf.mxu0
        %v895 = vadd.f32 %v822, %v894
        %896 = vmatmul.bf16.gmra.mxu0 %v479
        %v897 = vpop.f32.mrf.mxu0
        %v898 = vadd.f32 %v825, %v897
        %v899 = vpop.f32.mrf.mxu0
        %v900 = vadd.f32 %v827, %v899
        %901 = vmatmul.bf16.gmra.mxu0 %v482
        %v902 = vpop.f32.mrf.mxu0
        %v903 = vadd.f32 %v830, %v902
        %v904 = vpop.f32.mrf.mxu0
        %v905 = vadd.f32 %v832, %v904
        %906 = vmatmul.bf16.gmra.mxu0 %v485
        %v907 = vpop.f32.mrf.mxu0
        %v908 = vadd.f32 %v835, %v907
        %v909 = vpop.f32.mrf.mxu0
        %v910 = vadd.f32 %v837, %v909
        %911 = vmatmul.bf16.gmra.mxu0 %v488
        %v912 = vpop.f32.mrf.mxu0
        %v913 = vadd.f32 %v840, %v912
        %v914 = vpop.f32.mrf.mxu0
        %v915 = vadd.f32 %v842, %v914
        %916 = vmatmul.bf16.gmra.mxu0 %v491
        %v917 = vpop.f32.mrf.mxu0
        %v918 = vadd.f32 %v845, %v917
        %v919 = vpop.f32.mrf.mxu0
        %v920 = vadd.f32 %v847, %v919
        %921 = vmatmul.bf16.gmra.mxu0 %v494
        %v922 = vpop.f32.mrf.mxu0
        %v923 = vadd.f32 %v850, %v922
        %v924 = vpop.f32.mrf.mxu0
        %v925 = vadd.f32 %v852, %v924
        %926 = vmatmul.bf16.gmra.mxu0 %v497
        %v927 = vpop.f32.mrf.mxu0
        %v928 = vadd.f32 %v855, %v927
        %v929 = vpop.f32.mrf.mxu0
        %930 = vdwg.mxu0
        %931 = vmatpush.bf16.msra.mxu0 0
        %932 = vmatpush.bf16.msra.mxu0 0
        %933 = vmatpush.bf16.msra.mxu0 0
        %934 = vmatpush.bf16.msra.mxu0 0
        %935 = vmatpush.bf16.msra.mxu0 %v703
        %936 = vmatpush.bf16.msra.mxu0 %v701
        %937 = vmatpush.bf16.msra.mxu0 %v699
        %938 = vmatpush.bf16.msra.mxu0 %v697
        %939 = vmatmul.bf16.gmra.mxu0 %v747
        %v940 = vpop.f32.mrf.mxu0
        %v941 = vadd.f32 %v868, %v940
        %v942 = vpop.f32.mrf.mxu0
        %v943 = vadd.f32 %v870, %v942
        %944 = vmatmul.bf16.gmra.mxu0 %v750
        %v945 = vpop.f32.mrf.mxu0
        %v946 = vadd.f32 %v873, %v945
        %v947 = vpop.f32.mrf.mxu0
        %v948 = vadd.f32 %v875, %v947
        %949 = vmatmul.bf16.gmra.mxu0 %v753
        %v950 = vpop.f32.mrf.mxu0
        %v951 = vadd.f32 %v878, %v950
        %v952 = vpop.f32.mrf.mxu0
        %v953 = vadd.f32 %v880, %v952
        %954 = vmatmul.bf16.gmra.mxu0 %v756
        %v955 = vpop.f32.mrf.mxu0
        %v956 = vadd.f32 %v883, %v955
        %v957 = vpop.f32.mrf.mxu0
        %v958 = vadd.f32 %v885, %v957
        %959 = vmatmul.bf16.gmra.mxu0 %v759
        %v960 = vpop.f32.mrf.mxu0
        %v961 = vadd.f32 %v888, %v960
        %v962 = vpop.f32.mrf.mxu0
        %v963 = vadd.f32 %v890, %v962
        %964 = vmatmul.bf16.gmra.mxu0 %v762
        %v965 = vpop.f32.mrf.mxu0
        %v966 = vadd.f32 %v893, %v965
        %v967 = vpop.f32.mrf.mxu0
        %v968 = vadd.f32 %v895, %v967
        %969 = vmatmul.bf16.gmra.mxu0 %v765
        %v970 = vpop.f32.mrf.mxu0
        %v971 = vadd.f32 %v898, %v970
        %v972 = vpop.f32.mrf.mxu0
        %v973 = vadd.f32 %v900, %v972
        %974 = vmatmul.bf16.gmra.mxu0 %v768
        %v975 = vpop.f32.mrf.mxu0
        %v976 = vadd.f32 %v903, %v975
        %v977 = vpop.f32.mrf.mxu0
        %v978 = vadd.f32 %v905, %v977
        %979 = vmatmul.bf16.gmra.mxu0 %v771
        %v980 = vpop.f32.mrf.mxu0
        %v981 = vadd.f32 %v908, %v980
        %v982 = vpop.f32.mrf.mxu0
        %v983 = vadd.f32 %v910, %v982
        %984 = vmatmul.bf16.gmra.mxu0 %v774
        %v985 = vpop.f32.mrf.mxu0
        %v986 = vadd.f32 %v913, %v985
        %v987 = vpop.f32.mrf.mxu0
        %v988 = vadd.f32 %v915, %v987
        %989 = vmatmul.bf16.gmra.mxu0 %v777
        %v990 = vpop.f32.mrf.mxu0
        %v991 = vadd.f32 %v918, %v990
        %v992 = vpop.f32.mrf.mxu0
        %v993 = vadd.f32 %v920, %v992
        %994 = vmatmul.bf16.gmra.mxu0 %v780
        %v995 = vpop.f32.mrf.mxu0
        %v996 = vadd.f32 %v923, %v995
        %v997 = vpop.f32.mrf.mxu0
        %v998 = vadd.f32 %v925, %v997
        %999 = vmatmul.bf16.gmra.mxu0 %v783
        %v1000 = vpop.f32.mrf.mxu0
        %v1001 = vadd.f32 %v928, %v1000
        %v1002 = vpop.f32.mrf.mxu0
        %1003 = vdwg.mxu0
        %1004 = vmatpush.bf16.msra.mxu0 %v680
        %1005 = vmatpush.bf16.msra.mxu0 %v678
        %1006 = vmatpush.bf16.msra.mxu0 %v676
        %1007 = vmatpush.bf16.msra.mxu0 %v674
        %1008 = vmatpush.bf16.msra.mxu0 %v672
        %1009 = vmatpush.bf16.msra.mxu0 %v670
        %1010 = vmatpush.bf16.msra.mxu0 %v668
        %1011 = vmatpush.bf16.msra.mxu0 %v666
        %1012 = vmatmul.bf16.gmra.mxu0 %v460
        %v1013 = vpop.f32.mrf.mxu0
        %v1014 = vadd.f32 %v542, %v1013
        %v1015 = vpop.f32.mrf.mxu0
        %v1016 = vadd.f32 %v542, %v1015
        %1017 = vmatmul.bf16.gmra.mxu0 %v463
        %v1018 = vpop.f32.mrf.mxu0
        %v1019 = vadd.f32 %v542, %v1018
        %v1020 = vpop.f32.mrf.mxu0
        %v1021 = vadd.f32 %v542, %v1020
        %1022 = vmatmul.bf16.gmra.mxu0 %v466
        %v1023 = vpop.f32.mrf.mxu0
        %v1024 = vadd.f32 %v542, %v1023
        %v1025 = vpop.f32.mrf.mxu0
        %v1026 = vadd.f32 %v542, %v1025
        %1027 = vmatmul.bf16.gmra.mxu0 %v469
        %v1028 = vpop.f32.mrf.mxu0
        %v1029 = vadd.f32 %v542, %v1028
        %v1030 = vpop.f32.mrf.mxu0
        %v1031 = vadd.f32 %v542, %v1030
        %1032 = vmatmul.bf16.gmra.mxu0 %v472
        %v1033 = vpop.f32.mrf.mxu0
        %v1034 = vadd.f32 %v542, %v1033
        %v1035 = vpop.f32.mrf.mxu0
        %v1036 = vadd.f32 %v542, %v1035
        %1037 = vmatmul.bf16.gmra.mxu0 %v475
        %v1038 = vpop.f32.mrf.mxu0
        %v1039 = vadd.f32 %v542, %v1038
        %v1040 = vpop.f32.mrf.mxu0
        %v1041 = vadd.f32 %v542, %v1040
        %1042 = vmatmul.bf16.gmra.mxu0 %v478
        %v1043 = vpop.f32.mrf.mxu0
        %v1044 = vadd.f32 %v542, %v1043
        %v1045 = vpop.f32.mrf.mxu0
        %v1046 = vadd.f32 %v542, %v1045
        %1047 = vmatmul.bf16.gmra.mxu0 %v481
        %v1048 = vpop.f32.mrf.mxu0
        %v1049 = vadd.f32 %v542, %v1048
        %v1050 = vpop.f32.mrf.mxu0
        %v1051 = vadd.f32 %v542, %v1050
        %1052 = vmatmul.bf16.gmra.mxu0 %v484
        %v1053 = vpop.f32.mrf.mxu0
        %v1054 = vadd.f32 %v542, %v1053
        %v1055 = vpop.f32.mrf.mxu0
        %v1056 = vadd.f32 %v542, %v1055
        %1057 = vmatmul.bf16.gmra.mxu0 %v487
        %v1058 = vpop.f32.mrf.mxu0
        %v1059 = vadd.f32 %v542, %v1058
        %v1060 = vpop.f32.mrf.mxu0
        %v1061 = vadd.f32 %v542, %v1060
        %1062 = vmatmul.bf16.gmra.mxu0 %v490
        %v1063 = vpop.f32.mrf.mxu0
        %v1064 = vadd.f32 %v542, %v1063
        %v1065 = vpop.f32.mrf.mxu0
        %v1066 = vadd.f32 %v542, %v1065
        %1067 = vmatmul.bf16.gmra.mxu0 %v493
        %v1068 = vpop.f32.mrf.mxu0
        %v1069 = vadd.f32 %v542, %v1068
        %v1070 = vpop.f32.mrf.mxu0
        %v1071 = vadd.f32 %v542, %v1070
        %1072 = vmatmul.bf16.gmra.mxu0 %v496
        %v1073 = vpop.f32.mrf.mxu0
        %v1074 = vadd.f32 %v542, %v1073
        %v1075 = vpop.f32.mrf.mxu0
        %1076 = vdwg.mxu0
        %1077 = vmatpush.bf16.msra.mxu0 %v696
        %1078 = vmatpush.bf16.msra.mxu0 %v694
        %1079 = vmatpush.bf16.msra.mxu0 %v692
        %1080 = vmatpush.bf16.msra.mxu0 %v690
        %1081 = vmatpush.bf16.msra.mxu0 %v688
        %1082 = vmatpush.bf16.msra.mxu0 %v686
        %1083 = vmatpush.bf16.msra.mxu0 %v684
        %1084 = vmatpush.bf16.msra.mxu0 %v682
        %1085 = vmatmul.bf16.gmra.mxu0 %v461
        %v1086 = vpop.f32.mrf.mxu0
        %v1087 = vadd.f32 %v1014, %v1086
        %v1088 = vpop.f32.mrf.mxu0
        %v1089 = vadd.f32 %v1016, %v1088
        %1090 = vmatmul.bf16.gmra.mxu0 %v464
        %v1091 = vpop.f32.mrf.mxu0
        %v1092 = vadd.f32 %v1019, %v1091
        %v1093 = vpop.f32.mrf.mxu0
        %v1094 = vadd.f32 %v1021, %v1093
        %1095 = vmatmul.bf16.gmra.mxu0 %v467
        %v1096 = vpop.f32.mrf.mxu0
        %v1097 = vadd.f32 %v1024, %v1096
        %v1098 = vpop.f32.mrf.mxu0
        %v1099 = vadd.f32 %v1026, %v1098
        %1100 = vmatmul.bf16.gmra.mxu0 %v470
        %v1101 = vpop.f32.mrf.mxu0
        %v1102 = vadd.f32 %v1029, %v1101
        %v1103 = vpop.f32.mrf.mxu0
        %v1104 = vadd.f32 %v1031, %v1103
        %1105 = vmatmul.bf16.gmra.mxu0 %v473
        %v1106 = vpop.f32.mrf.mxu0
        %v1107 = vadd.f32 %v1034, %v1106
        %v1108 = vpop.f32.mrf.mxu0
        %v1109 = vadd.f32 %v1036, %v1108
        %1110 = vmatmul.bf16.gmra.mxu0 %v476
        %v1111 = vpop.f32.mrf.mxu0
        %v1112 = vadd.f32 %v1039, %v1111
        %v1113 = vpop.f32.mrf.mxu0
        %v1114 = vadd.f32 %v1041, %v1113
        %1115 = vmatmul.bf16.gmra.mxu0 %v479
        %v1116 = vpop.f32.mrf.mxu0
        %v1117 = vadd.f32 %v1044, %v1116
        %v1118 = vpop.f32.mrf.mxu0
        %v1119 = vadd.f32 %v1046, %v1118
        %1120 = vmatmul.bf16.gmra.mxu0 %v482
        %v1121 = vpop.f32.mrf.mxu0
        %v1122 = vadd.f32 %v1049, %v1121
        %v1123 = vpop.f32.mrf.mxu0
        %v1124 = vadd.f32 %v1051, %v1123
        %1125 = vmatmul.bf16.gmra.mxu0 %v485
        %v1126 = vpop.f32.mrf.mxu0
        %v1127 = vadd.f32 %v1054, %v1126
        %v1128 = vpop.f32.mrf.mxu0
        %v1129 = vadd.f32 %v1056, %v1128
        %1130 = vmatmul.bf16.gmra.mxu0 %v488
        %v1131 = vpop.f32.mrf.mxu0
        %v1132 = vadd.f32 %v1059, %v1131
        %v1133 = vpop.f32.mrf.mxu0
        %v1134 = vadd.f32 %v1061, %v1133
        %1135 = vmatmul.bf16.gmra.mxu0 %v491
        %v1136 = vpop.f32.mrf.mxu0
        %v1137 = vadd.f32 %v1064, %v1136
        %v1138 = vpop.f32.mrf.mxu0
        %v1139 = vadd.f32 %v1066, %v1138
        %1140 = vmatmul.bf16.gmra.mxu0 %v494
        %v1141 = vpop.f32.mrf.mxu0
        %v1142 = vadd.f32 %v1069, %v1141
        %v1143 = vpop.f32.mrf.mxu0
        %v1144 = vadd.f32 %v1071, %v1143
        %1145 = vmatmul.bf16.gmra.mxu0 %v497
        %v1146 = vpop.f32.mrf.mxu0
        %v1147 = vadd.f32 %v1074, %v1146
        %v1148 = vpop.f32.mrf.mxu0
        %1149 = vdwg.mxu0
        %1150 = vmatpush.bf16.msra.mxu0 0
        %1151 = vmatpush.bf16.msra.mxu0 0
        %1152 = vmatpush.bf16.msra.mxu0 0
        %1153 = vmatpush.bf16.msra.mxu0 0
        %1154 = vmatpush.bf16.msra.mxu0 %v704
        %1155 = vmatpush.bf16.msra.mxu0 %v702
        %1156 = vmatpush.bf16.msra.mxu0 %v700
        %1157 = vmatpush.bf16.msra.mxu0 %v698
        %1158 = vmatmul.bf16.gmra.mxu0 %v747
        %v1159 = vpop.f32.mrf.mxu0
        %v1160 = vadd.f32 %v1087, %v1159
        %v1161 = vpop.f32.mrf.mxu0
        %v1162 = vadd.f32 %v1089, %v1161
        %1163 = vmatmul.bf16.gmra.mxu0 %v750
        %v1164 = vpop.f32.mrf.mxu0
        %v1165 = vadd.f32 %v1092, %v1164
        %v1166 = vpop.f32.mrf.mxu0
        %v1167 = vadd.f32 %v1094, %v1166
        %1168 = vmatmul.bf16.gmra.mxu0 %v753
        %v1169 = vpop.f32.mrf.mxu0
        %v1170 = vadd.f32 %v1097, %v1169
        %v1171 = vpop.f32.mrf.mxu0
        %v1172 = vadd.f32 %v1099, %v1171
        %1173 = vmatmul.bf16.gmra.mxu0 %v756
        %v1174 = vpop.f32.mrf.mxu0
        %v1175 = vadd.f32 %v1102, %v1174
        %v1176 = vpop.f32.mrf.mxu0
        %v1177 = vadd.f32 %v1104, %v1176
        %1178 = vmatmul.bf16.gmra.mxu0 %v759
        %v1179 = vpop.f32.mrf.mxu0
        %v1180 = vadd.f32 %v1107, %v1179
        %v1181 = vpop.f32.mrf.mxu0
        %v1182 = vadd.f32 %v1109, %v1181
        %1183 = vmatmul.bf16.gmra.mxu0 %v762
        %v1184 = vpop.f32.mrf.mxu0
        %v1185 = vadd.f32 %v1112, %v1184
        %v1186 = vpop.f32.mrf.mxu0
        %v1187 = vadd.f32 %v1114, %v1186
        %1188 = vmatmul.bf16.gmra.mxu0 %v765
        %v1189 = vpop.f32.mrf.mxu0
        %v1190 = vadd.f32 %v1117, %v1189
        %v1191 = vpop.f32.mrf.mxu0
        %v1192 = vadd.f32 %v1119, %v1191
        %1193 = vmatmul.bf16.gmra.mxu0 %v768
        %v1194 = vpop.f32.mrf.mxu0
        %v1195 = vadd.f32 %v1122, %v1194
        %v1196 = vpop.f32.mrf.mxu0
        %v1197 = vadd.f32 %v1124, %v1196
        %1198 = vmatmul.bf16.gmra.mxu0 %v771
        %v1199 = vpop.f32.mrf.mxu0
        %v1200 = vadd.f32 %v1127, %v1199
        %v1201 = vpop.f32.mrf.mxu0
        %v1202 = vadd.f32 %v1129, %v1201
        %1203 = vmatmul.bf16.gmra.mxu0 %v774
        %v1204 = vpop.f32.mrf.mxu0
        %v1205 = vadd.f32 %v1132, %v1204
        %v1206 = vpop.f32.mrf.mxu0
        %v1207 = vadd.f32 %v1134, %v1206
        %1208 = vmatmul.bf16.gmra.mxu0 %v777
        %v1209 = vpop.f32.mrf.mxu0
        %v1210 = vadd.f32 %v1137, %v1209
        %v1211 = vpop.f32.mrf.mxu0
        %v1212 = vadd.f32 %v1139, %v1211
        %1213 = vmatmul.bf16.gmra.mxu0 %v780
        %v1214 = vpop.f32.mrf.mxu0
        %v1215 = vadd.f32 %v1142, %v1214
        %v1216 = vpop.f32.mrf.mxu0
        %v1217 = vadd.f32 %v1144, %v1216
        %1218 = vmatmul.bf16.gmra.mxu0 %v783
        %v1219 = vpop.f32.mrf.mxu0
        %v1220 = vadd.f32 %v1147, %v1219
        %v1221 = vpop.f32.mrf.mxu0
        %1222 = vdwg.mxu0
        %v1223 = vmax.f32 %v941, 0.0
        %v1224 = vmax.f32 %v1160, 0.0
        %v1225 = vmax.f32 %v943, 0.0
        %v1226 = vmax.f32 %v1162, 0.0
        %v1227 = vmax.f32 %v946, 0.0
        %v1228 = vmax.f32 %v1165, 0.0
        %v1229 = vmax.f32 %v948, 0.0
        %v1230 = vmax.f32 %v1167, 0.0
        %v1231 = vmax.f32 %v951, 0.0
        %v1232 = vmax.f32 %v1170, 0.0
        %v1233 = vmax.f32 %v953, 0.0
        %v1234 = vmax.f32 %v1172, 0.0
        %v1235 = vmax.f32 %v956, 0.0
        %v1236 = vmax.f32 %v1175, 0.0
        %v1237 = vmax.f32 %v958, 0.0
        %v1238 = vmax.f32 %v1177, 0.0
        %v1239 = vmax.f32 %v961, 0.0
        %v1240 = vmax.f32 %v1180, 0.0
        %v1241 = vmax.f32 %v963, 0.0
        %v1242 = vmax.f32 %v1182, 0.0
        %v1243 = vmax.f32 %v966, 0.0
        %v1244 = vmax.f32 %v1185, 0.0
        %v1245 = vmax.f32 %v968, 0.0
        %v1246 = vmax.f32 %v1187, 0.0
        %v1247 = vmax.f32 %v971, 0.0
        %v1248 = vmax.f32 %v1190, 0.0
        %v1249 = vmax.f32 %v973, 0.0
        %v1250 = vmax.f32 %v1192, 0.0
        %v1251 = vmax.f32 %v976, 0.0
        %v1252 = vmax.f32 %v1195, 0.0
        %v1253 = vmax.f32 %v978, 0.0
        %v1254 = vmax.f32 %v1197, 0.0
        %v1255 = vmax.f32 %v981, 0.0
        %v1256 = vmax.f32 %v1200, 0.0
        %v1257 = vmax.f32 %v983, 0.0
        %v1258 = vmax.f32 %v1202, 0.0
        %v1259 = vmax.f32 %v986, 0.0
        %v1260 = vmax.f32 %v1205, 0.0
        %v1261 = vmax.f32 %v988, 0.0
        %v1262 = vmax.f32 %v1207, 0.0
        %v1263 = vmax.f32 %v991, 0.0
        %v1264 = vmax.f32 %v1210, 0.0
        %v1265 = vmax.f32 %v993, 0.0
        %v1266 = vmax.f32 %v1212, 0.0
        %v1267 = vmax.f32 %v996, 0.0
        %v1268 = vmax.f32 %v1215, 0.0
        %v1269 = vmax.f32 %v998, 0.0
        %v1270 = vmax.f32 %v1217, 0.0
        %v1271 = vmax.f32 %v1001, 0.0
        %v1272 = vmax.f32 %v1220, 0.0
        %v1273 = vpack.c.bf16 %v1225, %v1223
        %v1274 = vpack.c.bf16 %v1226, %v1224
        %v1275 = vpack.c.bf16 %v1229, %v1227
        %v1276 = vpack.c.bf16 %v1230, %v1228
        %v1277 = vpack.c.bf16 %v1233, %v1231
        %v1278 = vpack.c.bf16 %v1234, %v1232
        %v1279 = vpack.c.bf16 %v1237, %v1235
        %v1280 = vpack.c.bf16 %v1238, %v1236
        %v1281 = vpack.c.bf16 %v1241, %v1239
        %v1282 = vpack.c.bf16 %v1242, %v1240
        %v1283 = vpack.c.bf16 %v1245, %v1243
        %v1284 = vpack.c.bf16 %v1246, %v1244
        %v1285 = vpack.c.bf16 %v1249, %v1247
        %v1286 = vpack.c.bf16 %v1250, %v1248
        %v1287 = vpack.c.bf16 %v1253, %v1251
        %v1288 = vpack.c.bf16 %v1254, %v1252
        %v1289 = vpack.c.bf16 %v1257, %v1255
        %v1290 = vpack.c.bf16 %v1258, %v1256
        %v1291 = vpack.c.bf16 %v1261, %v1259
        %v1292 = vpack.c.bf16 %v1262, %v1260
        %v1293 = vpack.c.bf16 %v1265, %v1263
        %v1294 = vpack.c.bf16 %v1266, %v1264
        %v1295 = vpack.c.bf16 %v1269, %v1267
        %v1296 = vpack.c.bf16 %v1270, %v1268
        %v1297 = vpack.c.bf16 %v1271, %v1271
        %v1298 = vpack.c.bf16 %v1272, %v1272
        %v1299 = vld [vmem:[%s3] sm:$0xf]
        %v1300 = vld [vmem:[%s3 + $0x4] sm:$0xf]
        %v1301 = vld [vmem:[%s3 + $0x8] sm:$0xf]
        %v1302 = vld [vmem:[%s3 + $0xc] sm:$0xf]
        %v1303 = vld [vmem:[%s3 + $0x10] sm:$0xf]
        %v1304 = vld [vmem:[%s3 + $0x14] sm:$0xf]
        %v1305 = vld [vmem:[%s3 + $0x18] sm:$0xf]
        %v1306 = vld [vmem:[%s3 + $0x1c] sm:$0xf]
        %v1307 = vld [vmem:[%s3 + $0x20] sm:$0xf]
        %v1308 = vld [vmem:[%s3 + $0x24] sm:$0xf]
        %v1309 = vld [vmem:[%s3 + $0x28] sm:$0xf]
        %v1310 = vld [vmem:[%s3 + $0x2c] sm:$0xf]
        %v1311 = vld [vmem:[%s3 + $0x30] sm:$0xf]
        %v1312 = vld [vmem:[%s3 + $0x34] sm:$0xf]
        %v1313 = vld [vmem:[%s3 + $0x38] sm:$0xf]
        %v1314 = vld [vmem:[%s3 + $0x3c] sm:$0xf]
        %v1315 = vld [vmem:[%s3 + $0x40] sm:$0xf]
        %v1316 = vld [vmem:[%s3 + $0x44] sm:$0xf]
        %v1317 = vld [vmem:[%s3 + $0x48] sm:$0xf]
        %v1318 = vld [vmem:[%s3 + $0x4c] sm:$0xf]
        %v1319 = vld [vmem:[%s4] sm:$0x1]
        %v1321 = vperm.slane %v1319, 0
        %v1343 = vunpack.c.l.b16 %v1299
        %v1344 = vunpack.c.l.b16 %v1300
        %v1345 = vunpack.c.l.b16 %v1301
        %v1346 = vunpack.c.l.b16 %v1302
        %v1347 = vunpack.c.l.b16 %v1303
        %v1348 = vunpack.c.l.b16 %v1304
        %v1349 = vunpack.c.l.b16 %v1305
        %v1350 = vunpack.c.l.b16 %v1306
        %v1351 = vunpack.c.l.b16 %v1307
        %v1352 = vunpack.c.l.b16 %v1308
        %v1353 = vunpack.c.l.b16 %v1309
        %v1354 = vunpack.c.l.b16 %v1310
        %v1355 = vunpack.c.l.b16 %v1311
        %v1356 = vunpack.c.l.b16 %v1312
        %v1357 = vunpack.c.l.b16 %v1313
        %v1358 = vunpack.c.l.b16 %v1314
        %v1359 = vunpack.c.l.b16 %v1315
        %v1360 = vunpack.c.l.b16 %v1316
        %v1361 = vunpack.c.l.b16 %v1317
        %v1362 = vunpack.c.l.b16 %v1318
        %v1363 = vpack.c.b16 %v1344, %v1343
        %v1364 = vpack.c.b16 %v1346, %v1345
        %v1365 = vpack.c.b16 %v1348, %v1347
        %v1366 = vpack.c.b16 %v1350, %v1349
        %v1367 = vpack.c.b16 %v1352, %v1351
        %v1368 = vpack.c.b16 %v1354, %v1353
        %v1369 = vpack.c.b16 %v1356, %v1355
        %v1370 = vpack.c.b16 %v1358, %v1357
        %v1371 = vpack.c.b16 %v1360, %v1359
        %v1372 = vpack.c.b16 %v1362, %v1361
        %vm1383 = vcmask 261120
        %v1385 = vsel %vm1383, %v1274, 0
        %v1388 = vsel %vm1383, %v1276, 0
        %v1391 = vsel %vm1383, %v1278, 0
        %v1394 = vsel %vm1383, %v1280, 0
        %v1397 = vsel %vm1383, %v1282, 0
        %v1400 = vsel %vm1383, %v1284, 0
        %v1403 = vsel %vm1383, %v1286, 0
        %v1406 = vsel %vm1383, %v1288, 0
        %v1409 = vsel %vm1383, %v1290, 0
        %v1412 = vsel %vm1383, %v1292, 0
        %v1415 = vsel %vm1383, %v1294, 0
        %v1418 = vsel %vm1383, %v1296, 0
        %v1421 = vsel %vm1383, %v1298, 0
        %1423 = vmatpush.bf16.msra.mxu0 %v1370
        %1424 = vmatpush.bf16.msra.mxu0 %v1369
        %1425 = vmatpush.bf16.msra.mxu0 %v1368
        %1426 = vmatpush.bf16.msra.mxu0 %v1367
        %1427 = vmatpush.bf16.msra.mxu0 %v1366
        %1428 = vmatpush.bf16.msra.mxu0 %v1365
        %1429 = vmatpush.bf16.msra.mxu0 %v1364
        %1430 = vmatpush.bf16.msra.mxu0 %v1363
        %1431 = vmatmul.bf16.gmra.mxu0 %v1273
        %v1432 = vpop.f32.mrf.mxu0
        %v1433 = vadd.f32 %v1321, %v1432
        %v1434 = vpop.f32.mrf.mxu0
        %v1435 = vadd.f32 %v1321, %v1434
        %1436 = vmatmul.bf16.gmra.mxu0 %v1275
        %v1437 = vpop.f32.mrf.mxu0
        %v1438 = vadd.f32 %v1321, %v1437
        %v1439 = vpop.f32.mrf.mxu0
        %v1440 = vadd.f32 %v1321, %v1439
        %1441 = vmatmul.bf16.gmra.mxu0 %v1277
        %v1442 = vpop.f32.mrf.mxu0
        %v1443 = vadd.f32 %v1321, %v1442
        %v1444 = vpop.f32.mrf.mxu0
        %v1445 = vadd.f32 %v1321, %v1444
        %1446 = vmatmul.bf16.gmra.mxu0 %v1279
        %v1447 = vpop.f32.mrf.mxu0
        %v1448 = vadd.f32 %v1321, %v1447
        %v1449 = vpop.f32.mrf.mxu0
        %v1450 = vadd.f32 %v1321, %v1449
        %1451 = vmatmul.bf16.gmra.mxu0 %v1281
        %v1452 = vpop.f32.mrf.mxu0
        %v1453 = vadd.f32 %v1321, %v1452
        %v1454 = vpop.f32.mrf.mxu0
        %v1455 = vadd.f32 %v1321, %v1454
        %1456 = vmatmul.bf16.gmra.mxu0 %v1283
        %v1457 = vpop.f32.mrf.mxu0
        %v1458 = vadd.f32 %v1321, %v1457
        %v1459 = vpop.f32.mrf.mxu0
        %v1460 = vadd.f32 %v1321, %v1459
        %1461 = vmatmul.bf16.gmra.mxu0 %v1285
        %v1462 = vpop.f32.mrf.mxu0
        %v1463 = vadd.f32 %v1321, %v1462
        %v1464 = vpop.f32.mrf.mxu0
        %v1465 = vadd.f32 %v1321, %v1464
        %1466 = vmatmul.bf16.gmra.mxu0 %v1287
        %v1467 = vpop.f32.mrf.mxu0
        %v1468 = vadd.f32 %v1321, %v1467
        %v1469 = vpop.f32.mrf.mxu0
        %v1470 = vadd.f32 %v1321, %v1469
        %1471 = vmatmul.bf16.gmra.mxu0 %v1289
        %v1472 = vpop.f32.mrf.mxu0
        %v1473 = vadd.f32 %v1321, %v1472
        %v1474 = vpop.f32.mrf.mxu0
        %v1475 = vadd.f32 %v1321, %v1474
        %1476 = vmatmul.bf16.gmra.mxu0 %v1291
        %v1477 = vpop.f32.mrf.mxu0
        %v1478 = vadd.f32 %v1321, %v1477
        %v1479 = vpop.f32.mrf.mxu0
        %v1480 = vadd.f32 %v1321, %v1479
        %1481 = vmatmul.bf16.gmra.mxu0 %v1293
        %v1482 = vpop.f32.mrf.mxu0
        %v1483 = vadd.f32 %v1321, %v1482
        %v1484 = vpop.f32.mrf.mxu0
        %v1485 = vadd.f32 %v1321, %v1484
        %1486 = vmatmul.bf16.gmra.mxu0 %v1295
        %v1487 = vpop.f32.mrf.mxu0
        %v1488 = vadd.f32 %v1321, %v1487
        %v1489 = vpop.f32.mrf.mxu0
        %v1490 = vadd.f32 %v1321, %v1489
        %1491 = vmatmul.bf16.gmra.mxu0 %v1297
        %v1492 = vpop.f32.mrf.mxu0
        %v1493 = vadd.f32 %v1321, %v1492
        %v1494 = vpop.f32.mrf.mxu0
        %1495 = vdwg.mxu0
        %1496 = vmatpush.bf16.msra.mxu0 0
        %1497 = vmatpush.bf16.msra.mxu0 0
        %1498 = vmatpush.bf16.msra.mxu0 0
        %1499 = vmatpush.bf16.msra.mxu0 0
        %1500 = vmatpush.bf16.msra.mxu0 0
        %1501 = vmatpush.bf16.msra.mxu0 0
        %1502 = vmatpush.bf16.msra.mxu0 %v1372
        %1503 = vmatpush.bf16.msra.mxu0 %v1371
        %1504 = vmatmul.bf16.gmra.mxu0 %v1385
        %v1505 = vpop.f32.mrf.mxu0
        %v1506 = vadd.f32 %v1433, %v1505
        %v1507 = vpop.f32.mrf.mxu0
        %v1508 = vadd.f32 %v1435, %v1507
        %1509 = vmatmul.bf16.gmra.mxu0 %v1388
        %v1510 = vpop.f32.mrf.mxu0
        %v1511 = vadd.f32 %v1438, %v1510
        %v1512 = vpop.f32.mrf.mxu0
        %v1513 = vadd.f32 %v1440, %v1512
        %1514 = vmatmul.bf16.gmra.mxu0 %v1391
        %v1515 = vpop.f32.mrf.mxu0
        %v1516 = vadd.f32 %v1443, %v1515
        %v1517 = vpop.f32.mrf.mxu0
        %v1518 = vadd.f32 %v1445, %v1517
        %1519 = vmatmul.bf16.gmra.mxu0 %v1394
        %v1520 = vpop.f32.mrf.mxu0
        %v1521 = vadd.f32 %v1448, %v1520
        %v1522 = vpop.f32.mrf.mxu0
        %v1523 = vadd.f32 %v1450, %v1522
        %1524 = vmatmul.bf16.gmra.mxu0 %v1397
        %v1525 = vpop.f32.mrf.mxu0
        %v1526 = vadd.f32 %v1453, %v1525
        %v1527 = vpop.f32.mrf.mxu0
        %v1528 = vadd.f32 %v1455, %v1527
        %1529 = vmatmul.bf16.gmra.mxu0 %v1400
        %v1530 = vpop.f32.mrf.mxu0
        %v1531 = vadd.f32 %v1458, %v1530
        %v1532 = vpop.f32.mrf.mxu0
        %v1533 = vadd.f32 %v1460, %v1532
        %1534 = vmatmul.bf16.gmra.mxu0 %v1403
        %v1535 = vpop.f32.mrf.mxu0
        %v1536 = vadd.f32 %v1463, %v1535
        %v1537 = vpop.f32.mrf.mxu0
        %v1538 = vadd.f32 %v1465, %v1537
        %1539 = vmatmul.bf16.gmra.mxu0 %v1406
        %v1540 = vpop.f32.mrf.mxu0
        %v1541 = vadd.f32 %v1468, %v1540
        %v1542 = vpop.f32.mrf.mxu0
        %v1543 = vadd.f32 %v1470, %v1542
        %1544 = vmatmul.bf16.gmra.mxu0 %v1409
        %v1545 = vpop.f32.mrf.mxu0
        %v1546 = vadd.f32 %v1473, %v1545
        %v1547 = vpop.f32.mrf.mxu0
        %v1548 = vadd.f32 %v1475, %v1547
        %1549 = vmatmul.bf16.gmra.mxu0 %v1412
        %v1550 = vpop.f32.mrf.mxu0
        %v1551 = vadd.f32 %v1478, %v1550
        %v1552 = vpop.f32.mrf.mxu0
        %v1553 = vadd.f32 %v1480, %v1552
        %1554 = vmatmul.bf16.gmra.mxu0 %v1415
        %v1555 = vpop.f32.mrf.mxu0
        %v1556 = vadd.f32 %v1483, %v1555
        %v1557 = vpop.f32.mrf.mxu0
        %v1558 = vadd.f32 %v1485, %v1557
        %1559 = vmatmul.bf16.gmra.mxu0 %v1418
        %v1560 = vpop.f32.mrf.mxu0
        %v1561 = vadd.f32 %v1488, %v1560
        %v1562 = vpop.f32.mrf.mxu0
        %v1563 = vadd.f32 %v1490, %v1562
        %1564 = vmatmul.bf16.gmra.mxu0 %v1421
        %v1565 = vpop.f32.mrf.mxu0
        %v1566 = vadd.f32 %v1493, %v1565
        %v1567 = vpop.f32.mrf.mxu0
        %1568 = vdwg.mxu0
        %v1569 = vmax.f32 %v1506, 0.0
        %v1570 = vmax.f32 %v1508, 0.0
        %v1571 = vmax.f32 %v1511, 0.0
        %v1572 = vmax.f32 %v1513, 0.0
        %v1573 = vmax.f32 %v1516, 0.0
        %v1574 = vmax.f32 %v1518, 0.0
        %v1575 = vmax.f32 %v1521, 0.0
        %v1576 = vmax.f32 %v1523, 0.0
        %v1577 = vmax.f32 %v1526, 0.0
        %v1578 = vmax.f32 %v1528, 0.0
        %v1579 = vmax.f32 %v1531, 0.0
        %v1580 = vmax.f32 %v1533, 0.0
        %v1581 = vmax.f32 %v1536, 0.0
        %v1582 = vmax.f32 %v1538, 0.0
        %v1583 = vmax.f32 %v1541, 0.0
        %v1584 = vmax.f32 %v1543, 0.0
        %v1585 = vmax.f32 %v1546, 0.0
        %v1586 = vmax.f32 %v1548, 0.0
        %v1587 = vmax.f32 %v1551, 0.0
        %v1588 = vmax.f32 %v1553, 0.0
        %v1589 = vmax.f32 %v1556, 0.0
        %v1590 = vmax.f32 %v1558, 0.0
        %v1591 = vmax.f32 %v1561, 0.0
        %v1592 = vmax.f32 %v1563, 0.0
        %v1593 = vmax.f32 %v1566, 0.0
        %v1594 = vld [vmem:[%s5] sm:$0xf]
        %v1595 = vld [vmem:[%s5 + $0x4] sm:$0xf]
        %v1596 = vld [vmem:[%s5 + $0x8] sm:$0xf]
        %v1597 = vld [vmem:[%s5 + $0xc] sm:$0xf]
        %v1598 = vld [vmem:[%s5 + $0x10] sm:$0xf]
        %v1599 = vld [vmem:[%s5 + $0x14] sm:$0xf]
        %v1600 = vld [vmem:[%s5 + $0x18] sm:$0xf]
        %v1601 = vld [vmem:[%s5 + $0x1c] sm:$0xf]
        %v1602 = vld [vmem:[%s5 + $0x20] sm:$0xf]
        %v1603 = vld [vmem:[%s5 + $0x24] sm:$0xf]
        %vm1604 = vcmask 654336
        %v1606 = vsel %vm1604, %v1569, 0
        %v1609 = vsel %vm1604, %v1570, 0
        %v1612 = vsel %vm1604, %v1571, 0
        %v1615 = vsel %vm1604, %v1572, 0
        %v1618 = vsel %vm1604, %v1573, 0
        %v1621 = vsel %vm1604, %v1574, 0
        %v1624 = vsel %vm1604, %v1575, 0
        %v1627 = vsel %vm1604, %v1576, 0
        %v1630 = vsel %vm1604, %v1577, 0
        %v1633 = vsel %vm1604, %v1578, 0
        %v1636 = vsel %vm1604, %v1579, 0
        %v1639 = vsel %vm1604, %v1580, 0
        %v1642 = vsel %vm1604, %v1581, 0
        %v1645 = vsel %vm1604, %v1582, 0
        %v1648 = vsel %vm1604, %v1583, 0
        %v1651 = vsel %vm1604, %v1584, 0
        %v1654 = vsel %vm1604, %v1585, 0
        %v1657 = vsel %vm1604, %v1586, 0
        %v1660 = vsel %vm1604, %v1587, 0
        %v1663 = vsel %vm1604, %v1588, 0
        %v1666 = vsel %vm1604, %v1589, 0
        %v1669 = vsel %vm1604, %v1590, 0
        %v1672 = vsel %vm1604, %v1591, 0
        %v1675 = vsel %vm1604, %v1592, 0
        %v1678 = vsel %vm1604, %v1593, 0
        %1680 = vmatpush.xpose.msra.mxu0 %v1651
        %1681 = vmatpush.xpose.msra.mxu0 %v1648
        %1682 = vmatpush.xpose.msra.mxu0 %v1645
        %1683 = vmatpush.xpose.msra.mxu0 %v1642
        %1684 = vmatpush.xpose.msra.mxu0 %v1639
        %1685 = vmatpush.xpose.msra.mxu0 %v1636
        %1686 = vmatpush.xpose.msra.mxu0 %v1633
        %1687 = vmatpush.xpose.msra.mxu0 %v1630
        %1688 = vmatpush.xpose.msra.mxu0 %v1627
        %1689 = vmatpush.xpose.msra.mxu0 %v1624
        %1690 = vmatpush.xpose.msra.mxu0 %v1621
        %1691 = vmatpush.xpose.msra.mxu0 %v1618
        %1692 = vmatpush.xpose.msra.mxu0 %v1615
        %1693 = vmatpush.xpose.msra.mxu0 %v1612
        %1694 = vmatpush.xpose.msra.mxu0 %v1609
        %1695 = vmatpush.xpose.msra.mxu0 %v1606
        %1696 = vmatmul.f32.gmra.mxu0 %v1606
        %v1697 = vpop.f32.mrf.mxu0
        %v1698 = vadd.f32 0.0, %v1697
        %1699 = vmatmul.f32.gmra.mxu0 %v1609
        %v1700 = vpop.f32.mrf.mxu0
        %v1701 = vadd.f32 0.0, %v1700
        %1702 = vmatmul.f32.gmra.mxu0 %v1612
        %v1703 = vpop.f32.mrf.mxu0
        %v1704 = vadd.f32 0.0, %v1703
        %1705 = vmatmul.f32.gmra.mxu0 %v1615
        %v1706 = vpop.f32.mrf.mxu0
        %v1707 = vadd.f32 0.0, %v1706
        %1708 = vmatmul.f32.gmra.mxu0 %v1618
        %v1709 = vpop.f32.mrf.mxu0
        %v1710 = vadd.f32 0.0, %v1709
        %1711 = vmatmul.f32.gmra.mxu0 %v1621
        %v1712 = vpop.f32.mrf.mxu0
        %v1713 = vadd.f32 0.0, %v1712
        %1714 = vmatmul.f32.gmra.mxu0 %v1624
        %v1715 = vpop.f32.mrf.mxu0
        %v1716 = vadd.f32 0.0, %v1715
        %1717 = vmatmul.f32.gmra.mxu0 %v1627
        %v1718 = vpop.f32.mrf.mxu0
        %v1719 = vadd.f32 0.0, %v1718
        %1720 = vmatmul.f32.gmra.mxu0 %v1630
        %v1721 = vpop.f32.mrf.mxu0
        %v1722 = vadd.f32 0.0, %v1721
        %1723 = vmatmul.f32.gmra.mxu0 %v1633
        %v1724 = vpop.f32.mrf.mxu0
        %v1725 = vadd.f32 0.0, %v1724
        %1726 = vmatmul.f32.gmra.mxu0 %v1636
        %v1727 = vpop.f32.mrf.mxu0
        %v1728 = vadd.f32 0.0, %v1727
        %1729 = vmatmul.f32.gmra.mxu0 %v1639
        %v1730 = vpop.f32.mrf.mxu0
        %v1731 = vadd.f32 0.0, %v1730
        %1732 = vmatmul.f32.gmra.mxu0 %v1642
        %v1733 = vpop.f32.mrf.mxu0
        %v1734 = vadd.f32 0.0, %v1733
        %1735 = vmatmul.f32.gmra.mxu0 %v1645
        %v1736 = vpop.f32.mrf.mxu0
        %v1737 = vadd.f32 0.0, %v1736
        %1738 = vmatmul.f32.gmra.mxu0 %v1648
        %v1739 = vpop.f32.mrf.mxu0
        %v1740 = vadd.f32 0.0, %v1739
        %1741 = vmatmul.f32.gmra.mxu0 %v1651
        %v1742 = vpop.f32.mrf.mxu0
        %v1743 = vadd.f32 0.0, %v1742
        %1744 = vmatmul.f32.gmra.mxu0 %v1654
        %v1745 = vpop.f32.mrf.mxu0
        %v1746 = vadd.f32 0.0, %v1745
        %1747 = vmatmul.f32.gmra.mxu0 %v1657
        %v1748 = vpop.f32.mrf.mxu0
        %v1749 = vadd.f32 0.0, %v1748
        %1750 = vmatmul.f32.gmra.mxu0 %v1660
        %v1751 = vpop.f32.mrf.mxu0
        %v1752 = vadd.f32 0.0, %v1751
        %1753 = vmatmul.f32.gmra.mxu0 %v1663
        %v1754 = vpop.f32.mrf.mxu0
        %v1755 = vadd.f32 0.0, %v1754
        %1756 = vmatmul.f32.gmra.mxu0 %v1666
        %v1757 = vpop.f32.mrf.mxu0
        %v1758 = vadd.f32 0.0, %v1757
        %1759 = vmatmul.f32.gmra.mxu0 %v1669
        %v1760 = vpop.f32.mrf.mxu0
        %v1761 = vadd.f32 0.0, %v1760
        %1762 = vmatmul.f32.gmra.mxu0 %v1672
        %v1763 = vpop.f32.mrf.mxu0
        %v1764 = vadd.f32 0.0, %v1763
        %1765 = vmatmul.f32.gmra.mxu0 %v1675
        %v1766 = vpop.f32.mrf.mxu0
        %v1767 = vadd.f32 0.0, %v1766
        %1768 = vmatmul.f32.gmra.mxu0 %v1678
        %v1769 = vpop.f32.mrf.mxu0
        %v1770 = vadd.f32 0.0, %v1769
        %1771 = vdwg.mxu0
        %1772 = vmatpush.xpose.msra.mxu0 0.0
        %1773 = vmatpush.xpose.msra.mxu0 0.0
        %1774 = vmatpush.xpose.msra.mxu0 0.0
        %1775 = vmatpush.xpose.msra.mxu0 0.0
        %1776 = vmatpush.xpose.msra.mxu0 0.0
        %1777 = vmatpush.xpose.msra.mxu0 0.0
        %1778 = vmatpush.xpose.msra.mxu0 0.0
        %1779 = vmatpush.xpose.msra.mxu0 %v1678
        %1780 = vmatpush.xpose.msra.mxu0 %v1675
        %1781 = vmatpush.xpose.msra.mxu0 %v1672
        %1782 = vmatpush.xpose.msra.mxu0 %v1669
        %1783 = vmatpush.xpose.msra.mxu0 %v1666
        %1784 = vmatpush.xpose.msra.mxu0 %v1663
        %1785 = vmatpush.xpose.msra.mxu0 %v1660
        %1786 = vmatpush.xpose.msra.mxu0 %v1657
        %1787 = vmatpush.xpose.msra.mxu0 %v1654
        %1788 = vmatmul.f32.gmra.mxu0 %v1606
        %v1789 = vpop.f32.mrf.mxu0
        %v1790 = vadd.f32 0.0, %v1789
        %1791 = vmatmul.f32.gmra.mxu0 %v1609
        %v1792 = vpop.f32.mrf.mxu0
        %v1793 = vadd.f32 0.0, %v1792
        %1794 = vmatmul.f32.gmra.mxu0 %v1612
        %v1795 = vpop.f32.mrf.mxu0
        %v1796 = vadd.f32 0.0, %v1795
        %1797 = vmatmul.f32.gmra.mxu0 %v1615
        %v1798 = vpop.f32.mrf.mxu0
        %v1799 = vadd.f32 0.0, %v1798
        %1800 = vmatmul.f32.gmra.mxu0 %v1618
        %v1801 = vpop.f32.mrf.mxu0
        %v1802 = vadd.f32 0.0, %v1801
        %1803 = vmatmul.f32.gmra.mxu0 %v1621
        %v1804 = vpop.f32.mrf.mxu0
        %v1805 = vadd.f32 0.0, %v1804
        %1806 = vmatmul.f32.gmra.mxu0 %v1624
        %v1807 = vpop.f32.mrf.mxu0
        %v1808 = vadd.f32 0.0, %v1807
        %1809 = vmatmul.f32.gmra.mxu0 %v1627
        %v1810 = vpop.f32.mrf.mxu0
        %v1811 = vadd.f32 0.0, %v1810
        %1812 = vmatmul.f32.gmra.mxu0 %v1630
        %v1813 = vpop.f32.mrf.mxu0
        %v1814 = vadd.f32 0.0, %v1813
        %1815 = vmatmul.f32.gmra.mxu0 %v1633
        %v1816 = vpop.f32.mrf.mxu0
        %v1817 = vadd.f32 0.0, %v1816
        %1818 = vmatmul.f32.gmra.mxu0 %v1636
        %v1819 = vpop.f32.mrf.mxu0
        %v1820 = vadd.f32 0.0, %v1819
        %1821 = vmatmul.f32.gmra.mxu0 %v1639
        %v1822 = vpop.f32.mrf.mxu0
        %v1823 = vadd.f32 0.0, %v1822
        %1824 = vmatmul.f32.gmra.mxu0 %v1642
        %v1825 = vpop.f32.mrf.mxu0
        %v1826 = vadd.f32 0.0, %v1825
        %1827 = vmatmul.f32.gmra.mxu0 %v1645
        %v1828 = vpop.f32.mrf.mxu0
        %v1829 = vadd.f32 0.0, %v1828
        %1830 = vmatmul.f32.gmra.mxu0 %v1648
        %v1831 = vpop.f32.mrf.mxu0
        %v1832 = vadd.f32 0.0, %v1831
        %1833 = vmatmul.f32.gmra.mxu0 %v1651
        %v1834 = vpop.f32.mrf.mxu0
        %v1835 = vadd.f32 0.0, %v1834
        %1836 = vmatmul.f32.gmra.mxu0 %v1654
        %v1837 = vpop.f32.mrf.mxu0
        %v1838 = vadd.f32 0.0, %v1837
        %1839 = vmatmul.f32.gmra.mxu0 %v1657
        %v1840 = vpop.f32.mrf.mxu0
        %v1841 = vadd.f32 0.0, %v1840
        %1842 = vmatmul.f32.gmra.mxu0 %v1660
        %v1843 = vpop.f32.mrf.mxu0
        %v1844 = vadd.f32 0.0, %v1843
        %1845 = vmatmul.f32.gmra.mxu0 %v1663
        %v1846 = vpop.f32.mrf.mxu0
        %v1847 = vadd.f32 0.0, %v1846
        %1848 = vmatmul.f32.gmra.mxu0 %v1666
        %v1849 = vpop.f32.mrf.mxu0
        %v1850 = vadd.f32 0.0, %v1849
        %1851 = vmatmul.f32.gmra.mxu0 %v1669
        %v1852 = vpop.f32.mrf.mxu0
        %v1853 = vadd.f32 0.0, %v1852
        %1854 = vmatmul.f32.gmra.mxu0 %v1672
        %v1855 = vpop.f32.mrf.mxu0
        %v1856 = vadd.f32 0.0, %v1855
        %1857 = vmatmul.f32.gmra.mxu0 %v1675
        %v1858 = vpop.f32.mrf.mxu0
        %v1859 = vadd.f32 0.0, %v1858
        %1860 = vmatmul.f32.gmra.mxu0 %v1678
        %v1861 = vpop.f32.mrf.mxu0
        %v1862 = vadd.f32 0.0, %v1861
        %1863 = vdwg.mxu0
        %v1864 = vmul.f32 %v1569, %v1569
        %v1865 = vmul.f32 %v1570, %v1570
        %v1866 = vmul.f32 %v1571, %v1571
        %v1867 = vmul.f32 %v1572, %v1572
        %v1868 = vmul.f32 %v1573, %v1573
        %v1869 = vmul.f32 %v1574, %v1574
        %v1870 = vmul.f32 %v1575, %v1575
        %v1871 = vmul.f32 %v1576, %v1576
        %v1872 = vmul.f32 %v1577, %v1577
        %v1873 = vmul.f32 %v1578, %v1578
        %v1874 = vmul.f32 %v1579, %v1579
        %v1875 = vmul.f32 %v1580, %v1580
        %v1876 = vmul.f32 %v1581, %v1581
        %v1877 = vmul.f32 %v1582, %v1582
        %v1878 = vmul.f32 %v1583, %v1583
        %v1879 = vmul.f32 %v1584, %v1584
        %v1880 = vmul.f32 %v1585, %v1585
        %v1881 = vmul.f32 %v1586, %v1586
        %v1882 = vmul.f32 %v1587, %v1587
        %v1883 = vmul.f32 %v1588, %v1588
        %v1884 = vmul.f32 %v1589, %v1589
        %v1885 = vmul.f32 %v1590, %v1590
        %v1886 = vmul.f32 %v1591, %v1591
        %v1887 = vmul.f32 %v1592, %v1592
        %v1888 = vmul.f32 %v1593, %v1593
        %v1890 = vsel %vm1604, 1.0, 0
        %v1893 = vsel %vm1604, %v1864, 0
        %v1896 = vsel %vm1604, %v1865, 0
        %v1899 = vsel %vm1604, %v1866, 0
        %v1902 = vsel %vm1604, %v1867, 0
        %v1905 = vsel %vm1604, %v1868, 0
        %v1908 = vsel %vm1604, %v1869, 0
        %v1911 = vsel %vm1604, %v1870, 0
        %v1914 = vsel %vm1604, %v1871, 0
        %v1917 = vsel %vm1604, %v1872, 0
        %v1920 = vsel %vm1604, %v1873, 0
        %v1923 = vsel %vm1604, %v1874, 0
        %v1926 = vsel %vm1604, %v1875, 0
        %v1929 = vsel %vm1604, %v1876, 0
        %v1932 = vsel %vm1604, %v1877, 0
        %v1935 = vsel %vm1604, %v1878, 0
        %v1938 = vsel %vm1604, %v1879, 0
        %v1941 = vsel %vm1604, %v1880, 0
        %v1944 = vsel %vm1604, %v1881, 0
        %v1947 = vsel %vm1604, %v1882, 0
        %v1950 = vsel %vm1604, %v1883, 0
        %v1953 = vsel %vm1604, %v1884, 0
        %v1956 = vsel %vm1604, %v1885, 0
        %v1959 = vsel %vm1604, %v1886, 0
        %v1962 = vsel %vm1604, %v1887, 0
        %v1965 = vsel %vm1604, %v1888, 0
        %1967 = vmatpush.xpose.msra.mxu0 %v1938
        %1968 = vmatpush.xpose.msra.mxu0 %v1935
        %1969 = vmatpush.xpose.msra.mxu0 %v1932
        %1970 = vmatpush.xpose.msra.mxu0 %v1929
        %1971 = vmatpush.xpose.msra.mxu0 %v1926
        %1972 = vmatpush.xpose.msra.mxu0 %v1923
        %1973 = vmatpush.xpose.msra.mxu0 %v1920
        %1974 = vmatpush.xpose.msra.mxu0 %v1917
        %1975 = vmatpush.xpose.msra.mxu0 %v1914
        %1976 = vmatpush.xpose.msra.mxu0 %v1911
        %1977 = vmatpush.xpose.msra.mxu0 %v1908
        %1978 = vmatpush.xpose.msra.mxu0 %v1905
        %1979 = vmatpush.xpose.msra.mxu0 %v1902
        %1980 = vmatpush.xpose.msra.mxu0 %v1899
        %1981 = vmatpush.xpose.msra.mxu0 %v1896
        %1982 = vmatpush.xpose.msra.mxu0 %v1893
        %1983 = vmatmul.f32.gmra.mxu0 %v1890
        %v1984 = vpop.f32.mrf.mxu0
        %v1985 = vadd.f32 0.0, %v1984
        %1986 = vdwg.mxu0
        %1987 = vmatpush.xpose.msra.mxu0 0.0
        %1988 = vmatpush.xpose.msra.mxu0 0.0
        %1989 = vmatpush.xpose.msra.mxu0 0.0
        %1990 = vmatpush.xpose.msra.mxu0 0.0
        %1991 = vmatpush.xpose.msra.mxu0 0.0
        %1992 = vmatpush.xpose.msra.mxu0 0.0
        %1993 = vmatpush.xpose.msra.mxu0 0.0
        %1994 = vmatpush.xpose.msra.mxu0 %v1965
        %1995 = vmatpush.xpose.msra.mxu0 %v1962
        %1996 = vmatpush.xpose.msra.mxu0 %v1959
        %1997 = vmatpush.xpose.msra.mxu0 %v1956
        %1998 = vmatpush.xpose.msra.mxu0 %v1953
        %1999 = vmatpush.xpose.msra.mxu0 %v1950
        %2000 = vmatpush.xpose.msra.mxu0 %v1947
        %2001 = vmatpush.xpose.msra.mxu0 %v1944
        %2002 = vmatpush.xpose.msra.mxu0 %v1941
        %2003 = vmatmul.f32.gmra.mxu0 %v1890
        %v2004 = vpop.f32.mrf.mxu0
        %v2005 = vadd.f32 0.0, %v2004
        %2006 = vdwg.mxu0
        %v2007 = vmul.f32 %v1698, 2.0
        %v2008 = vmul.f32 %v1790, 2.0
        %v2009 = vmul.f32 %v1701, 2.0
        %v2010 = vmul.f32 %v1793, 2.0
        %v2011 = vmul.f32 %v1704, 2.0
        %v2012 = vmul.f32 %v1796, 2.0
        %v2013 = vmul.f32 %v1707, 2.0
        %v2014 = vmul.f32 %v1799, 2.0
        %v2015 = vmul.f32 %v1710, 2.0
        %v2016 = vmul.f32 %v1802, 2.0
        %v2017 = vmul.f32 %v1713, 2.0
        %v2018 = vmul.f32 %v1805, 2.0
        %v2019 = vmul.f32 %v1716, 2.0
        %v2020 = vmul.f32 %v1808, 2.0
        %v2021 = vmul.f32 %v1719, 2.0
        %v2022 = vmul.f32 %v1811, 2.0
        %v2023 = vmul.f32 %v1722, 2.0
        %v2024 = vmul.f32 %v1814, 2.0
        %v2025 = vmul.f32 %v1725, 2.0
        %v2026 = vmul.f32 %v1817, 2.0
        %v2027 = vmul.f32 %v1728, 2.0
        %v2028 = vmul.f32 %v1820, 2.0
        %v2029 = vmul.f32 %v1731, 2.0
        %v2030 = vmul.f32 %v1823, 2.0
        %v2031 = vmul.f32 %v1734, 2.0
        %v2032 = vmul.f32 %v1826, 2.0
        %v2033 = vmul.f32 %v1737, 2.0
        %v2034 = vmul.f32 %v1829, 2.0
        %v2035 = vmul.f32 %v1740, 2.0
        %v2036 = vmul.f32 %v1832, 2.0
        %v2037 = vmul.f32 %v1743, 2.0
        %v2038 = vmul.f32 %v1835, 2.0
        %v2039 = vmul.f32 %v1746, 2.0
        %v2040 = vmul.f32 %v1838, 2.0
        %v2041 = vmul.f32 %v1749, 2.0
        %v2042 = vmul.f32 %v1841, 2.0
        %v2043 = vmul.f32 %v1752, 2.0
        %v2044 = vmul.f32 %v1844, 2.0
        %v2045 = vmul.f32 %v1755, 2.0
        %v2046 = vmul.f32 %v1847, 2.0
        %v2047 = vmul.f32 %v1758, 2.0
        %v2048 = vmul.f32 %v1850, 2.0
        %v2049 = vmul.f32 %v1761, 2.0
        %v2050 = vmul.f32 %v1853, 2.0
        %v2051 = vmul.f32 %v1764, 2.0
        %v2052 = vmul.f32 %v1856, 2.0
        %v2053 = vmul.f32 %v1767, 2.0
        %v2054 = vmul.f32 %v1859, 2.0
        %v2055 = vmul.f32 %v1770, 2.0
        %v2056 = vmul.f32 %v1862, 2.0
        %v2057 = vperm.slane %v1985, 0
        %v2058 = vperm.slane %v2005, 0
        %v2059 = vsub.f32 %v2007, %v2057
        %v2060 = vsub.f32 %v2008, %v2058
        %v2061 = vsub.f32 %v2009, %v2057
        %v2062 = vsub.f32 %v2010, %v2058
        %v2063 = vsub.f32 %v2011, %v2057
        %v2064 = vsub.f32 %v2012, %v2058
        %v2065 = vsub.f32 %v2013, %v2057
        %v2066 = vsub.f32 %v2014, %v2058
        %v2067 = vsub.f32 %v2015, %v2057
        %v2068 = vsub.f32 %v2016, %v2058
        %v2069 = vsub.f32 %v2017, %v2057
        %v2070 = vsub.f32 %v2018, %v2058
        %v2071 = vsub.f32 %v2019, %v2057
        %v2072 = vsub.f32 %v2020, %v2058
        %v2073 = vsub.f32 %v2021, %v2057
        %v2074 = vsub.f32 %v2022, %v2058
        %v2075 = vsub.f32 %v2023, %v2057
        %v2076 = vsub.f32 %v2024, %v2058
        %v2077 = vsub.f32 %v2025, %v2057
        %v2078 = vsub.f32 %v2026, %v2058
        %v2079 = vsub.f32 %v2027, %v2057
        %v2080 = vsub.f32 %v2028, %v2058
        %v2081 = vsub.f32 %v2029, %v2057
        %v2082 = vsub.f32 %v2030, %v2058
        %v2083 = vsub.f32 %v2031, %v2057
        %v2084 = vsub.f32 %v2032, %v2058
        %v2085 = vsub.f32 %v2033, %v2057
        %v2086 = vsub.f32 %v2034, %v2058
        %v2087 = vsub.f32 %v2035, %v2057
        %v2088 = vsub.f32 %v2036, %v2058
        %v2089 = vsub.f32 %v2037, %v2057
        %v2090 = vsub.f32 %v2038, %v2058
        %v2091 = vsub.f32 %v2039, %v2057
        %v2092 = vsub.f32 %v2040, %v2058
        %v2093 = vsub.f32 %v2041, %v2057
        %v2094 = vsub.f32 %v2042, %v2058
        %v2095 = vsub.f32 %v2043, %v2057
        %v2096 = vsub.f32 %v2044, %v2058
        %v2097 = vsub.f32 %v2045, %v2057
        %v2098 = vsub.f32 %v2046, %v2058
        %v2099 = vsub.f32 %v2047, %v2057
        %v2100 = vsub.f32 %v2048, %v2058
        %v2101 = vsub.f32 %v2049, %v2057
        %v2102 = vsub.f32 %v2050, %v2058
        %v2103 = vsub.f32 %v2051, %v2057
        %v2104 = vsub.f32 %v2052, %v2058
        %v2105 = vsub.f32 %v2053, %v2057
        %v2106 = vsub.f32 %v2054, %v2058
        %v2107 = vsub.f32 %v2055, %v2057
        %v2108 = vsub.f32 %v2056, %v2058
        %vm2109 = vcmask 588800
        %v2110 = vsel %vm2109, %v2060, -inf
        %v2111 = vmax.f32 %v2059, %v2110
        %2112 = vmax.xlane.f32.xlu0 %v2111
        %v2113 = vpop.xlane.xlu0 %2112
        %v2114 = vsel %vm2109, %v2062, -inf
        %v2115 = vmax.f32 %v2061, %v2114
        %2116 = vmax.xlane.f32.xlu0 %v2115
        %v2117 = vpop.xlane.xlu0 %2116
        %v2118 = vsel %vm2109, %v2064, -inf
        %v2119 = vmax.f32 %v2063, %v2118
        %2120 = vmax.xlane.f32.xlu0 %v2119
        %v2121 = vpop.xlane.xlu0 %2120
        %v2122 = vsel %vm2109, %v2066, -inf
        %v2123 = vmax.f32 %v2065, %v2122
        %2124 = vmax.xlane.f32.xlu0 %v2123
        %v2125 = vpop.xlane.xlu0 %2124
        %v2126 = vsel %vm2109, %v2068, -inf
        %v2127 = vmax.f32 %v2067, %v2126
        %2128 = vmax.xlane.f32.xlu0 %v2127
        %v2129 = vpop.xlane.xlu0 %2128
        %v2130 = vsel %vm2109, %v2070, -inf
        %v2131 = vmax.f32 %v2069, %v2130
        %2132 = vmax.xlane.f32.xlu0 %v2131
        %v2133 = vpop.xlane.xlu0 %2132
        %v2134 = vsel %vm2109, %v2072, -inf
        %v2135 = vmax.f32 %v2071, %v2134
        %2136 = vmax.xlane.f32.xlu0 %v2135
        %v2137 = vpop.xlane.xlu0 %2136
        %v2138 = vsel %vm2109, %v2074, -inf
        %v2139 = vmax.f32 %v2073, %v2138
        %2140 = vmax.xlane.f32.xlu0 %v2139
        %v2141 = vpop.xlane.xlu0 %2140
        %v2142 = vsel %vm2109, %v2076, -inf
        %v2143 = vmax.f32 %v2075, %v2142
        %2144 = vmax.xlane.f32.xlu0 %v2143
        %v2145 = vpop.xlane.xlu0 %2144
        %v2146 = vsel %vm2109, %v2078, -inf
        %v2147 = vmax.f32 %v2077, %v2146
        %2148 = vmax.xlane.f32.xlu0 %v2147
        %v2149 = vpop.xlane.xlu0 %2148
        %v2150 = vsel %vm2109, %v2080, -inf
        %v2151 = vmax.f32 %v2079, %v2150
        %2152 = vmax.xlane.f32.xlu0 %v2151
        %v2153 = vpop.xlane.xlu0 %2152
        %v2154 = vsel %vm2109, %v2082, -inf
        %v2155 = vmax.f32 %v2081, %v2154
        %2156 = vmax.xlane.f32.xlu0 %v2155
        %v2157 = vpop.xlane.xlu0 %2156
        %v2158 = vsel %vm2109, %v2084, -inf
        %v2159 = vmax.f32 %v2083, %v2158
        %2160 = vmax.xlane.f32.xlu0 %v2159
        %v2161 = vpop.xlane.xlu0 %2160
        %v2162 = vsel %vm2109, %v2086, -inf
        %v2163 = vmax.f32 %v2085, %v2162
        %2164 = vmax.xlane.f32.xlu0 %v2163
        %v2165 = vpop.xlane.xlu0 %2164
        %v2166 = vsel %vm2109, %v2088, -inf
        %v2167 = vmax.f32 %v2087, %v2166
        %2168 = vmax.xlane.f32.xlu0 %v2167
        %v2169 = vpop.xlane.xlu0 %2168
        %v2170 = vsel %vm2109, %v2090, -inf
        %v2171 = vmax.f32 %v2089, %v2170
        %2172 = vmax.xlane.f32.xlu0 %v2171
        %v2173 = vpop.xlane.xlu0 %2172
        %v2174 = vsel %vm2109, %v2092, -inf
        %v2175 = vmax.f32 %v2091, %v2174
        %2176 = vmax.xlane.f32.xlu0 %v2175
        %v2177 = vpop.xlane.xlu0 %2176
        %v2178 = vsel %vm2109, %v2094, -inf
        %v2179 = vmax.f32 %v2093, %v2178
        %2180 = vmax.xlane.f32.xlu0 %v2179
        %v2181 = vpop.xlane.xlu0 %2180
        %v2182 = vsel %vm2109, %v2096, -inf
        %v2183 = vmax.f32 %v2095, %v2182
        %2184 = vmax.xlane.f32.xlu0 %v2183
        %v2185 = vpop.xlane.xlu0 %2184
        %v2186 = vsel %vm2109, %v2098, -inf
        %v2187 = vmax.f32 %v2097, %v2186
        %2188 = vmax.xlane.f32.xlu0 %v2187
        %v2189 = vpop.xlane.xlu0 %2188
        %v2190 = vsel %vm2109, %v2100, -inf
        %v2191 = vmax.f32 %v2099, %v2190
        %2192 = vmax.xlane.f32.xlu0 %v2191
        %v2193 = vpop.xlane.xlu0 %2192
        %v2194 = vsel %vm2109, %v2102, -inf
        %v2195 = vmax.f32 %v2101, %v2194
        %2196 = vmax.xlane.f32.xlu0 %v2195
        %v2197 = vpop.xlane.xlu0 %2196
        %v2198 = vsel %vm2109, %v2104, -inf
        %v2199 = vmax.f32 %v2103, %v2198
        %2200 = vmax.xlane.f32.xlu0 %v2199
        %v2201 = vpop.xlane.xlu0 %2200
        %v2202 = vsel %vm2109, %v2106, -inf
        %v2203 = vmax.f32 %v2105, %v2202
        %2204 = vmax.xlane.f32.xlu0 %v2203
        %v2205 = vpop.xlane.xlu0 %2204
        %v2206 = vsel %vm2109, %v2108, -inf
        %v2207 = vmax.f32 %v2107, %v2206
        %2208 = vmax.xlane.f32.xlu0 %v2207
        %v2209 = vpop.xlane.xlu0 %2208
        %v2210 = vsub.f32 %v2059, %v2113
        %v2211 = vsub.f32 %v2060, %v2113
        %v2212 = vsub.f32 %v2061, %v2117
        %v2213 = vsub.f32 %v2062, %v2117
        %v2214 = vsub.f32 %v2063, %v2121
        %v2215 = vsub.f32 %v2064, %v2121
        %v2216 = vsub.f32 %v2065, %v2125
        %v2217 = vsub.f32 %v2066, %v2125
        %v2218 = vsub.f32 %v2067, %v2129
        %v2219 = vsub.f32 %v2068, %v2129
        %v2220 = vsub.f32 %v2069, %v2133
        %v2221 = vsub.f32 %v2070, %v2133
        %v2222 = vsub.f32 %v2071, %v2137
        %v2223 = vsub.f32 %v2072, %v2137
        %v2224 = vsub.f32 %v2073, %v2141
        %v2225 = vsub.f32 %v2074, %v2141
        %v2226 = vsub.f32 %v2075, %v2145
        %v2227 = vsub.f32 %v2076, %v2145
        %v2228 = vsub.f32 %v2077, %v2149
        %v2229 = vsub.f32 %v2078, %v2149
        %v2230 = vsub.f32 %v2079, %v2153
        %v2231 = vsub.f32 %v2080, %v2153
        %v2232 = vsub.f32 %v2081, %v2157
        %v2233 = vsub.f32 %v2082, %v2157
        %v2234 = vsub.f32 %v2083, %v2161
        %v2235 = vsub.f32 %v2084, %v2161
        %v2236 = vsub.f32 %v2085, %v2165
        %v2237 = vsub.f32 %v2086, %v2165
        %v2238 = vsub.f32 %v2087, %v2169
        %v2239 = vsub.f32 %v2088, %v2169
        %v2240 = vsub.f32 %v2089, %v2173
        %v2241 = vsub.f32 %v2090, %v2173
        %v2242 = vsub.f32 %v2091, %v2177
        %v2243 = vsub.f32 %v2092, %v2177
        %v2244 = vsub.f32 %v2093, %v2181
        %v2245 = vsub.f32 %v2094, %v2181
        %v2246 = vsub.f32 %v2095, %v2185
        %v2247 = vsub.f32 %v2096, %v2185
        %v2248 = vsub.f32 %v2097, %v2189
        %v2249 = vsub.f32 %v2098, %v2189
        %v2250 = vsub.f32 %v2099, %v2193
        %v2251 = vsub.f32 %v2100, %v2193
        %v2252 = vsub.f32 %v2101, %v2197
        %v2253 = vsub.f32 %v2102, %v2197
        %v2254 = vsub.f32 %v2103, %v2201
        %v2255 = vsub.f32 %v2104, %v2201
        %v2256 = vsub.f32 %v2105, %v2205
        %v2257 = vsub.f32 %v2106, %v2205
        %v2258 = vsub.f32 %v2107, %v2209
        %v2259 = vsub.f32 %v2108, %v2209
        %v2260 = vmul.f32 %v2210, 1.442695
        %v2261 = vpow.pop %v2260
        %v2262 = vmul.f32 %v2211, 1.442695
        %v2263 = vpow.pop %v2262
        %v2264 = vmul.f32 %v2212, 1.442695
        %v2265 = vpow.pop %v2264
        %v2266 = vmul.f32 %v2213, 1.442695
        %v2267 = vpow.pop %v2266
        %v2268 = vmul.f32 %v2214, 1.442695
        %v2269 = vpow.pop %v2268
        %v2270 = vmul.f32 %v2215, 1.442695
        %v2271 = vpow.pop %v2270
        %v2272 = vmul.f32 %v2216, 1.442695
        %v2273 = vpow.pop %v2272
        %v2274 = vmul.f32 %v2217, 1.442695
        %v2275 = vpow.pop %v2274
        %v2276 = vmul.f32 %v2218, 1.442695
        %v2277 = vpow.pop %v2276
        %v2278 = vmul.f32 %v2219, 1.442695
        %v2279 = vpow.pop %v2278
        %v2280 = vmul.f32 %v2220, 1.442695
        %v2281 = vpow.pop %v2280
        %v2282 = vmul.f32 %v2221, 1.442695
        %v2283 = vpow.pop %v2282
        %v2284 = vmul.f32 %v2222, 1.442695
        %v2285 = vpow.pop %v2284
        %v2286 = vmul.f32 %v2223, 1.442695
        %v2287 = vpow.pop %v2286
        %v2288 = vmul.f32 %v2224, 1.442695
        %v2289 = vpow.pop %v2288
        %v2290 = vmul.f32 %v2225, 1.442695
        %v2291 = vpow.pop %v2290
        %v2292 = vmul.f32 %v2226, 1.442695
        %v2293 = vpow.pop %v2292
        %v2294 = vmul.f32 %v2227, 1.442695
        %v2295 = vpow.pop %v2294
        %v2296 = vmul.f32 %v2228, 1.442695
        %v2297 = vpow.pop %v2296
        %v2298 = vmul.f32 %v2229, 1.442695
        %v2299 = vpow.pop %v2298
        %v2300 = vmul.f32 %v2230, 1.442695
        %v2301 = vpow.pop %v2300
        %v2302 = vmul.f32 %v2231, 1.442695
        %v2303 = vpow.pop %v2302
        %v2304 = vmul.f32 %v2232, 1.442695
        %v2305 = vpow.pop %v2304
        %v2306 = vmul.f32 %v2233, 1.442695
        %v2307 = vpow.pop %v2306
        %v2308 = vmul.f32 %v2234, 1.442695
        %v2309 = vpow.pop %v2308
        %v2310 = vmul.f32 %v2235, 1.442695
        %v2311 = vpow.pop %v2310
        %v2312 = vmul.f32 %v2236, 1.442695
        %v2313 = vpow.pop %v2312
        %v2314 = vmul.f32 %v2237, 1.442695
        %v2315 = vpow.pop %v2314
        %v2316 = vmul.f32 %v2238, 1.442695
        %v2317 = vpow.pop %v2316
        %v2318 = vmul.f32 %v2239, 1.442695
        %v2319 = vpow.pop %v2318
        %v2320 = vmul.f32 %v2240, 1.442695
        %v2321 = vpow.pop %v2320
        %v2322 = vmul.f32 %v2241, 1.442695
        %v2323 = vpow.pop %v2322
        %v2324 = vmul.f32 %v2242, 1.442695
        %v2325 = vpow.pop %v2324
        %v2326 = vmul.f32 %v2243, 1.442695
        %v2327 = vpow.pop %v2326
        %v2328 = vmul.f32 %v2244, 1.442695
        %v2329 = vpow.pop %v2328
        %v2330 = vmul.f32 %v2245, 1.442695
        %v2331 = vpow.pop %v2330
        %v2332 = vmul.f32 %v2246, 1.442695
        %v2333 = vpow.pop %v2332
        %v2334 = vmul.f32 %v2247, 1.442695
        %v2335 = vpow.pop %v2334
        %v2336 = vmul.f32 %v2248, 1.442695
        %v2337 = vpow.pop %v2336
        %v2338 = vmul.f32 %v2249, 1.442695
        %v2339 = vpow.pop %v2338
        %v2340 = vmul.f32 %v2250, 1.442695
        %v2341 = vpow.pop %v2340
        %v2342 = vmul.f32 %v2251, 1.442695
        %v2343 = vpow.pop %v2342
        %v2344 = vmul.f32 %v2252, 1.442695
        %v2345 = vpow.pop %v2344
        %v2346 = vmul.f32 %v2253, 1.442695
        %v2347 = vpow.pop %v2346
        %v2348 = vmul.f32 %v2254, 1.442695
        %v2349 = vpow.pop %v2348
        %v2350 = vmul.f32 %v2255, 1.442695
        %v2351 = vpow.pop %v2350
        %v2352 = vmul.f32 %v2256, 1.442695
        %v2353 = vpow.pop %v2352
        %v2354 = vmul.f32 %v2257, 1.442695
        %v2355 = vpow.pop %v2354
        %v2356 = vmul.f32 %v2258, 1.442695
        %v2357 = vpow.pop %v2356
        %v2358 = vmul.f32 %v2259, 1.442695
        %v2359 = vpow.pop %v2358
        %v2360 = vsel %vm2109, %v2263, 0.0
        %v2361 = vadd.f32 %v2261, %v2360
        %2362 = vadd.xlane.f32.xlu0 %v2361
        %v2363 = vpop.xlane.xlu0 %2362
        %v2364 = vsel %vm2109, %v2267, 0.0
        %v2365 = vadd.f32 %v2265, %v2364
        %2366 = vadd.xlane.f32.xlu0 %v2365
        %v2367 = vpop.xlane.xlu0 %2366
        %v2368 = vsel %vm2109, %v2271, 0.0
        %v2369 = vadd.f32 %v2269, %v2368
        %2370 = vadd.xlane.f32.xlu0 %v2369
        %v2371 = vpop.xlane.xlu0 %2370
        %v2372 = vsel %vm2109, %v2275, 0.0
        %v2373 = vadd.f32 %v2273, %v2372
        %2374 = vadd.xlane.f32.xlu0 %v2373
        %v2375 = vpop.xlane.xlu0 %2374
        %v2376 = vsel %vm2109, %v2279, 0.0
        %v2377 = vadd.f32 %v2277, %v2376
        %2378 = vadd.xlane.f32.xlu0 %v2377
        %v2379 = vpop.xlane.xlu0 %2378
        %v2380 = vsel %vm2109, %v2283, 0.0
        %v2381 = vadd.f32 %v2281, %v2380
        %2382 = vadd.xlane.f32.xlu0 %v2381
        %v2383 = vpop.xlane.xlu0 %2382
        %v2384 = vsel %vm2109, %v2287, 0.0
        %v2385 = vadd.f32 %v2285, %v2384
        %2386 = vadd.xlane.f32.xlu0 %v2385
        %v2387 = vpop.xlane.xlu0 %2386
        %v2388 = vsel %vm2109, %v2291, 0.0
        %v2389 = vadd.f32 %v2289, %v2388
        %2390 = vadd.xlane.f32.xlu0 %v2389
        %v2391 = vpop.xlane.xlu0 %2390
        %v2392 = vsel %vm2109, %v2295, 0.0
        %v2393 = vadd.f32 %v2293, %v2392
        %2394 = vadd.xlane.f32.xlu0 %v2393
        %v2395 = vpop.xlane.xlu0 %2394
        %v2396 = vsel %vm2109, %v2299, 0.0
        %v2397 = vadd.f32 %v2297, %v2396
        %2398 = vadd.xlane.f32.xlu0 %v2397
        %v2399 = vpop.xlane.xlu0 %2398
        %v2400 = vsel %vm2109, %v2303, 0.0
        %v2401 = vadd.f32 %v2301, %v2400
        %2402 = vadd.xlane.f32.xlu0 %v2401
        %v2403 = vpop.xlane.xlu0 %2402
        %v2404 = vsel %vm2109, %v2307, 0.0
        %v2405 = vadd.f32 %v2305, %v2404
        %2406 = vadd.xlane.f32.xlu0 %v2405
        %v2407 = vpop.xlane.xlu0 %2406
        %v2408 = vsel %vm2109, %v2311, 0.0
        %v2409 = vadd.f32 %v2309, %v2408
        %2410 = vadd.xlane.f32.xlu0 %v2409
        %v2411 = vpop.xlane.xlu0 %2410
        %v2412 = vsel %vm2109, %v2315, 0.0
        %v2413 = vadd.f32 %v2313, %v2412
        %2414 = vadd.xlane.f32.xlu0 %v2413
        %v2415 = vpop.xlane.xlu0 %2414
        %v2416 = vsel %vm2109, %v2319, 0.0
        %v2417 = vadd.f32 %v2317, %v2416
        %2418 = vadd.xlane.f32.xlu0 %v2417
        %v2419 = vpop.xlane.xlu0 %2418
        %v2420 = vsel %vm2109, %v2323, 0.0
        %v2421 = vadd.f32 %v2321, %v2420
        %2422 = vadd.xlane.f32.xlu0 %v2421
        %v2423 = vpop.xlane.xlu0 %2422
        %v2424 = vsel %vm2109, %v2327, 0.0
        %v2425 = vadd.f32 %v2325, %v2424
        %2426 = vadd.xlane.f32.xlu0 %v2425
        %v2427 = vpop.xlane.xlu0 %2426
        %v2428 = vsel %vm2109, %v2331, 0.0
        %v2429 = vadd.f32 %v2329, %v2428
        %2430 = vadd.xlane.f32.xlu0 %v2429
        %v2431 = vpop.xlane.xlu0 %2430
        %v2432 = vsel %vm2109, %v2335, 0.0
        %v2433 = vadd.f32 %v2333, %v2432
        %2434 = vadd.xlane.f32.xlu0 %v2433
        %v2435 = vpop.xlane.xlu0 %2434
        %v2436 = vsel %vm2109, %v2339, 0.0
        %v2437 = vadd.f32 %v2337, %v2436
        %2438 = vadd.xlane.f32.xlu0 %v2437
        %v2439 = vpop.xlane.xlu0 %2438
        %v2440 = vsel %vm2109, %v2343, 0.0
        %v2441 = vadd.f32 %v2341, %v2440
        %2442 = vadd.xlane.f32.xlu0 %v2441
        %v2443 = vpop.xlane.xlu0 %2442
        %v2444 = vsel %vm2109, %v2347, 0.0
        %v2445 = vadd.f32 %v2345, %v2444
        %2446 = vadd.xlane.f32.xlu0 %v2445
        %v2447 = vpop.xlane.xlu0 %2446
        %v2448 = vsel %vm2109, %v2351, 0.0
        %v2449 = vadd.f32 %v2349, %v2448
        %2450 = vadd.xlane.f32.xlu0 %v2449
        %v2451 = vpop.xlane.xlu0 %2450
        %v2452 = vsel %vm2109, %v2355, 0.0
        %v2453 = vadd.f32 %v2353, %v2452
        %2454 = vadd.xlane.f32.xlu0 %v2453
        %v2455 = vpop.xlane.xlu0 %2454
        %v2456 = vsel %vm2109, %v2359, 0.0
        %v2457 = vadd.f32 %v2357, %v2456
        %2458 = vadd.xlane.f32.xlu0 %v2457
        %v2459 = vpop.xlane.xlu0 %2458
        %v2460 = vrcp.pop %v2363
        %v2461 = vmul.f32 %v2363, %v2460
        %v2462 = vsub.f32 1.0, %v2461
        %v2463 = vmul.f32 %v2460, %v2462
        %v2464 = vadd.f32 %v2460, %v2463
        %vm2465 = vweird.f32 %v2363
        %vm2466 = vweird.f32 %v2460
        %vm2467 = vmor %vm2465, %vm2466
        %v2468 = vsel %vm2467, %v2460, %v2464
        %v2469 = vand.u32 2147483647, %v2363
        %vm2470 = vcmp.eq.f32.partialorder %v2469, 8.507059e+37
        %v2471 = vand.u32 %v2363, 2147483648
        %v2472 = vor.u32 1.1754944e-38, %v2471
        %v2473 = vsel %vm2470, %v2472, %v2468
        %v2474 = vmul.f32 %v2261, %v2473
        %v2475 = vmul.f32 %v2263, %v2473
        %v2476 = vrcp.pop %v2367
        %v2477 = vmul.f32 %v2367, %v2476
        %v2478 = vsub.f32 1.0, %v2477
        %v2479 = vmul.f32 %v2476, %v2478
        %v2480 = vadd.f32 %v2476, %v2479
        %vm2481 = vweird.f32 %v2367
        %vm2482 = vweird.f32 %v2476
        %vm2483 = vmor %vm2481, %vm2482
        %v2484 = vsel %vm2483, %v2476, %v2480
        %v2485 = vand.u32 2147483647, %v2367
        %vm2486 = vcmp.eq.f32.partialorder %v2485, 8.507059e+37
        %v2487 = vand.u32 %v2367, 2147483648
        %v2488 = vor.u32 1.1754944e-38, %v2487
        %v2489 = vsel %vm2486, %v2488, %v2484
        %v2490 = vmul.f32 %v2265, %v2489
        %v2491 = vmul.f32 %v2267, %v2489
        %v2492 = vrcp.pop %v2371
        %v2493 = vmul.f32 %v2371, %v2492
        %v2494 = vsub.f32 1.0, %v2493
        %v2495 = vmul.f32 %v2492, %v2494
        %v2496 = vadd.f32 %v2492, %v2495
        %vm2497 = vweird.f32 %v2371
        %vm2498 = vweird.f32 %v2492
        %vm2499 = vmor %vm2497, %vm2498
        %v2500 = vsel %vm2499, %v2492, %v2496
        %v2501 = vand.u32 2147483647, %v2371
        %vm2502 = vcmp.eq.f32.partialorder %v2501, 8.507059e+37
        %v2503 = vand.u32 %v2371, 2147483648
        %v2504 = vor.u32 1.1754944e-38, %v2503
        %v2505 = vsel %vm2502, %v2504, %v2500
        %v2506 = vmul.f32 %v2269, %v2505
        %v2507 = vmul.f32 %v2271, %v2505
        %v2508 = vrcp.pop %v2375
        %v2509 = vmul.f32 %v2375, %v2508
        %v2510 = vsub.f32 1.0, %v2509
        %v2511 = vmul.f32 %v2508, %v2510
        %v2512 = vadd.f32 %v2508, %v2511
        %vm2513 = vweird.f32 %v2375
        %vm2514 = vweird.f32 %v2508
        %vm2515 = vmor %vm2513, %vm2514
        %v2516 = vsel %vm2515, %v2508, %v2512
        %v2517 = vand.u32 2147483647, %v2375
        %vm2518 = vcmp.eq.f32.partialorder %v2517, 8.507059e+37
        %v2519 = vand.u32 %v2375, 2147483648
        %v2520 = vor.u32 1.1754944e-38, %v2519
        %v2521 = vsel %vm2518, %v2520, %v2516
        %v2522 = vmul.f32 %v2273, %v2521
        %v2523 = vmul.f32 %v2275, %v2521
        %v2524 = vrcp.pop %v2379
        %v2525 = vmul.f32 %v2379, %v2524
        %v2526 = vsub.f32 1.0, %v2525
        %v2527 = vmul.f32 %v2524, %v2526
        %v2528 = vadd.f32 %v2524, %v2527
        %vm2529 = vweird.f32 %v2379
        %vm2530 = vweird.f32 %v2524
        %vm2531 = vmor %vm2529, %vm2530
        %v2532 = vsel %vm2531, %v2524, %v2528
        %v2533 = vand.u32 2147483647, %v2379
        %vm2534 = vcmp.eq.f32.partialorder %v2533, 8.507059e+37
        %v2535 = vand.u32 %v2379, 2147483648
        %v2536 = vor.u32 1.1754944e-38, %v2535
        %v2537 = vsel %vm2534, %v2536, %v2532
        %v2538 = vmul.f32 %v2277, %v2537
        %v2539 = vmul.f32 %v2279, %v2537
        %v2540 = vrcp.pop %v2383
        %v2541 = vmul.f32 %v2383, %v2540
        %v2542 = vsub.f32 1.0, %v2541
        %v2543 = vmul.f32 %v2540, %v2542
        %v2544 = vadd.f32 %v2540, %v2543
        %vm2545 = vweird.f32 %v2383
        %vm2546 = vweird.f32 %v2540
        %vm2547 = vmor %vm2545, %vm2546
        %v2548 = vsel %vm2547, %v2540, %v2544
        %v2549 = vand.u32 2147483647, %v2383
        %vm2550 = vcmp.eq.f32.partialorder %v2549, 8.507059e+37
        %v2551 = vand.u32 %v2383, 2147483648
        %v2552 = vor.u32 1.1754944e-38, %v2551
        %v2553 = vsel %vm2550, %v2552, %v2548
        %v2554 = vmul.f32 %v2281, %v2553
        %v2555 = vmul.f32 %v2283, %v2553
        %v2556 = vrcp.pop %v2387
        %v2557 = vmul.f32 %v2387, %v2556
        %v2558 = vsub.f32 1.0, %v2557
        %v2559 = vmul.f32 %v2556, %v2558
        %v2560 = vadd.f32 %v2556, %v2559
        %vm2561 = vweird.f32 %v2387
        %vm2562 = vweird.f32 %v2556
        %vm2563 = vmor %vm2561, %vm2562
        %v2564 = vsel %vm2563, %v2556, %v2560
        %v2565 = vand.u32 2147483647, %v2387
        %vm2566 = vcmp.eq.f32.partialorder %v2565, 8.507059e+37
        %v2567 = vand.u32 %v2387, 2147483648
        %v2568 = vor.u32 1.1754944e-38, %v2567
        %v2569 = vsel %vm2566, %v2568, %v2564
        %v2570 = vmul.f32 %v2285, %v2569
        %v2571 = vmul.f32 %v2287, %v2569
        %v2572 = vrcp.pop %v2391
        %v2573 = vmul.f32 %v2391, %v2572
        %v2574 = vsub.f32 1.0, %v2573
        %v2575 = vmul.f32 %v2572, %v2574
        %v2576 = vadd.f32 %v2572, %v2575
        %vm2577 = vweird.f32 %v2391
        %vm2578 = vweird.f32 %v2572
        %vm2579 = vmor %vm2577, %vm2578
        %v2580 = vsel %vm2579, %v2572, %v2576
        %v2581 = vand.u32 2147483647, %v2391
        %vm2582 = vcmp.eq.f32.partialorder %v2581, 8.507059e+37
        %v2583 = vand.u32 %v2391, 2147483648
        %v2584 = vor.u32 1.1754944e-38, %v2583
        %v2585 = vsel %vm2582, %v2584, %v2580
        %v2586 = vmul.f32 %v2289, %v2585
        %v2587 = vmul.f32 %v2291, %v2585
        %v2588 = vrcp.pop %v2395
        %v2589 = vmul.f32 %v2395, %v2588
        %v2590 = vsub.f32 1.0, %v2589
        %v2591 = vmul.f32 %v2588, %v2590
        %v2592 = vadd.f32 %v2588, %v2591
        %vm2593 = vweird.f32 %v2395
        %vm2594 = vweird.f32 %v2588
        %vm2595 = vmor %vm2593, %vm2594
        %v2596 = vsel %vm2595, %v2588, %v2592
        %v2597 = vand.u32 2147483647, %v2395
        %vm2598 = vcmp.eq.f32.partialorder %v2597, 8.507059e+37
        %v2599 = vand.u32 %v2395, 2147483648
        %v2600 = vor.u32 1.1754944e-38, %v2599
        %v2601 = vsel %vm2598, %v2600, %v2596
        %v2602 = vmul.f32 %v2293, %v2601
        %v2603 = vmul.f32 %v2295, %v2601
        %v2604 = vrcp.pop %v2399
        %v2605 = vmul.f32 %v2399, %v2604
        %v2606 = vsub.f32 1.0, %v2605
        %v2607 = vmul.f32 %v2604, %v2606
        %v2608 = vadd.f32 %v2604, %v2607
        %vm2609 = vweird.f32 %v2399
        %vm2610 = vweird.f32 %v2604
        %vm2611 = vmor %vm2609, %vm2610
        %v2612 = vsel %vm2611, %v2604, %v2608
        %v2613 = vand.u32 2147483647, %v2399
        %vm2614 = vcmp.eq.f32.partialorder %v2613, 8.507059e+37
        %v2615 = vand.u32 %v2399, 2147483648
        %v2616 = vor.u32 1.1754944e-38, %v2615
        %v2617 = vsel %vm2614, %v2616, %v2612
        %v2618 = vmul.f32 %v2297, %v2617
        %v2619 = vmul.f32 %v2299, %v2617
        %v2620 = vrcp.pop %v2403
        %v2621 = vmul.f32 %v2403, %v2620
        %v2622 = vsub.f32 1.0, %v2621
        %v2623 = vmul.f32 %v2620, %v2622
        %v2624 = vadd.f32 %v2620, %v2623
        %vm2625 = vweird.f32 %v2403
        %vm2626 = vweird.f32 %v2620
        %vm2627 = vmor %vm2625, %vm2626
        %v2628 = vsel %vm2627, %v2620, %v2624
        %v2629 = vand.u32 2147483647, %v2403
        %vm2630 = vcmp.eq.f32.partialorder %v2629, 8.507059e+37
        %v2631 = vand.u32 %v2403, 2147483648
        %v2632 = vor.u32 1.1754944e-38, %v2631
        %v2633 = vsel %vm2630, %v2632, %v2628
        %v2634 = vmul.f32 %v2301, %v2633
        %v2635 = vmul.f32 %v2303, %v2633
        %v2636 = vrcp.pop %v2407
        %v2637 = vmul.f32 %v2407, %v2636
        %v2638 = vsub.f32 1.0, %v2637
        %v2639 = vmul.f32 %v2636, %v2638
        %v2640 = vadd.f32 %v2636, %v2639
        %vm2641 = vweird.f32 %v2407
        %vm2642 = vweird.f32 %v2636
        %vm2643 = vmor %vm2641, %vm2642
        %v2644 = vsel %vm2643, %v2636, %v2640
        %v2645 = vand.u32 2147483647, %v2407
        %vm2646 = vcmp.eq.f32.partialorder %v2645, 8.507059e+37
        %v2647 = vand.u32 %v2407, 2147483648
        %v2648 = vor.u32 1.1754944e-38, %v2647
        %v2649 = vsel %vm2646, %v2648, %v2644
        %v2650 = vmul.f32 %v2305, %v2649
        %v2651 = vmul.f32 %v2307, %v2649
        %v2652 = vrcp.pop %v2411
        %v2653 = vmul.f32 %v2411, %v2652
        %v2654 = vsub.f32 1.0, %v2653
        %v2655 = vmul.f32 %v2652, %v2654
        %v2656 = vadd.f32 %v2652, %v2655
        %vm2657 = vweird.f32 %v2411
        %vm2658 = vweird.f32 %v2652
        %vm2659 = vmor %vm2657, %vm2658
        %v2660 = vsel %vm2659, %v2652, %v2656
        %v2661 = vand.u32 2147483647, %v2411
        %vm2662 = vcmp.eq.f32.partialorder %v2661, 8.507059e+37
        %v2663 = vand.u32 %v2411, 2147483648
        %v2664 = vor.u32 1.1754944e-38, %v2663
        %v2665 = vsel %vm2662, %v2664, %v2660
        %v2666 = vmul.f32 %v2309, %v2665
        %v2667 = vmul.f32 %v2311, %v2665
        %v2668 = vrcp.pop %v2415
        %v2669 = vmul.f32 %v2415, %v2668
        %v2670 = vsub.f32 1.0, %v2669
        %v2671 = vmul.f32 %v2668, %v2670
        %v2672 = vadd.f32 %v2668, %v2671
        %vm2673 = vweird.f32 %v2415
        %vm2674 = vweird.f32 %v2668
        %vm2675 = vmor %vm2673, %vm2674
        %v2676 = vsel %vm2675, %v2668, %v2672
        %v2677 = vand.u32 2147483647, %v2415
        %vm2678 = vcmp.eq.f32.partialorder %v2677, 8.507059e+37
        %v2679 = vand.u32 %v2415, 2147483648
        %v2680 = vor.u32 1.1754944e-38, %v2679
        %v2681 = vsel %vm2678, %v2680, %v2676
        %v2682 = vmul.f32 %v2313, %v2681
        %v2683 = vmul.f32 %v2315, %v2681
        %v2684 = vrcp.pop %v2419
        %v2685 = vmul.f32 %v2419, %v2684
        %v2686 = vsub.f32 1.0, %v2685
        %v2687 = vmul.f32 %v2684, %v2686
        %v2688 = vadd.f32 %v2684, %v2687
        %vm2689 = vweird.f32 %v2419
        %vm2690 = vweird.f32 %v2684
        %vm2691 = vmor %vm2689, %vm2690
        %v2692 = vsel %vm2691, %v2684, %v2688
        %v2693 = vand.u32 2147483647, %v2419
        %vm2694 = vcmp.eq.f32.partialorder %v2693, 8.507059e+37
        %v2695 = vand.u32 %v2419, 2147483648
        %v2696 = vor.u32 1.1754944e-38, %v2695
        %v2697 = vsel %vm2694, %v2696, %v2692
        %v2698 = vmul.f32 %v2317, %v2697
        %v2699 = vmul.f32 %v2319, %v2697
        %v2700 = vrcp.pop %v2423
        %v2701 = vmul.f32 %v2423, %v2700
        %v2702 = vsub.f32 1.0, %v2701
        %v2703 = vmul.f32 %v2700, %v2702
        %v2704 = vadd.f32 %v2700, %v2703
        %vm2705 = vweird.f32 %v2423
        %vm2706 = vweird.f32 %v2700
        %vm2707 = vmor %vm2705, %vm2706
        %v2708 = vsel %vm2707, %v2700, %v2704
        %v2709 = vand.u32 2147483647, %v2423
        %vm2710 = vcmp.eq.f32.partialorder %v2709, 8.507059e+37
        %v2711 = vand.u32 %v2423, 2147483648
        %v2712 = vor.u32 1.1754944e-38, %v2711
        %v2713 = vsel %vm2710, %v2712, %v2708
        %v2714 = vmul.f32 %v2321, %v2713
        %v2715 = vmul.f32 %v2323, %v2713
        %v2716 = vrcp.pop %v2427
        %v2717 = vmul.f32 %v2427, %v2716
        %v2718 = vsub.f32 1.0, %v2717
        %v2719 = vmul.f32 %v2716, %v2718
        %v2720 = vadd.f32 %v2716, %v2719
        %vm2721 = vweird.f32 %v2427
        %vm2722 = vweird.f32 %v2716
        %vm2723 = vmor %vm2721, %vm2722
        %v2724 = vsel %vm2723, %v2716, %v2720
        %v2725 = vand.u32 2147483647, %v2427
        %vm2726 = vcmp.eq.f32.partialorder %v2725, 8.507059e+37
        %v2727 = vand.u32 %v2427, 2147483648
        %v2728 = vor.u32 1.1754944e-38, %v2727
        %v2729 = vsel %vm2726, %v2728, %v2724
        %v2730 = vmul.f32 %v2325, %v2729
        %v2731 = vmul.f32 %v2327, %v2729
        %v2732 = vrcp.pop %v2431
        %v2733 = vmul.f32 %v2431, %v2732
        %v2734 = vsub.f32 1.0, %v2733
        %v2735 = vmul.f32 %v2732, %v2734
        %v2736 = vadd.f32 %v2732, %v2735
        %vm2737 = vweird.f32 %v2431
        %vm2738 = vweird.f32 %v2732
        %vm2739 = vmor %vm2737, %vm2738
        %v2740 = vsel %vm2739, %v2732, %v2736
        %v2741 = vand.u32 2147483647, %v2431
        %vm2742 = vcmp.eq.f32.partialorder %v2741, 8.507059e+37
        %v2743 = vand.u32 %v2431, 2147483648
        %v2744 = vor.u32 1.1754944e-38, %v2743
        %v2745 = vsel %vm2742, %v2744, %v2740
        %v2746 = vmul.f32 %v2329, %v2745
        %v2747 = vmul.f32 %v2331, %v2745
        %v2748 = vrcp.pop %v2435
        %v2749 = vmul.f32 %v2435, %v2748
        %v2750 = vsub.f32 1.0, %v2749
        %v2751 = vmul.f32 %v2748, %v2750
        %v2752 = vadd.f32 %v2748, %v2751
        %vm2753 = vweird.f32 %v2435
        %vm2754 = vweird.f32 %v2748
        %vm2755 = vmor %vm2753, %vm2754
        %v2756 = vsel %vm2755, %v2748, %v2752
        %v2757 = vand.u32 2147483647, %v2435
        %vm2758 = vcmp.eq.f32.partialorder %v2757, 8.507059e+37
        %v2759 = vand.u32 %v2435, 2147483648
        %v2760 = vor.u32 1.1754944e-38, %v2759
        %v2761 = vsel %vm2758, %v2760, %v2756
        %v2762 = vmul.f32 %v2333, %v2761
        %v2763 = vmul.f32 %v2335, %v2761
        %v2764 = vrcp.pop %v2439
        %v2765 = vmul.f32 %v2439, %v2764
        %v2766 = vsub.f32 1.0, %v2765
        %v2767 = vmul.f32 %v2764, %v2766
        %v2768 = vadd.f32 %v2764, %v2767
        %vm2769 = vweird.f32 %v2439
        %vm2770 = vweird.f32 %v2764
        %vm2771 = vmor %vm2769, %vm2770
        %v2772 = vsel %vm2771, %v2764, %v2768
        %v2773 = vand.u32 2147483647, %v2439
        %vm2774 = vcmp.eq.f32.partialorder %v2773, 8.507059e+37
        %v2775 = vand.u32 %v2439, 2147483648
        %v2776 = vor.u32 1.1754944e-38, %v2775
        %v2777 = vsel %vm2774, %v2776, %v2772
        %v2778 = vmul.f32 %v2337, %v2777
        %v2779 = vmul.f32 %v2339, %v2777
        %v2780 = vrcp.pop %v2443
        %v2781 = vmul.f32 %v2443, %v2780
        %v2782 = vsub.f32 1.0, %v2781
        %v2783 = vmul.f32 %v2780, %v2782
        %v2784 = vadd.f32 %v2780, %v2783
        %vm2785 = vweird.f32 %v2443
        %vm2786 = vweird.f32 %v2780
        %vm2787 = vmor %vm2785, %vm2786
        %v2788 = vsel %vm2787, %v2780, %v2784
        %v2789 = vand.u32 2147483647, %v2443
        %vm2790 = vcmp.eq.f32.partialorder %v2789, 8.507059e+37
        %v2791 = vand.u32 %v2443, 2147483648
        %v2792 = vor.u32 1.1754944e-38, %v2791
        %v2793 = vsel %vm2790, %v2792, %v2788
        %v2794 = vmul.f32 %v2341, %v2793
        %v2795 = vmul.f32 %v2343, %v2793
        %v2796 = vrcp.pop %v2447
        %v2797 = vmul.f32 %v2447, %v2796
        %v2798 = vsub.f32 1.0, %v2797
        %v2799 = vmul.f32 %v2796, %v2798
        %v2800 = vadd.f32 %v2796, %v2799
        %vm2801 = vweird.f32 %v2447
        %vm2802 = vweird.f32 %v2796
        %vm2803 = vmor %vm2801, %vm2802
        %v2804 = vsel %vm2803, %v2796, %v2800
        %v2805 = vand.u32 2147483647, %v2447
        %vm2806 = vcmp.eq.f32.partialorder %v2805, 8.507059e+37
        %v2807 = vand.u32 %v2447, 2147483648
        %v2808 = vor.u32 1.1754944e-38, %v2807
        %v2809 = vsel %vm2806, %v2808, %v2804
        %v2810 = vmul.f32 %v2345, %v2809
        %v2811 = vmul.f32 %v2347, %v2809
        %v2812 = vrcp.pop %v2451
        %v2813 = vmul.f32 %v2451, %v2812
        %v2814 = vsub.f32 1.0, %v2813
        %v2815 = vmul.f32 %v2812, %v2814
        %v2816 = vadd.f32 %v2812, %v2815
        %vm2817 = vweird.f32 %v2451
        %vm2818 = vweird.f32 %v2812
        %vm2819 = vmor %vm2817, %vm2818
        %v2820 = vsel %vm2819, %v2812, %v2816
        %v2821 = vand.u32 2147483647, %v2451
        %vm2822 = vcmp.eq.f32.partialorder %v2821, 8.507059e+37
        %v2823 = vand.u32 %v2451, 2147483648
        %v2824 = vor.u32 1.1754944e-38, %v2823
        %v2825 = vsel %vm2822, %v2824, %v2820
        %v2826 = vmul.f32 %v2349, %v2825
        %v2827 = vmul.f32 %v2351, %v2825
        %v2828 = vrcp.pop %v2455
        %v2829 = vmul.f32 %v2455, %v2828
        %v2830 = vsub.f32 1.0, %v2829
        %v2831 = vmul.f32 %v2828, %v2830
        %v2832 = vadd.f32 %v2828, %v2831
        %vm2833 = vweird.f32 %v2455
        %vm2834 = vweird.f32 %v2828
        %vm2835 = vmor %vm2833, %vm2834
        %v2836 = vsel %vm2835, %v2828, %v2832
        %v2837 = vand.u32 2147483647, %v2455
        %vm2838 = vcmp.eq.f32.partialorder %v2837, 8.507059e+37
        %v2839 = vand.u32 %v2455, 2147483648
        %v2840 = vor.u32 1.1754944e-38, %v2839
        %v2841 = vsel %vm2838, %v2840, %v2836
        %v2842 = vmul.f32 %v2353, %v2841
        %v2843 = vmul.f32 %v2355, %v2841
        %v2844 = vrcp.pop %v2459
        %v2845 = vmul.f32 %v2459, %v2844
        %v2846 = vsub.f32 1.0, %v2845
        %v2847 = vmul.f32 %v2844, %v2846
        %v2848 = vadd.f32 %v2844, %v2847
        %vm2849 = vweird.f32 %v2459
        %vm2850 = vweird.f32 %v2844
        %vm2851 = vmor %vm2849, %vm2850
        %v2852 = vsel %vm2851, %v2844, %v2848
        %v2853 = vand.u32 2147483647, %v2459
        %vm2854 = vcmp.eq.f32.partialorder %v2853, 8.507059e+37
        %v2855 = vand.u32 %v2459, 2147483648
        %v2856 = vor.u32 1.1754944e-38, %v2855
        %v2857 = vsel %vm2854, %v2856, %v2852
        %v2858 = vmul.f32 %v2357, %v2857
        %v2859 = vmul.f32 %v2359, %v2857
        %v2860 = vpack.c.bf16 %v1570, %v1569
        %v2861 = vpack.c.bf16 %v1572, %v1571
        %v2862 = vpack.c.bf16 %v1574, %v1573
        %v2863 = vpack.c.bf16 %v1576, %v1575
        %v2864 = vpack.c.bf16 %v1578, %v1577
        %v2865 = vpack.c.bf16 %v1580, %v1579
        %v2866 = vpack.c.bf16 %v1582, %v1581
        %v2867 = vpack.c.bf16 %v1584, %v1583
        %v2868 = vpack.c.bf16 %v1586, %v1585
        %v2869 = vpack.c.bf16 %v1588, %v1587
        %v2870 = vpack.c.bf16 %v1590, %v1589
        %v2871 = vpack.c.bf16 %v1592, %v1591
        %v2872 = vpack.c.bf16 %v1593, %v1593
        %v2883 = vunpack.c.l.b16 %v1594
        %v2884 = vunpack.c.l.b16 %v1595
        %v2885 = vunpack.c.l.b16 %v1596
        %v2886 = vunpack.c.l.b16 %v1597
        %v2887 = vunpack.c.l.b16 %v1598
        %v2888 = vunpack.c.l.b16 %v1599
        %v2889 = vunpack.c.l.b16 %v1600
        %v2890 = vunpack.c.l.b16 %v1601
        %v2891 = vunpack.c.l.b16 %v1602
        %v2892 = vunpack.c.l.b16 %v1603
        %v2893 = vpack.c.b16 %v2884, %v2883
        %v2894 = vpack.c.b16 %v2886, %v2885
        %v2895 = vpack.c.b16 %v2888, %v2887
        %v2896 = vpack.c.b16 %v2890, %v2889
        %v2897 = vpack.c.b16 %v2892, %v2891
        %v2904 = vsel %vm1604, %v2860, 0
        %v2907 = vsel %vm1604, %v2861, 0
        %v2910 = vsel %vm1604, %v2862, 0
        %v2913 = vsel %vm1604, %v2863, 0
        %v2916 = vsel %vm1604, %v2864, 0
        %v2919 = vsel %vm1604, %v2865, 0
        %v2922 = vsel %vm1604, %v2866, 0
        %v2925 = vsel %vm1604, %v2867, 0
        %v2928 = vsel %vm1604, %v2868, 0
        %v2931 = vsel %vm1604, %v2869, 0
        %v2934 = vsel %vm1604, %v2870, 0
        %v2937 = vsel %vm1604, %v2871, 0
        %v2940 = vsel %vm1604, %v2872, 0
        %2942 = vmatpush.bf16.msra.mxu0 0
        %2943 = vmatpush.bf16.msra.mxu0 0
        %2944 = vmatpush.bf16.msra.mxu0 0
        %2945 = vmatpush.bf16.msra.mxu0 %v2897
        %2946 = vmatpush.bf16.msra.mxu0 %v2896
        %2947 = vmatpush.bf16.msra.mxu0 %v2895
        %2948 = vmatpush.bf16.msra.mxu0 %v2894
        %2949 = vmatpush.bf16.msra.mxu0 %v2893
        %2950 = vmatmul.bf16.gmra.mxu0 %v2904
        %v2951 = vpop.f32.mrf.mxu0
        %v2952 = vadd.f32 0.0, %v2951
        %v2953 = vpop.f32.mrf.mxu0
        %v2954 = vadd.f32 0.0, %v2953
        %2955 = vmatmul.bf16.gmra.mxu0 %v2907
        %v2956 = vpop.f32.mrf.mxu0
        %v2957 = vadd.f32 0.0, %v2956
        %v2958 = vpop.f32.mrf.mxu0
        %v2959 = vadd.f32 0.0, %v2958
        %2960 = vmatmul.bf16.gmra.mxu0 %v2910
        %v2961 = vpop.f32.mrf.mxu0
        %v2962 = vadd.f32 0.0, %v2961
        %v2963 = vpop.f32.mrf.mxu0
        %v2964 = vadd.f32 0.0, %v2963
        %2965 = vmatmul.bf16.gmra.mxu0 %v2913
        %v2966 = vpop.f32.mrf.mxu0
        %v2967 = vadd.f32 0.0, %v2966
        %v2968 = vpop.f32.mrf.mxu0
        %v2969 = vadd.f32 0.0, %v2968
        %2970 = vmatmul.bf16.gmra.mxu0 %v2916
        %v2971 = vpop.f32.mrf.mxu0
        %v2972 = vadd.f32 0.0, %v2971
        %v2973 = vpop.f32.mrf.mxu0
        %v2974 = vadd.f32 0.0, %v2973
        %2975 = vmatmul.bf16.gmra.mxu0 %v2919
        %v2976 = vpop.f32.mrf.mxu0
        %v2977 = vadd.f32 0.0, %v2976
        %v2978 = vpop.f32.mrf.mxu0
        %v2979 = vadd.f32 0.0, %v2978
        %2980 = vmatmul.bf16.gmra.mxu0 %v2922
        %v2981 = vpop.f32.mrf.mxu0
        %v2982 = vadd.f32 0.0, %v2981
        %v2983 = vpop.f32.mrf.mxu0
        %v2984 = vadd.f32 0.0, %v2983
        %2985 = vmatmul.bf16.gmra.mxu0 %v2925
        %v2986 = vpop.f32.mrf.mxu0
        %v2987 = vadd.f32 0.0, %v2986
        %v2988 = vpop.f32.mrf.mxu0
        %v2989 = vadd.f32 0.0, %v2988
        %2990 = vmatmul.bf16.gmra.mxu0 %v2928
        %v2991 = vpop.f32.mrf.mxu0
        %v2992 = vadd.f32 0.0, %v2991
        %v2993 = vpop.f32.mrf.mxu0
        %v2994 = vadd.f32 0.0, %v2993
        %2995 = vmatmul.bf16.gmra.mxu0 %v2931
        %v2996 = vpop.f32.mrf.mxu0
        %v2997 = vadd.f32 0.0, %v2996
        %v2998 = vpop.f32.mrf.mxu0
        %v2999 = vadd.f32 0.0, %v2998
        %3000 = vmatmul.bf16.gmra.mxu0 %v2934
        %v3001 = vpop.f32.mrf.mxu0
        %v3002 = vadd.f32 0.0, %v3001
        %v3003 = vpop.f32.mrf.mxu0
        %v3004 = vadd.f32 0.0, %v3003
        %3005 = vmatmul.bf16.gmra.mxu0 %v2937
        %v3006 = vpop.f32.mrf.mxu0
        %v3007 = vadd.f32 0.0, %v3006
        %v3008 = vpop.f32.mrf.mxu0
        %v3009 = vadd.f32 0.0, %v3008
        %3010 = vmatmul.bf16.gmra.mxu0 %v2940
        %v3011 = vpop.f32.mrf.mxu0
        %v3012 = vadd.f32 0.0, %v3011
        %v3013 = vpop.f32.mrf.mxu0
        %3014 = vdwg.mxu0
        %v3015 = vpack.c.bf16 %v2490, %v2474
        %v3016 = vpack.c.bf16 %v2491, %v2475
        %v3017 = vpack.c.bf16 %v2522, %v2506
        %v3018 = vpack.c.bf16 %v2523, %v2507
        %v3019 = vpack.c.bf16 %v2554, %v2538
        %v3020 = vpack.c.bf16 %v2555, %v2539
        %v3021 = vpack.c.bf16 %v2586, %v2570
        %v3022 = vpack.c.bf16 %v2587, %v2571
        %v3023 = vpack.c.bf16 %v2618, %v2602
        %v3024 = vpack.c.bf16 %v2619, %v2603
        %v3025 = vpack.c.bf16 %v2650, %v2634
        %v3026 = vpack.c.bf16 %v2651, %v2635
        %v3027 = vpack.c.bf16 %v2682, %v2666
        %v3028 = vpack.c.bf16 %v2683, %v2667
        %v3029 = vpack.c.bf16 %v2714, %v2698
        %v3030 = vpack.c.bf16 %v2715, %v2699
        %v3031 = vpack.c.bf16 %v2746, %v2730
        %v3032 = vpack.c.bf16 %v2747, %v2731
        %v3033 = vpack.c.bf16 %v2778, %v2762
        %v3034 = vpack.c.bf16 %v2779, %v2763
        %v3035 = vpack.c.bf16 %v2810, %v2794
        %v3036 = vpack.c.bf16 %v2811, %v2795
        %v3037 = vpack.c.bf16 %v2842, %v2826
        %v3038 = vpack.c.bf16 %v2843, %v2827
        %v3039 = vpack.c.bf16 %v2858, %v2858
        %v3040 = vpack.c.bf16 %v2859, %v2859
        %v3041 = vpack.c.bf16 %v2954, %v2952
        %v3042 = vpack.c.bf16 %v2959, %v2957
        %v3043 = vpack.c.bf16 %v2964, %v2962
        %v3044 = vpack.c.bf16 %v2969, %v2967
        %v3045 = vpack.c.bf16 %v2974, %v2972
        %v3046 = vpack.c.bf16 %v2979, %v2977
        %v3047 = vpack.c.bf16 %v2984, %v2982
        %v3048 = vpack.c.bf16 %v2989, %v2987
        %v3049 = vpack.c.bf16 %v2994, %v2992
        %v3050 = vpack.c.bf16 %v2999, %v2997
        %v3051 = vpack.c.bf16 %v3004, %v3002
        %v3052 = vpack.c.bf16 %v3009, %v3007
        %v3053 = vpack.c.bf16 %v3012, %v3012
        %v3054 = vld [vmem:[%s6] sm:$0x1]
        %v3056 = vperm.slane %v3054, 0
        %v3059 = vsel %vm2109, %v3016, 0
        %v3062 = vsel %vm2109, %v3018, 0
        %v3065 = vsel %vm2109, %v3020, 0
        %v3068 = vsel %vm2109, %v3022, 0
        %v3071 = vsel %vm2109, %v3024, 0
        %v3074 = vsel %vm2109, %v3026, 0
        %v3077 = vsel %vm2109, %v3028, 0
        %v3080 = vsel %vm2109, %v3030, 0
        %v3083 = vsel %vm2109, %v3032, 0
        %v3086 = vsel %vm2109, %v3034, 0
        %v3089 = vsel %vm2109, %v3036, 0
        %v3092 = vsel %vm2109, %v3038, 0
        %v3095 = vsel %vm2109, %v3040, 0
        %vm3097 = vcmask 1043456
        %v3099 = vsel %vm3097, %v3053, 0
        %3101 = vmatpush.bf16.msra.mxu0 %v3048
        %3102 = vmatpush.bf16.msra.mxu0 %v3047
        %3103 = vmatpush.bf16.msra.mxu0 %v3046
        %3104 = vmatpush.bf16.msra.mxu0 %v3045
        %3105 = vmatpush.bf16.msra.mxu0 %v3044
        %3106 = vmatpush.bf16.msra.mxu0 %v3043
        %3107 = vmatpush.bf16.msra.mxu0 %v3042
        %3108 = vmatpush.bf16.msra.mxu0 %v3041
        %3109 = vmatmul.bf16.gmra.mxu0 %v3015
        %v3110 = vpop.f32.mrf.mxu0
        %v3111 = vadd.f32 %v3056, %v3110
        %v3112 = vpop.f32.mrf.mxu0
        %v3113 = vadd.f32 %v3056, %v3112
        %3114 = vmatmul.bf16.gmra.mxu0 %v3017
        %v3115 = vpop.f32.mrf.mxu0
        %v3116 = vadd.f32 %v3056, %v3115
        %v3117 = vpop.f32.mrf.mxu0
        %v3118 = vadd.f32 %v3056, %v3117
        %3119 = vmatmul.bf16.gmra.mxu0 %v3019
        %v3120 = vpop.f32.mrf.mxu0
        %v3121 = vadd.f32 %v3056, %v3120
        %v3122 = vpop.f32.mrf.mxu0
        %v3123 = vadd.f32 %v3056, %v3122
        %3124 = vmatmul.bf16.gmra.mxu0 %v3021
        %v3125 = vpop.f32.mrf.mxu0
        %v3126 = vadd.f32 %v3056, %v3125
        %v3127 = vpop.f32.mrf.mxu0
        %v3128 = vadd.f32 %v3056, %v3127
        %3129 = vmatmul.bf16.gmra.mxu0 %v3023
        %v3130 = vpop.f32.mrf.mxu0
        %v3131 = vadd.f32 %v3056, %v3130
        %v3132 = vpop.f32.mrf.mxu0
        %v3133 = vadd.f32 %v3056, %v3132
        %3134 = vmatmul.bf16.gmra.mxu0 %v3025
        %v3135 = vpop.f32.mrf.mxu0
        %v3136 = vadd.f32 %v3056, %v3135
        %v3137 = vpop.f32.mrf.mxu0
        %v3138 = vadd.f32 %v3056, %v3137
        %3139 = vmatmul.bf16.gmra.mxu0 %v3027
        %v3140 = vpop.f32.mrf.mxu0
        %v3141 = vadd.f32 %v3056, %v3140
        %v3142 = vpop.f32.mrf.mxu0
        %v3143 = vadd.f32 %v3056, %v3142
        %3144 = vmatmul.bf16.gmra.mxu0 %v3029
        %v3145 = vpop.f32.mrf.mxu0
        %v3146 = vadd.f32 %v3056, %v3145
        %v3147 = vpop.f32.mrf.mxu0
        %v3148 = vadd.f32 %v3056, %v3147
        %3149 = vmatmul.bf16.gmra.mxu0 %v3031
        %v3150 = vpop.f32.mrf.mxu0
        %v3151 = vadd.f32 %v3056, %v3150
        %v3152 = vpop.f32.mrf.mxu0
        %v3153 = vadd.f32 %v3056, %v3152
        %3154 = vmatmul.bf16.gmra.mxu0 %v3033
        %v3155 = vpop.f32.mrf.mxu0
        %v3156 = vadd.f32 %v3056, %v3155
        %v3157 = vpop.f32.mrf.mxu0
        %v3158 = vadd.f32 %v3056, %v3157
        %3159 = vmatmul.bf16.gmra.mxu0 %v3035
        %v3160 = vpop.f32.mrf.mxu0
        %v3161 = vadd.f32 %v3056, %v3160
        %v3162 = vpop.f32.mrf.mxu0
        %v3163 = vadd.f32 %v3056, %v3162
        %3164 = vmatmul.bf16.gmra.mxu0 %v3037
        %v3165 = vpop.f32.mrf.mxu0
        %v3166 = vadd.f32 %v3056, %v3165
        %v3167 = vpop.f32.mrf.mxu0
        %v3168 = vadd.f32 %v3056, %v3167
        %3169 = vmatmul.bf16.gmra.mxu0 %v3039
        %v3170 = vpop.f32.mrf.mxu0
        %v3171 = vadd.f32 %v3056, %v3170
        %v3172 = vpop.f32.mrf.mxu0
        %3173 = vdwg.mxu0
        %3174 = vmatpush.bf16.msra.mxu0 0
        %3175 = vmatpush.bf16.msra.mxu0 0
        %3176 = vmatpush.bf16.msra.mxu0 0
        %3177 = vmatpush.bf16.msra.mxu0 %v3099
        %3178 = vmatpush.bf16.msra.mxu0 %v3052
        %3179 = vmatpush.bf16.msra.mxu0 %v3051
        %3180 = vmatpush.bf16.msra.mxu0 %v3050
        %3181 = vmatpush.bf16.msra.mxu0 %v3049
        %3182 = vmatmul.bf16.gmra.mxu0 %v3059
        %v3183 = vpop.f32.mrf.mxu0
        %v3184 = vadd.f32 %v3111, %v3183
        %v3185 = vpop.f32.mrf.mxu0
        %v3186 = vadd.f32 %v3113, %v3185
        %3187 = vmatmul.bf16.gmra.mxu0 %v3062
        %v3188 = vpop.f32.mrf.mxu0
        %v3189 = vadd.f32 %v3116, %v3188
        %v3190 = vpop.f32.mrf.mxu0
        %v3191 = vadd.f32 %v3118, %v3190
        %3192 = vmatmul.bf16.gmra.mxu0 %v3065
        %v3193 = vpop.f32.mrf.mxu0
        %v3194 = vadd.f32 %v3121, %v3193
        %v3195 = vpop.f32.mrf.mxu0
        %v3196 = vadd.f32 %v3123, %v3195
        %3197 = vmatmul.bf16.gmra.mxu0 %v3068
        %v3198 = vpop.f32.mrf.mxu0
        %v3199 = vadd.f32 %v3126, %v3198
        %v3200 = vpop.f32.mrf.mxu0
        %v3201 = vadd.f32 %v3128, %v3200
        %3202 = vmatmul.bf16.gmra.mxu0 %v3071
        %v3203 = vpop.f32.mrf.mxu0
        %v3204 = vadd.f32 %v3131, %v3203
        %v3205 = vpop.f32.mrf.mxu0
        %v3206 = vadd.f32 %v3133, %v3205
        %3207 = vmatmul.bf16.gmra.mxu0 %v3074
        %v3208 = vpop.f32.mrf.mxu0
        %v3209 = vadd.f32 %v3136, %v3208
        %v3210 = vpop.f32.mrf.mxu0
        %v3211 = vadd.f32 %v3138, %v3210
        %3212 = vmatmul.bf16.gmra.mxu0 %v3077
        %v3213 = vpop.f32.mrf.mxu0
        %v3214 = vadd.f32 %v3141, %v3213
        %v3215 = vpop.f32.mrf.mxu0
        %v3216 = vadd.f32 %v3143, %v3215
        %3217 = vmatmul.bf16.gmra.mxu0 %v3080
        %v3218 = vpop.f32.mrf.mxu0
        %v3219 = vadd.f32 %v3146, %v3218
        %v3220 = vpop.f32.mrf.mxu0
        %v3221 = vadd.f32 %v3148, %v3220
        %3222 = vmatmul.bf16.gmra.mxu0 %v3083
        %v3223 = vpop.f32.mrf.mxu0
        %v3224 = vadd.f32 %v3151, %v3223
        %v3225 = vpop.f32.mrf.mxu0
        %v3226 = vadd.f32 %v3153, %v3225
        %3227 = vmatmul.bf16.gmra.mxu0 %v3086
        %v3228 = vpop.f32.mrf.mxu0
        %v3229 = vadd.f32 %v3156, %v3228
        %v3230 = vpop.f32.mrf.mxu0
        %v3231 = vadd.f32 %v3158, %v3230
        %3232 = vmatmul.bf16.gmra.mxu0 %v3089
        %v3233 = vpop.f32.mrf.mxu0
        %v3234 = vadd.f32 %v3161, %v3233
        %v3235 = vpop.f32.mrf.mxu0
        %v3236 = vadd.f32 %v3163, %v3235
        %3237 = vmatmul.bf16.gmra.mxu0 %v3092
        %v3238 = vpop.f32.mrf.mxu0
        %v3239 = vadd.f32 %v3166, %v3238
        %v3240 = vpop.f32.mrf.mxu0
        %v3241 = vadd.f32 %v3168, %v3240
        %3242 = vmatmul.bf16.gmra.mxu0 %v3095
        %v3243 = vpop.f32.mrf.mxu0
        %v3244 = vadd.f32 %v3171, %v3243
        %v3245 = vpop.f32.mrf.mxu0
        %3246 = vdwg.mxu0
        %v3247 = vmax.f32 %v3184, 0.0
        %v3248 = vmax.f32 %v3186, 0.0
        %v3249 = vmax.f32 %v3189, 0.0
        %v3250 = vmax.f32 %v3191, 0.0
        %v3251 = vmax.f32 %v3194, 0.0
        %v3252 = vmax.f32 %v3196, 0.0
        %v3253 = vmax.f32 %v3199, 0.0
        %v3254 = vmax.f32 %v3201, 0.0
        %v3255 = vmax.f32 %v3204, 0.0
        %v3256 = vmax.f32 %v3206, 0.0
        %v3257 = vmax.f32 %v3209, 0.0
        %v3258 = vmax.f32 %v3211, 0.0
        %v3259 = vmax.f32 %v3214, 0.0
        %v3260 = vmax.f32 %v3216, 0.0
        %v3261 = vmax.f32 %v3219, 0.0
        %v3262 = vmax.f32 %v3221, 0.0
        %v3263 = vmax.f32 %v3224, 0.0
        %v3264 = vmax.f32 %v3226, 0.0
        %v3265 = vmax.f32 %v3229, 0.0
        %v3266 = vmax.f32 %v3231, 0.0
        %v3267 = vmax.f32 %v3234, 0.0
        %v3268 = vmax.f32 %v3236, 0.0
        %v3269 = vmax.f32 %v3239, 0.0
        %v3270 = vmax.f32 %v3241, 0.0
        %v3271 = vmax.f32 %v3244, 0.0
        %v3272 = vld [vmem:[%s7] sm:$0xf]
        %v3273 = vld [vmem:[%s7 + $0x4] sm:$0xf]
        %v3274 = vld [vmem:[%s7 + $0x8] sm:$0x3]
        %vm3275 = vcmask 162816
        %v3277 = vsel %vm3275, %v3247, 0
        %v3280 = vsel %vm3275, %v3248, 0
        %v3283 = vsel %vm3275, %v3249, 0
        %v3286 = vsel %vm3275, %v3250, 0
        %v3289 = vsel %vm3275, %v3251, 0
        %v3292 = vsel %vm3275, %v3252, 0
        %v3295 = vsel %vm3275, %v3253, 0
        %v3298 = vsel %vm3275, %v3254, 0
        %v3301 = vsel %vm3275, %v3255, 0
        %v3304 = vsel %vm3275, %v3256, 0
        %v3307 = vsel %vm3275, %v3257, 0
        %v3310 = vsel %vm3275, %v3258, 0
        %v3313 = vsel %vm3275, %v3259, 0
        %v3316 = vsel %vm3275, %v3260, 0
        %v3319 = vsel %vm3275, %v3261, 0
        %v3322 = vsel %vm3275, %v3262, 0
        %v3325 = vsel %vm3275, %v3263, 0
        %v3328 = vsel %vm3275, %v3264, 0
        %v3331 = vsel %vm3275, %v3265, 0
        %v3334 = vsel %vm3275, %v3266, 0
        %v3337 = vsel %vm3275, %v3267, 0
        %v3340 = vsel %vm3275, %v3268, 0
        %v3343 = vsel %vm3275, %v3269, 0
        %v3346 = vsel %vm3275, %v3270, 0
        %v3349 = vsel %vm3275, %v3271, 0
        %3351 = vmatpush.xpose.msra.mxu0 %v3322
        %3352 = vmatpush.xpose.msra.mxu0 %v3319
        %3353 = vmatpush.xpose.msra.mxu0 %v3316
        %3354 = vmatpush.xpose.msra.mxu0 %v3313
        %3355 = vmatpush.xpose.msra.mxu0 %v3310
        %3356 = vmatpush.xpose.msra.mxu0 %v3307
        %3357 = vmatpush.xpose.msra.mxu0 %v3304
        %3358 = vmatpush.xpose.msra.mxu0 %v3301
        %3359 = vmatpush.xpose.msra.mxu0 %v3298
        %3360 = vmatpush.xpose.msra.mxu0 %v3295
        %3361 = vmatpush.xpose.msra.mxu0 %v3292
        %3362 = vmatpush.xpose.msra.mxu0 %v3289
        %3363 = vmatpush.xpose.msra.mxu0 %v3286
        %3364 = vmatpush.xpose.msra.mxu0 %v3283
        %3365 = vmatpush.xpose.msra.mxu0 %v3280
        %3366 = vmatpush.xpose.msra.mxu0 %v3277
        %3367 = vmatmul.f32.gmra.mxu0 %v3277
        %v3368 = vpop.f32.mrf.mxu0
        %v3369 = vadd.f32 0.0, %v3368
        %3370 = vmatmul.f32.gmra.mxu0 %v3280
        %v3371 = vpop.f32.mrf.mxu0
        %v3372 = vadd.f32 0.0, %v3371
        %3373 = vmatmul.f32.gmra.mxu0 %v3283
        %v3374 = vpop.f32.mrf.mxu0
        %v3375 = vadd.f32 0.0, %v3374
        %3376 = vmatmul.f32.gmra.mxu0 %v3286
        %v3377 = vpop.f32.mrf.mxu0
        %v3378 = vadd.f32 0.0, %v3377
        %3379 = vmatmul.f32.gmra.mxu0 %v3289
        %v3380 = vpop.f32.mrf.mxu0
        %v3381 = vadd.f32 0.0, %v3380
        %3382 = vmatmul.f32.gmra.mxu0 %v3292
        %v3383 = vpop.f32.mrf.mxu0
        %v3384 = vadd.f32 0.0, %v3383
        %3385 = vmatmul.f32.gmra.mxu0 %v3295
        %v3386 = vpop.f32.mrf.mxu0
        %v3387 = vadd.f32 0.0, %v3386
        %3388 = vmatmul.f32.gmra.mxu0 %v3298
        %v3389 = vpop.f32.mrf.mxu0
        %v3390 = vadd.f32 0.0, %v3389
        %3391 = vmatmul.f32.gmra.mxu0 %v3301
        %v3392 = vpop.f32.mrf.mxu0
        %v3393 = vadd.f32 0.0, %v3392
        %3394 = vmatmul.f32.gmra.mxu0 %v3304
        %v3395 = vpop.f32.mrf.mxu0
        %v3396 = vadd.f32 0.0, %v3395
        %3397 = vmatmul.f32.gmra.mxu0 %v3307
        %v3398 = vpop.f32.mrf.mxu0
        %v3399 = vadd.f32 0.0, %v3398
        %3400 = vmatmul.f32.gmra.mxu0 %v3310
        %v3401 = vpop.f32.mrf.mxu0
        %v3402 = vadd.f32 0.0, %v3401
        %3403 = vmatmul.f32.gmra.mxu0 %v3313
        %v3404 = vpop.f32.mrf.mxu0
        %v3405 = vadd.f32 0.0, %v3404
        %3406 = vmatmul.f32.gmra.mxu0 %v3316
        %v3407 = vpop.f32.mrf.mxu0
        %v3408 = vadd.f32 0.0, %v3407
        %3409 = vmatmul.f32.gmra.mxu0 %v3319
        %v3410 = vpop.f32.mrf.mxu0
        %v3411 = vadd.f32 0.0, %v3410
        %3412 = vmatmul.f32.gmra.mxu0 %v3322
        %v3413 = vpop.f32.mrf.mxu0
        %v3414 = vadd.f32 0.0, %v3413
        %3415 = vmatmul.f32.gmra.mxu0 %v3325
        %v3416 = vpop.f32.mrf.mxu0
        %v3417 = vadd.f32 0.0, %v3416
        %3418 = vmatmul.f32.gmra.mxu0 %v3328
        %v3419 = vpop.f32.mrf.mxu0
        %v3420 = vadd.f32 0.0, %v3419
        %3421 = vmatmul.f32.gmra.mxu0 %v3331
        %v3422 = vpop.f32.mrf.mxu0
        %v3423 = vadd.f32 0.0, %v3422
        %3424 = vmatmul.f32.gmra.mxu0 %v3334
        %v3425 = vpop.f32.mrf.mxu0
        %v3426 = vadd.f32 0.0, %v3425
        %3427 = vmatmul.f32.gmra.mxu0 %v3337
        %v3428 = vpop.f32.mrf.mxu0
        %v3429 = vadd.f32 0.0, %v3428
        %3430 = vmatmul.f32.gmra.mxu0 %v3340
        %v3431 = vpop.f32.mrf.mxu0
        %v3432 = vadd.f32 0.0, %v3431
        %3433 = vmatmul.f32.gmra.mxu0 %v3343
        %v3434 = vpop.f32.mrf.mxu0
        %v3435 = vadd.f32 0.0, %v3434
        %3436 = vmatmul.f32.gmra.mxu0 %v3346
        %v3437 = vpop.f32.mrf.mxu0
        %v3438 = vadd.f32 0.0, %v3437
        %3439 = vmatmul.f32.gmra.mxu0 %v3349
        %v3440 = vpop.f32.mrf.mxu0
        %v3441 = vadd.f32 0.0, %v3440
        %3442 = vdwg.mxu0
        %3443 = vmatpush.xpose.msra.mxu0 0.0
        %3444 = vmatpush.xpose.msra.mxu0 0.0
        %3445 = vmatpush.xpose.msra.mxu0 0.0
        %3446 = vmatpush.xpose.msra.mxu0 0.0
        %3447 = vmatpush.xpose.msra.mxu0 0.0
        %3448 = vmatpush.xpose.msra.mxu0 0.0
        %3449 = vmatpush.xpose.msra.mxu0 0.0
        %3450 = vmatpush.xpose.msra.mxu0 %v3349
        %3451 = vmatpush.xpose.msra.mxu0 %v3346
        %3452 = vmatpush.xpose.msra.mxu0 %v3343
        %3453 = vmatpush.xpose.msra.mxu0 %v3340
        %3454 = vmatpush.xpose.msra.mxu0 %v3337
        %3455 = vmatpush.xpose.msra.mxu0 %v3334
        %3456 = vmatpush.xpose.msra.mxu0 %v3331
        %3457 = vmatpush.xpose.msra.mxu0 %v3328
        %3458 = vmatpush.xpose.msra.mxu0 %v3325
        %3459 = vmatmul.f32.gmra.mxu0 %v3277
        %v3460 = vpop.f32.mrf.mxu0
        %v3461 = vadd.f32 0.0, %v3460
        %3462 = vmatmul.f32.gmra.mxu0 %v3280
        %v3463 = vpop.f32.mrf.mxu0
        %v3464 = vadd.f32 0.0, %v3463
        %3465 = vmatmul.f32.gmra.mxu0 %v3283
        %v3466 = vpop.f32.mrf.mxu0
        %v3467 = vadd.f32 0.0, %v3466
        %3468 = vmatmul.f32.gmra.mxu0 %v3286
        %v3469 = vpop.f32.mrf.mxu0
        %v3470 = vadd.f32 0.0, %v3469
        %3471 = vmatmul.f32.gmra.mxu0 %v3289
        %v3472 = vpop.f32.mrf.mxu0
        %v3473 = vadd.f32 0.0, %v3472
        %3474 = vmatmul.f32.gmra.mxu0 %v3292
        %v3475 = vpop.f32.mrf.mxu0
        %v3476 = vadd.f32 0.0, %v3475
        %3477 = vmatmul.f32.gmra.mxu0 %v3295
        %v3478 = vpop.f32.mrf.mxu0
        %v3479 = vadd.f32 0.0, %v3478
        %3480 = vmatmul.f32.gmra.mxu0 %v3298
        %v3481 = vpop.f32.mrf.mxu0
        %v3482 = vadd.f32 0.0, %v3481
        %3483 = vmatmul.f32.gmra.mxu0 %v3301
        %v3484 = vpop.f32.mrf.mxu0
        %v3485 = vadd.f32 0.0, %v3484
        %3486 = vmatmul.f32.gmra.mxu0 %v3304
        %v3487 = vpop.f32.mrf.mxu0
        %v3488 = vadd.f32 0.0, %v3487
        %3489 = vmatmul.f32.gmra.mxu0 %v3307
        %v3490 = vpop.f32.mrf.mxu0
        %v3491 = vadd.f32 0.0, %v3490
        %3492 = vmatmul.f32.gmra.mxu0 %v3310
        %v3493 = vpop.f32.mrf.mxu0
        %v3494 = vadd.f32 0.0, %v3493
        %3495 = vmatmul.f32.gmra.mxu0 %v3313
        %v3496 = vpop.f32.mrf.mxu0
        %v3497 = vadd.f32 0.0, %v3496
        %3498 = vmatmul.f32.gmra.mxu0 %v3316
        %v3499 = vpop.f32.mrf.mxu0
        %v3500 = vadd.f32 0.0, %v3499
        %3501 = vmatmul.f32.gmra.mxu0 %v3319
        %v3502 = vpop.f32.mrf.mxu0
        %v3503 = vadd.f32 0.0, %v3502
        %3504 = vmatmul.f32.gmra.mxu0 %v3322
        %v3505 = vpop.f32.mrf.mxu0
        %v3506 = vadd.f32 0.0, %v3505
        %3507 = vmatmul.f32.gmra.mxu0 %v3325
        %v3508 = vpop.f32.mrf.mxu0
        %v3509 = vadd.f32 0.0, %v3508
        %3510 = vmatmul.f32.gmra.mxu0 %v3328
        %v3511 = vpop.f32.mrf.mxu0
        %v3512 = vadd.f32 0.0, %v3511
        %3513 = vmatmul.f32.gmra.mxu0 %v3331
        %v3514 = vpop.f32.mrf.mxu0
        %v3515 = vadd.f32 0.0, %v3514
        %3516 = vmatmul.f32.gmra.mxu0 %v3334
        %v3517 = vpop.f32.mrf.mxu0
        %v3518 = vadd.f32 0.0, %v3517
        %3519 = vmatmul.f32.gmra.mxu0 %v3337
        %v3520 = vpop.f32.mrf.mxu0
        %v3521 = vadd.f32 0.0, %v3520
        %3522 = vmatmul.f32.gmra.mxu0 %v3340
        %v3523 = vpop.f32.mrf.mxu0
        %v3524 = vadd.f32 0.0, %v3523
        %3525 = vmatmul.f32.gmra.mxu0 %v3343
        %v3526 = vpop.f32.mrf.mxu0
        %v3527 = vadd.f32 0.0, %v3526
        %3528 = vmatmul.f32.gmra.mxu0 %v3346
        %v3529 = vpop.f32.mrf.mxu0
        %v3530 = vadd.f32 0.0, %v3529
        %3531 = vmatmul.f32.gmra.mxu0 %v3349
        %v3532 = vpop.f32.mrf.mxu0
        %v3533 = vadd.f32 0.0, %v3532
        %3534 = vdwg.mxu0
        %v3535 = vmul.f32 %v3247, %v3247
        %v3536 = vmul.f32 %v3248, %v3248
        %v3537 = vmul.f32 %v3249, %v3249
        %v3538 = vmul.f32 %v3250, %v3250
        %v3539 = vmul.f32 %v3251, %v3251
        %v3540 = vmul.f32 %v3252, %v3252
        %v3541 = vmul.f32 %v3253, %v3253
        %v3542 = vmul.f32 %v3254, %v3254
        %v3543 = vmul.f32 %v3255, %v3255
        %v3544 = vmul.f32 %v3256, %v3256
        %v3545 = vmul.f32 %v3257, %v3257
        %v3546 = vmul.f32 %v3258, %v3258
        %v3547 = vmul.f32 %v3259, %v3259
        %v3548 = vmul.f32 %v3260, %v3260
        %v3549 = vmul.f32 %v3261, %v3261
        %v3550 = vmul.f32 %v3262, %v3262
        %v3551 = vmul.f32 %v3263, %v3263
        %v3552 = vmul.f32 %v3264, %v3264
        %v3553 = vmul.f32 %v3265, %v3265
        %v3554 = vmul.f32 %v3266, %v3266
        %v3555 = vmul.f32 %v3267, %v3267
        %v3556 = vmul.f32 %v3268, %v3268
        %v3557 = vmul.f32 %v3269, %v3269
        %v3558 = vmul.f32 %v3270, %v3270
        %v3559 = vmul.f32 %v3271, %v3271
        %v3560 = vsel %vm3275, 1.0, 0
        %v3563 = vsel %vm3275, %v3535, 0
        %v3566 = vsel %vm3275, %v3536, 0
        %v3569 = vsel %vm3275, %v3537, 0
        %v3572 = vsel %vm3275, %v3538, 0
        %v3575 = vsel %vm3275, %v3539, 0
        %v3578 = vsel %vm3275, %v3540, 0
        %v3581 = vsel %vm3275, %v3541, 0
        %v3584 = vsel %vm3275, %v3542, 0
        %v3587 = vsel %vm3275, %v3543, 0
        %v3590 = vsel %vm3275, %v3544, 0
        %v3593 = vsel %vm3275, %v3545, 0
        %v3596 = vsel %vm3275, %v3546, 0
        %v3599 = vsel %vm3275, %v3547, 0
        %v3602 = vsel %vm3275, %v3548, 0
        %v3605 = vsel %vm3275, %v3549, 0
        %v3608 = vsel %vm3275, %v3550, 0
        %v3611 = vsel %vm3275, %v3551, 0
        %v3614 = vsel %vm3275, %v3552, 0
        %v3617 = vsel %vm3275, %v3553, 0
        %v3620 = vsel %vm3275, %v3554, 0
        %v3623 = vsel %vm3275, %v3555, 0
        %v3626 = vsel %vm3275, %v3556, 0
        %v3629 = vsel %vm3275, %v3557, 0
        %v3632 = vsel %vm3275, %v3558, 0
        %v3635 = vsel %vm3275, %v3559, 0
        %3637 = vmatpush.xpose.msra.mxu0 %v3608
        %3638 = vmatpush.xpose.msra.mxu0 %v3605
        %3639 = vmatpush.xpose.msra.mxu0 %v3602
        %3640 = vmatpush.xpose.msra.mxu0 %v3599
        %3641 = vmatpush.xpose.msra.mxu0 %v3596
        %3642 = vmatpush.xpose.msra.mxu0 %v3593
        %3643 = vmatpush.xpose.msra.mxu0 %v3590
        %3644 = vmatpush.xpose.msra.mxu0 %v3587
        %3645 = vmatpush.xpose.msra.mxu0 %v3584
        %3646 = vmatpush.xpose.msra.mxu0 %v3581
        %3647 = vmatpush.xpose.msra.mxu0 %v3578
        %3648 = vmatpush.xpose.msra.mxu0 %v3575
        %3649 = vmatpush.xpose.msra.mxu0 %v3572
        %3650 = vmatpush.xpose.msra.mxu0 %v3569
        %3651 = vmatpush.xpose.msra.mxu0 %v3566
        %3652 = vmatpush.xpose.msra.mxu0 %v3563
        %3653 = vmatmul.f32.gmra.mxu0 %v3560
        %v3654 = vpop.f32.mrf.mxu0
        %v3655 = vadd.f32 0.0, %v3654
        %3656 = vdwg.mxu0
        %3657 = vmatpush.xpose.msra.mxu0 0.0
        %3658 = vmatpush.xpose.msra.mxu0 0.0
        %3659 = vmatpush.xpose.msra.mxu0 0.0
        %3660 = vmatpush.xpose.msra.mxu0 0.0
        %3661 = vmatpush.xpose.msra.mxu0 0.0
        %3662 = vmatpush.xpose.msra.mxu0 0.0
        %3663 = vmatpush.xpose.msra.mxu0 0.0
        %3664 = vmatpush.xpose.msra.mxu0 %v3635
        %3665 = vmatpush.xpose.msra.mxu0 %v3632
        %3666 = vmatpush.xpose.msra.mxu0 %v3629
        %3667 = vmatpush.xpose.msra.mxu0 %v3626
        %3668 = vmatpush.xpose.msra.mxu0 %v3623
        %3669 = vmatpush.xpose.msra.mxu0 %v3620
        %3670 = vmatpush.xpose.msra.mxu0 %v3617
        %3671 = vmatpush.xpose.msra.mxu0 %v3614
        %3672 = vmatpush.xpose.msra.mxu0 %v3611
        %3673 = vmatmul.f32.gmra.mxu0 %v3560
        %v3674 = vpop.f32.mrf.mxu0
        %v3675 = vadd.f32 0.0, %v3674
        %3676 = vdwg.mxu0
        %v3677 = vmul.f32 %v3369, 2.0
        %v3678 = vmul.f32 %v3461, 2.0
        %v3679 = vmul.f32 %v3372, 2.0
        %v3680 = vmul.f32 %v3464, 2.0
        %v3681 = vmul.f32 %v3375, 2.0
        %v3682 = vmul.f32 %v3467, 2.0
        %v3683 = vmul.f32 %v3378, 2.0
        %v3684 = vmul.f32 %v3470, 2.0
        %v3685 = vmul.f32 %v3381, 2.0
        %v3686 = vmul.f32 %v3473, 2.0
        %v3687 = vmul.f32 %v3384, 2.0
        %v3688 = vmul.f32 %v3476, 2.0
        %v3689 = vmul.f32 %v3387, 2.0
        %v3690 = vmul.f32 %v3479, 2.0
        %v3691 = vmul.f32 %v3390, 2.0
        %v3692 = vmul.f32 %v3482, 2.0
        %v3693 = vmul.f32 %v3393, 2.0
        %v3694 = vmul.f32 %v3485, 2.0
        %v3695 = vmul.f32 %v3396, 2.0
        %v3696 = vmul.f32 %v3488, 2.0
        %v3697 = vmul.f32 %v3399, 2.0
        %v3698 = vmul.f32 %v3491, 2.0
        %v3699 = vmul.f32 %v3402, 2.0
        %v3700 = vmul.f32 %v3494, 2.0
        %v3701 = vmul.f32 %v3405, 2.0
        %v3702 = vmul.f32 %v3497, 2.0
        %v3703 = vmul.f32 %v3408, 2.0
        %v3704 = vmul.f32 %v3500, 2.0
        %v3705 = vmul.f32 %v3411, 2.0
        %v3706 = vmul.f32 %v3503, 2.0
        %v3707 = vmul.f32 %v3414, 2.0
        %v3708 = vmul.f32 %v3506, 2.0
        %v3709 = vmul.f32 %v3417, 2.0
        %v3710 = vmul.f32 %v3509, 2.0
        %v3711 = vmul.f32 %v3420, 2.0
        %v3712 = vmul.f32 %v3512, 2.0
        %v3713 = vmul.f32 %v3423, 2.0
        %v3714 = vmul.f32 %v3515, 2.0
        %v3715 = vmul.f32 %v3426, 2.0
        %v3716 = vmul.f32 %v3518, 2.0
        %v3717 = vmul.f32 %v3429, 2.0
        %v3718 = vmul.f32 %v3521, 2.0
        %v3719 = vmul.f32 %v3432, 2.0
        %v3720 = vmul.f32 %v3524, 2.0
        %v3721 = vmul.f32 %v3435, 2.0
        %v3722 = vmul.f32 %v3527, 2.0
        %v3723 = vmul.f32 %v3438, 2.0
        %v3724 = vmul.f32 %v3530, 2.0
        %v3725 = vmul.f32 %v3441, 2.0
        %v3726 = vmul.f32 %v3533, 2.0
        %v3727 = vperm.slane %v3655, 0
        %v3728 = vperm.slane %v3675, 0
        %v3729 = vsub.f32 %v3677, %v3727
        %v3730 = vsub.f32 %v3678, %v3728
        %v3731 = vsub.f32 %v3679, %v3727
        %v3732 = vsub.f32 %v3680, %v3728
        %v3733 = vsub.f32 %v3681, %v3727
        %v3734 = vsub.f32 %v3682, %v3728
        %v3735 = vsub.f32 %v3683, %v3727
        %v3736 = vsub.f32 %v3684, %v3728
        %v3737 = vsub.f32 %v3685, %v3727
        %v3738 = vsub.f32 %v3686, %v3728
        %v3739 = vsub.f32 %v3687, %v3727
        %v3740 = vsub.f32 %v3688, %v3728
        %v3741 = vsub.f32 %v3689, %v3727
        %v3742 = vsub.f32 %v3690, %v3728
        %v3743 = vsub.f32 %v3691, %v3727
        %v3744 = vsub.f32 %v3692, %v3728
        %v3745 = vsub.f32 %v3693, %v3727
        %v3746 = vsub.f32 %v3694, %v3728
        %v3747 = vsub.f32 %v3695, %v3727
        %v3748 = vsub.f32 %v3696, %v3728
        %v3749 = vsub.f32 %v3697, %v3727
        %v3750 = vsub.f32 %v3698, %v3728
        %v3751 = vsub.f32 %v3699, %v3727
        %v3752 = vsub.f32 %v3700, %v3728
        %v3753 = vsub.f32 %v3701, %v3727
        %v3754 = vsub.f32 %v3702, %v3728
        %v3755 = vsub.f32 %v3703, %v3727
        %v3756 = vsub.f32 %v3704, %v3728
        %v3757 = vsub.f32 %v3705, %v3727
        %v3758 = vsub.f32 %v3706, %v3728
        %v3759 = vsub.f32 %v3707, %v3727
        %v3760 = vsub.f32 %v3708, %v3728
        %v3761 = vsub.f32 %v3709, %v3727
        %v3762 = vsub.f32 %v3710, %v3728
        %v3763 = vsub.f32 %v3711, %v3727
        %v3764 = vsub.f32 %v3712, %v3728
        %v3765 = vsub.f32 %v3713, %v3727
        %v3766 = vsub.f32 %v3714, %v3728
        %v3767 = vsub.f32 %v3715, %v3727
        %v3768 = vsub.f32 %v3716, %v3728
        %v3769 = vsub.f32 %v3717, %v3727
        %v3770 = vsub.f32 %v3718, %v3728
        %v3771 = vsub.f32 %v3719, %v3727
        %v3772 = vsub.f32 %v3720, %v3728
        %v3773 = vsub.f32 %v3721, %v3727
        %v3774 = vsub.f32 %v3722, %v3728
        %v3775 = vsub.f32 %v3723, %v3727
        %v3776 = vsub.f32 %v3724, %v3728
        %v3777 = vsub.f32 %v3725, %v3727
        %v3778 = vsub.f32 %v3726, %v3728
        %v3779 = vsel %vm2109, %v3730, -inf
        %v3780 = vmax.f32 %v3729, %v3779
        %3781 = vmax.xlane.f32.xlu0 %v3780
        %v3782 = vpop.xlane.xlu0 %3781
        %v3783 = vsel %vm2109, %v3732, -inf
        %v3784 = vmax.f32 %v3731, %v3783
        %3785 = vmax.xlane.f32.xlu0 %v3784
        %v3786 = vpop.xlane.xlu0 %3785
        %v3787 = vsel %vm2109, %v3734, -inf
        %v3788 = vmax.f32 %v3733, %v3787
        %3789 = vmax.xlane.f32.xlu0 %v3788
        %v3790 = vpop.xlane.xlu0 %3789
        %v3791 = vsel %vm2109, %v3736, -inf
        %v3792 = vmax.f32 %v3735, %v3791
        %3793 = vmax.xlane.f32.xlu0 %v3792
        %v3794 = vpop.xlane.xlu0 %3793
        %v3795 = vsel %vm2109, %v3738, -inf
        %v3796 = vmax.f32 %v3737, %v3795
        %3797 = vmax.xlane.f32.xlu0 %v3796
        %v3798 = vpop.xlane.xlu0 %3797
        %v3799 = vsel %vm2109, %v3740, -inf
        %v3800 = vmax.f32 %v3739, %v3799
        %3801 = vmax.xlane.f32.xlu0 %v3800
        %v3802 = vpop.xlane.xlu0 %3801
        %v3803 = vsel %vm2109, %v3742, -inf
        %v3804 = vmax.f32 %v3741, %v3803
        %3805 = vmax.xlane.f32.xlu0 %v3804
        %v3806 = vpop.xlane.xlu0 %3805
        %v3807 = vsel %vm2109, %v3744, -inf
        %v3808 = vmax.f32 %v3743, %v3807
        %3809 = vmax.xlane.f32.xlu0 %v3808
        %v3810 = vpop.xlane.xlu0 %3809
        %v3811 = vsel %vm2109, %v3746, -inf
        %v3812 = vmax.f32 %v3745, %v3811
        %3813 = vmax.xlane.f32.xlu0 %v3812
        %v3814 = vpop.xlane.xlu0 %3813
        %v3815 = vsel %vm2109, %v3748, -inf
        %v3816 = vmax.f32 %v3747, %v3815
        %3817 = vmax.xlane.f32.xlu0 %v3816
        %v3818 = vpop.xlane.xlu0 %3817
        %v3819 = vsel %vm2109, %v3750, -inf
        %v3820 = vmax.f32 %v3749, %v3819
        %3821 = vmax.xlane.f32.xlu0 %v3820
        %v3822 = vpop.xlane.xlu0 %3821
        %v3823 = vsel %vm2109, %v3752, -inf
        %v3824 = vmax.f32 %v3751, %v3823
        %3825 = vmax.xlane.f32.xlu0 %v3824
        %v3826 = vpop.xlane.xlu0 %3825
        %v3827 = vsel %vm2109, %v3754, -inf
        %v3828 = vmax.f32 %v3753, %v3827
        %3829 = vmax.xlane.f32.xlu0 %v3828
        %v3830 = vpop.xlane.xlu0 %3829
        %v3831 = vsel %vm2109, %v3756, -inf
        %v3832 = vmax.f32 %v3755, %v3831
        %3833 = vmax.xlane.f32.xlu0 %v3832
        %v3834 = vpop.xlane.xlu0 %3833
        %v3835 = vsel %vm2109, %v3758, -inf
        %v3836 = vmax.f32 %v3757, %v3835
        %3837 = vmax.xlane.f32.xlu0 %v3836
        %v3838 = vpop.xlane.xlu0 %3837
        %v3839 = vsel %vm2109, %v3760, -inf
        %v3840 = vmax.f32 %v3759, %v3839
        %3841 = vmax.xlane.f32.xlu0 %v3840
        %v3842 = vpop.xlane.xlu0 %3841
        %v3843 = vsel %vm2109, %v3762, -inf
        %v3844 = vmax.f32 %v3761, %v3843
        %3845 = vmax.xlane.f32.xlu0 %v3844
        %v3846 = vpop.xlane.xlu0 %3845
        %v3847 = vsel %vm2109, %v3764, -inf
        %v3848 = vmax.f32 %v3763, %v3847
        %3849 = vmax.xlane.f32.xlu0 %v3848
        %v3850 = vpop.xlane.xlu0 %3849
        %v3851 = vsel %vm2109, %v3766, -inf
        %v3852 = vmax.f32 %v3765, %v3851
        %3853 = vmax.xlane.f32.xlu0 %v3852
        %v3854 = vpop.xlane.xlu0 %3853
        %v3855 = vsel %vm2109, %v3768, -inf
        %v3856 = vmax.f32 %v3767, %v3855
        %3857 = vmax.xlane.f32.xlu0 %v3856
        %v3858 = vpop.xlane.xlu0 %3857
        %v3859 = vsel %vm2109, %v3770, -inf
        %v3860 = vmax.f32 %v3769, %v3859
        %3861 = vmax.xlane.f32.xlu0 %v3860
        %v3862 = vpop.xlane.xlu0 %3861
        %v3863 = vsel %vm2109, %v3772, -inf
        %v3864 = vmax.f32 %v3771, %v3863
        %3865 = vmax.xlane.f32.xlu0 %v3864
        %v3866 = vpop.xlane.xlu0 %3865
        %v3867 = vsel %vm2109, %v3774, -inf
        %v3868 = vmax.f32 %v3773, %v3867
        %3869 = vmax.xlane.f32.xlu0 %v3868
        %v3870 = vpop.xlane.xlu0 %3869
        %v3871 = vsel %vm2109, %v3776, -inf
        %v3872 = vmax.f32 %v3775, %v3871
        %3873 = vmax.xlane.f32.xlu0 %v3872
        %v3874 = vpop.xlane.xlu0 %3873
        %v3875 = vsel %vm2109, %v3778, -inf
        %v3876 = vmax.f32 %v3777, %v3875
        %3877 = vmax.xlane.f32.xlu0 %v3876
        %v3878 = vpop.xlane.xlu0 %3877
        %v3879 = vsub.f32 %v3729, %v3782
        %v3880 = vsub.f32 %v3730, %v3782
        %v3881 = vsub.f32 %v3731, %v3786
        %v3882 = vsub.f32 %v3732, %v3786
        %v3883 = vsub.f32 %v3733, %v3790
        %v3884 = vsub.f32 %v3734, %v3790
        %v3885 = vsub.f32 %v3735, %v3794
        %v3886 = vsub.f32 %v3736, %v3794
        %v3887 = vsub.f32 %v3737, %v3798
        %v3888 = vsub.f32 %v3738, %v3798
        %v3889 = vsub.f32 %v3739, %v3802
        %v3890 = vsub.f32 %v3740, %v3802
        %v3891 = vsub.f32 %v3741, %v3806
        %v3892 = vsub.f32 %v3742, %v3806
        %v3893 = vsub.f32 %v3743, %v3810
        %v3894 = vsub.f32 %v3744, %v3810
        %v3895 = vsub.f32 %v3745, %v3814
        %v3896 = vsub.f32 %v3746, %v3814
        %v3897 = vsub.f32 %v3747, %v3818
        %v3898 = vsub.f32 %v3748, %v3818
        %v3899 = vsub.f32 %v3749, %v3822
        %v3900 = vsub.f32 %v3750, %v3822
        %v3901 = vsub.f32 %v3751, %v3826
        %v3902 = vsub.f32 %v3752, %v3826
        %v3903 = vsub.f32 %v3753, %v3830
        %v3904 = vsub.f32 %v3754, %v3830
        %v3905 = vsub.f32 %v3755, %v3834
        %v3906 = vsub.f32 %v3756, %v3834
        %v3907 = vsub.f32 %v3757, %v3838
        %v3908 = vsub.f32 %v3758, %v3838
        %v3909 = vsub.f32 %v3759, %v3842
        %v3910 = vsub.f32 %v3760, %v3842
        %v3911 = vsub.f32 %v3761, %v3846
        %v3912 = vsub.f32 %v3762, %v3846
        %v3913 = vsub.f32 %v3763, %v3850
        %v3914 = vsub.f32 %v3764, %v3850
        %v3915 = vsub.f32 %v3765, %v3854
        %v3916 = vsub.f32 %v3766, %v3854
        %v3917 = vsub.f32 %v3767, %v3858
        %v3918 = vsub.f32 %v3768, %v3858
        %v3919 = vsub.f32 %v3769, %v3862
        %v3920 = vsub.f32 %v3770, %v3862
        %v3921 = vsub.f32 %v3771, %v3866
        %v3922 = vsub.f32 %v3772, %v3866
        %v3923 = vsub.f32 %v3773, %v3870
        %v3924 = vsub.f32 %v3774, %v3870
        %v3925 = vsub.f32 %v3775, %v3874
        %v3926 = vsub.f32 %v3776, %v3874
        %v3927 = vsub.f32 %v3777, %v3878
        %v3928 = vsub.f32 %v3778, %v3878
        %v3929 = vmul.f32 %v3879, 1.442695
        %v3930 = vpow.pop %v3929
        %v3931 = vmul.f32 %v3880, 1.442695
        %v3932 = vpow.pop %v3931
        %v3933 = vmul.f32 %v3881, 1.442695
        %v3934 = vpow.pop %v3933
        %v3935 = vmul.f32 %v3882, 1.442695
        %v3936 = vpow.pop %v3935
        %v3937 = vmul.f32 %v3883, 1.442695
        %v3938 = vpow.pop %v3937
        %v3939 = vmul.f32 %v3884, 1.442695
        %v3940 = vpow.pop %v3939
        %v3941 = vmul.f32 %v3885, 1.442695
        %v3942 = vpow.pop %v3941
        %v3943 = vmul.f32 %v3886, 1.442695
        %v3944 = vpow.pop %v3943
        %v3945 = vmul.f32 %v3887, 1.442695
        %v3946 = vpow.pop %v3945
        %v3947 = vmul.f32 %v3888, 1.442695
        %v3948 = vpow.pop %v3947
        %v3949 = vmul.f32 %v3889, 1.442695
        %v3950 = vpow.pop %v3949
        %v3951 = vmul.f32 %v3890, 1.442695
        %v3952 = vpow.pop %v3951
        %v3953 = vmul.f32 %v3891, 1.442695
        %v3954 = vpow.pop %v3953
        %v3955 = vmul.f32 %v3892, 1.442695
        %v3956 = vpow.pop %v3955
        %v3957 = vmul.f32 %v3893, 1.442695
        %v3958 = vpow.pop %v3957
        %v3959 = vmul.f32 %v3894, 1.442695
        %v3960 = vpow.pop %v3959
        %v3961 = vmul.f32 %v3895, 1.442695
        %v3962 = vpow.pop %v3961
        %v3963 = vmul.f32 %v3896, 1.442695
        %v3964 = vpow.pop %v3963
        %v3965 = vmul.f32 %v3897, 1.442695
        %v3966 = vpow.pop %v3965
        %v3967 = vmul.f32 %v3898, 1.442695
        %v3968 = vpow.pop %v3967
        %v3969 = vmul.f32 %v3899, 1.442695
        %v3970 = vpow.pop %v3969
        %v3971 = vmul.f32 %v3900, 1.442695
        %v3972 = vpow.pop %v3971
        %v3973 = vmul.f32 %v3901, 1.442695
        %v3974 = vpow.pop %v3973
        %v3975 = vmul.f32 %v3902, 1.442695
        %v3976 = vpow.pop %v3975
        %v3977 = vmul.f32 %v3903, 1.442695
        %v3978 = vpow.pop %v3977
        %v3979 = vmul.f32 %v3904, 1.442695
        %v3980 = vpow.pop %v3979
        %v3981 = vmul.f32 %v3905, 1.442695
        %v3982 = vpow.pop %v3981
        %v3983 = vmul.f32 %v3906, 1.442695
        %v3984 = vpow.pop %v3983
        %v3985 = vmul.f32 %v3907, 1.442695
        %v3986 = vpow.pop %v3985
        %v3987 = vmul.f32 %v3908, 1.442695
        %v3988 = vpow.pop %v3987
        %v3989 = vmul.f32 %v3909, 1.442695
        %v3990 = vpow.pop %v3989
        %v3991 = vmul.f32 %v3910, 1.442695
        %v3992 = vpow.pop %v3991
        %v3993 = vmul.f32 %v3911, 1.442695
        %v3994 = vpow.pop %v3993
        %v3995 = vmul.f32 %v3912, 1.442695
        %v3996 = vpow.pop %v3995
        %v3997 = vmul.f32 %v3913, 1.442695
        %v3998 = vpow.pop %v3997
        %v3999 = vmul.f32 %v3914, 1.442695
        %v4000 = vpow.pop %v3999
        %v4001 = vmul.f32 %v3915, 1.442695
        %v4002 = vpow.pop %v4001
        %v4003 = vmul.f32 %v3916, 1.442695
        %v4004 = vpow.pop %v4003
        %v4005 = vmul.f32 %v3917, 1.442695
        %v4006 = vpow.pop %v4005
        %v4007 = vmul.f32 %v3918, 1.442695
        %v4008 = vpow.pop %v4007
        %v4009 = vmul.f32 %v3919, 1.442695
        %v4010 = vpow.pop %v4009
        %v4011 = vmul.f32 %v3920, 1.442695
        %v4012 = vpow.pop %v4011
        %v4013 = vmul.f32 %v3921, 1.442695
        %v4014 = vpow.pop %v4013
        %v4015 = vmul.f32 %v3922, 1.442695
        %v4016 = vpow.pop %v4015
        %v4017 = vmul.f32 %v3923, 1.442695
        %v4018 = vpow.pop %v4017
        %v4019 = vmul.f32 %v3924, 1.442695
        %v4020 = vpow.pop %v4019
        %v4021 = vmul.f32 %v3925, 1.442695
        %v4022 = vpow.pop %v4021
        %v4023 = vmul.f32 %v3926, 1.442695
        %v4024 = vpow.pop %v4023
        %v4025 = vmul.f32 %v3927, 1.442695
        %v4026 = vpow.pop %v4025
        %v4027 = vmul.f32 %v3928, 1.442695
        %v4028 = vpow.pop %v4027
        %v4029 = vsel %vm2109, %v3932, 0.0
        %v4030 = vadd.f32 %v3930, %v4029
        %4031 = vadd.xlane.f32.xlu0 %v4030
        %v4032 = vpop.xlane.xlu0 %4031
        %v4033 = vsel %vm2109, %v3936, 0.0
        %v4034 = vadd.f32 %v3934, %v4033
        %4035 = vadd.xlane.f32.xlu0 %v4034
        %v4036 = vpop.xlane.xlu0 %4035
        %v4037 = vsel %vm2109, %v3940, 0.0
        %v4038 = vadd.f32 %v3938, %v4037
        %4039 = vadd.xlane.f32.xlu0 %v4038
        %v4040 = vpop.xlane.xlu0 %4039
        %v4041 = vsel %vm2109, %v3944, 0.0
        %v4042 = vadd.f32 %v3942, %v4041
        %4043 = vadd.xlane.f32.xlu0 %v4042
        %v4044 = vpop.xlane.xlu0 %4043
        %v4045 = vsel %vm2109, %v3948, 0.0
        %v4046 = vadd.f32 %v3946, %v4045
        %4047 = vadd.xlane.f32.xlu0 %v4046
        %v4048 = vpop.xlane.xlu0 %4047
        %v4049 = vsel %vm2109, %v3952, 0.0
        %v4050 = vadd.f32 %v3950, %v4049
        %4051 = vadd.xlane.f32.xlu0 %v4050
        %v4052 = vpop.xlane.xlu0 %4051
        %v4053 = vsel %vm2109, %v3956, 0.0
        %v4054 = vadd.f32 %v3954, %v4053
        %4055 = vadd.xlane.f32.xlu0 %v4054
        %v4056 = vpop.xlane.xlu0 %4055
        %v4057 = vsel %vm2109, %v3960, 0.0
        %v4058 = vadd.f32 %v3958, %v4057
        %4059 = vadd.xlane.f32.xlu0 %v4058
        %v4060 = vpop.xlane.xlu0 %4059
        %v4061 = vsel %vm2109, %v3964, 0.0
        %v4062 = vadd.f32 %v3962, %v4061
        %4063 = vadd.xlane.f32.xlu0 %v4062
        %v4064 = vpop.xlane.xlu0 %4063
        %v4065 = vsel %vm2109, %v3968, 0.0
        %v4066 = vadd.f32 %v3966, %v4065
        %4067 = vadd.xlane.f32.xlu0 %v4066
        %v4068 = vpop.xlane.xlu0 %4067
        %v4069 = vsel %vm2109, %v3972, 0.0
        %v4070 = vadd.f32 %v3970, %v4069
        %4071 = vadd.xlane.f32.xlu0 %v4070
        %v4072 = vpop.xlane.xlu0 %4071
        %v4073 = vsel %vm2109, %v3976, 0.0
        %v4074 = vadd.f32 %v3974, %v4073
        %4075 = vadd.xlane.f32.xlu0 %v4074
        %v4076 = vpop.xlane.xlu0 %4075
        %v4077 = vsel %vm2109, %v3980, 0.0
        %v4078 = vadd.f32 %v3978, %v4077
        %4079 = vadd.xlane.f32.xlu0 %v4078
        %v4080 = vpop.xlane.xlu0 %4079
        %v4081 = vsel %vm2109, %v3984, 0.0
        %v4082 = vadd.f32 %v3982, %v4081
        %4083 = vadd.xlane.f32.xlu0 %v4082
        %v4084 = vpop.xlane.xlu0 %4083
        %v4085 = vsel %vm2109, %v3988, 0.0
        %v4086 = vadd.f32 %v3986, %v4085
        %4087 = vadd.xlane.f32.xlu0 %v4086
        %v4088 = vpop.xlane.xlu0 %4087
        %v4089 = vsel %vm2109, %v3992, 0.0
        %v4090 = vadd.f32 %v3990, %v4089
        %4091 = vadd.xlane.f32.xlu0 %v4090
        %v4092 = vpop.xlane.xlu0 %4091
        %v4093 = vsel %vm2109, %v3996, 0.0
        %v4094 = vadd.f32 %v3994, %v4093
        %4095 = vadd.xlane.f32.xlu0 %v4094
        %v4096 = vpop.xlane.xlu0 %4095
        %v4097 = vsel %vm2109, %v4000, 0.0
        %v4098 = vadd.f32 %v3998, %v4097
        %4099 = vadd.xlane.f32.xlu0 %v4098
        %v4100 = vpop.xlane.xlu0 %4099
        %v4101 = vsel %vm2109, %v4004, 0.0
        %v4102 = vadd.f32 %v4002, %v4101
        %4103 = vadd.xlane.f32.xlu0 %v4102
        %v4104 = vpop.xlane.xlu0 %4103
        %v4105 = vsel %vm2109, %v4008, 0.0
        %v4106 = vadd.f32 %v4006, %v4105
        %4107 = vadd.xlane.f32.xlu0 %v4106
        %v4108 = vpop.xlane.xlu0 %4107
        %v4109 = vsel %vm2109, %v4012, 0.0
        %v4110 = vadd.f32 %v4010, %v4109
        %4111 = vadd.xlane.f32.xlu0 %v4110
        %v4112 = vpop.xlane.xlu0 %4111
        %v4113 = vsel %vm2109, %v4016, 0.0
        %v4114 = vadd.f32 %v4014, %v4113
        %4115 = vadd.xlane.f32.xlu0 %v4114
        %v4116 = vpop.xlane.xlu0 %4115
        %v4117 = vsel %vm2109, %v4020, 0.0
        %v4118 = vadd.f32 %v4018, %v4117
        %4119 = vadd.xlane.f32.xlu0 %v4118
        %v4120 = vpop.xlane.xlu0 %4119
        %v4121 = vsel %vm2109, %v4024, 0.0
        %v4122 = vadd.f32 %v4022, %v4121
        %4123 = vadd.xlane.f32.xlu0 %v4122
        %v4124 = vpop.xlane.xlu0 %4123
        %v4125 = vsel %vm2109, %v4028, 0.0
        %v4126 = vadd.f32 %v4026, %v4125
        %4127 = vadd.xlane.f32.xlu0 %v4126
        %v4128 = vpop.xlane.xlu0 %4127
        %v4129 = vrcp.pop %v4032
        %v4130 = vmul.f32 %v4032, %v4129
        %v4131 = vsub.f32 1.0, %v4130
        %v4132 = vmul.f32 %v4129, %v4131
        %v4133 = vadd.f32 %v4129, %v4132
        %vm4134 = vweird.f32 %v4032
        %vm4135 = vweird.f32 %v4129
        %vm4136 = vmor %vm4134, %vm4135
        %v4137 = vsel %vm4136, %v4129, %v4133
        %v4138 = vand.u32 2147483647, %v4032
        %vm4139 = vcmp.eq.f32.partialorder %v4138, 8.507059e+37
        %v4140 = vand.u32 %v4032, 2147483648
        %v4141 = vor.u32 1.1754944e-38, %v4140
        %v4142 = vsel %vm4139, %v4141, %v4137
        %v4143 = vmul.f32 %v3930, %v4142
        %v4144 = vmul.f32 %v3932, %v4142
        %v4145 = vrcp.pop %v4036
        %v4146 = vmul.f32 %v4036, %v4145
        %v4147 = vsub.f32 1.0, %v4146
        %v4148 = vmul.f32 %v4145, %v4147
        %v4149 = vadd.f32 %v4145, %v4148
        %vm4150 = vweird.f32 %v4036
        %vm4151 = vweird.f32 %v4145
        %vm4152 = vmor %vm4150, %vm4151
        %v4153 = vsel %vm4152, %v4145, %v4149
        %v4154 = vand.u32 2147483647, %v4036
        %vm4155 = vcmp.eq.f32.partialorder %v4154, 8.507059e+37
        %v4156 = vand.u32 %v4036, 2147483648
        %v4157 = vor.u32 1.1754944e-38, %v4156
        %v4158 = vsel %vm4155, %v4157, %v4153
        %v4159 = vmul.f32 %v3934, %v4158
        %v4160 = vmul.f32 %v3936, %v4158
        %v4161 = vrcp.pop %v4040
        %v4162 = vmul.f32 %v4040, %v4161
        %v4163 = vsub.f32 1.0, %v4162
        %v4164 = vmul.f32 %v4161, %v4163
        %v4165 = vadd.f32 %v4161, %v4164
        %vm4166 = vweird.f32 %v4040
        %vm4167 = vweird.f32 %v4161
        %vm4168 = vmor %vm4166, %vm4167
        %v4169 = vsel %vm4168, %v4161, %v4165
        %v4170 = vand.u32 2147483647, %v4040
        %vm4171 = vcmp.eq.f32.partialorder %v4170, 8.507059e+37
        %v4172 = vand.u32 %v4040, 2147483648
        %v4173 = vor.u32 1.1754944e-38, %v4172
        %v4174 = vsel %vm4171, %v4173, %v4169
        %v4175 = vmul.f32 %v3938, %v4174
        %v4176 = vmul.f32 %v3940, %v4174
        %v4177 = vrcp.pop %v4044
        %v4178 = vmul.f32 %v4044, %v4177
        %v4179 = vsub.f32 1.0, %v4178
        %v4180 = vmul.f32 %v4177, %v4179
        %v4181 = vadd.f32 %v4177, %v4180
        %vm4182 = vweird.f32 %v4044
        %vm4183 = vweird.f32 %v4177
        %vm4184 = vmor %vm4182, %vm4183
        %v4185 = vsel %vm4184, %v4177, %v4181
        %v4186 = vand.u32 2147483647, %v4044
        %vm4187 = vcmp.eq.f32.partialorder %v4186, 8.507059e+37
        %v4188 = vand.u32 %v4044, 2147483648
        %v4189 = vor.u32 1.1754944e-38, %v4188
        %v4190 = vsel %vm4187, %v4189, %v4185
        %v4191 = vmul.f32 %v3942, %v4190
        %v4192 = vmul.f32 %v3944, %v4190
        %v4193 = vrcp.pop %v4048
        %v4194 = vmul.f32 %v4048, %v4193
        %v4195 = vsub.f32 1.0, %v4194
        %v4196 = vmul.f32 %v4193, %v4195
        %v4197 = vadd.f32 %v4193, %v4196
        %vm4198 = vweird.f32 %v4048
        %vm4199 = vweird.f32 %v4193
        %vm4200 = vmor %vm4198, %vm4199
        %v4201 = vsel %vm4200, %v4193, %v4197
        %v4202 = vand.u32 2147483647, %v4048
        %vm4203 = vcmp.eq.f32.partialorder %v4202, 8.507059e+37
        %v4204 = vand.u32 %v4048, 2147483648
        %v4205 = vor.u32 1.1754944e-38, %v4204
        %v4206 = vsel %vm4203, %v4205, %v4201
        %v4207 = vmul.f32 %v3946, %v4206
        %v4208 = vmul.f32 %v3948, %v4206
        %v4209 = vrcp.pop %v4052
        %v4210 = vmul.f32 %v4052, %v4209
        %v4211 = vsub.f32 1.0, %v4210
        %v4212 = vmul.f32 %v4209, %v4211
        %v4213 = vadd.f32 %v4209, %v4212
        %vm4214 = vweird.f32 %v4052
        %vm4215 = vweird.f32 %v4209
        %vm4216 = vmor %vm4214, %vm4215
        %v4217 = vsel %vm4216, %v4209, %v4213
        %v4218 = vand.u32 2147483647, %v4052
        %vm4219 = vcmp.eq.f32.partialorder %v4218, 8.507059e+37
        %v4220 = vand.u32 %v4052, 2147483648
        %v4221 = vor.u32 1.1754944e-38, %v4220
        %v4222 = vsel %vm4219, %v4221, %v4217
        %v4223 = vmul.f32 %v3950, %v4222
        %v4224 = vmul.f32 %v3952, %v4222
        %v4225 = vrcp.pop %v4056
        %v4226 = vmul.f32 %v4056, %v4225
        %v4227 = vsub.f32 1.0, %v4226
        %v4228 = vmul.f32 %v4225, %v4227
        %v4229 = vadd.f32 %v4225, %v4228
        %vm4230 = vweird.f32 %v4056
        %vm4231 = vweird.f32 %v4225
        %vm4232 = vmor %vm4230, %vm4231
        %v4233 = vsel %vm4232, %v4225, %v4229
        %v4234 = vand.u32 2147483647, %v4056
        %vm4235 = vcmp.eq.f32.partialorder %v4234, 8.507059e+37
        %v4236 = vand.u32 %v4056, 2147483648
        %v4237 = vor.u32 1.1754944e-38, %v4236
        %v4238 = vsel %vm4235, %v4237, %v4233
        %v4239 = vmul.f32 %v3954, %v4238
        %v4240 = vmul.f32 %v3956, %v4238
        %v4241 = vrcp.pop %v4060
        %v4242 = vmul.f32 %v4060, %v4241
        %v4243 = vsub.f32 1.0, %v4242
        %v4244 = vmul.f32 %v4241, %v4243
        %v4245 = vadd.f32 %v4241, %v4244
        %vm4246 = vweird.f32 %v4060
        %vm4247 = vweird.f32 %v4241
        %vm4248 = vmor %vm4246, %vm4247
        %v4249 = vsel %vm4248, %v4241, %v4245
        %v4250 = vand.u32 2147483647, %v4060
        %vm4251 = vcmp.eq.f32.partialorder %v4250, 8.507059e+37
        %v4252 = vand.u32 %v4060, 2147483648
        %v4253 = vor.u32 1.1754944e-38, %v4252
        %v4254 = vsel %vm4251, %v4253, %v4249
        %v4255 = vmul.f32 %v3958, %v4254
        %v4256 = vmul.f32 %v3960, %v4254
        %v4257 = vrcp.pop %v4064
        %v4258 = vmul.f32 %v4064, %v4257
        %v4259 = vsub.f32 1.0, %v4258
        %v4260 = vmul.f32 %v4257, %v4259
        %v4261 = vadd.f32 %v4257, %v4260
        %vm4262 = vweird.f32 %v4064
        %vm4263 = vweird.f32 %v4257
        %vm4264 = vmor %vm4262, %vm4263
        %v4265 = vsel %vm4264, %v4257, %v4261
        %v4266 = vand.u32 2147483647, %v4064
        %vm4267 = vcmp.eq.f32.partialorder %v4266, 8.507059e+37
        %v4268 = vand.u32 %v4064, 2147483648
        %v4269 = vor.u32 1.1754944e-38, %v4268
        %v4270 = vsel %vm4267, %v4269, %v4265
        %v4271 = vmul.f32 %v3962, %v4270
        %v4272 = vmul.f32 %v3964, %v4270
        %v4273 = vrcp.pop %v4068
        %v4274 = vmul.f32 %v4068, %v4273
        %v4275 = vsub.f32 1.0, %v4274
        %v4276 = vmul.f32 %v4273, %v4275
        %v4277 = vadd.f32 %v4273, %v4276
        %vm4278 = vweird.f32 %v4068
        %vm4279 = vweird.f32 %v4273
        %vm4280 = vmor %vm4278, %vm4279
        %v4281 = vsel %vm4280, %v4273, %v4277
        %v4282 = vand.u32 2147483647, %v4068
        %vm4283 = vcmp.eq.f32.partialorder %v4282, 8.507059e+37
        %v4284 = vand.u32 %v4068, 2147483648
        %v4285 = vor.u32 1.1754944e-38, %v4284
        %v4286 = vsel %vm4283, %v4285, %v4281
        %v4287 = vmul.f32 %v3966, %v4286
        %v4288 = vmul.f32 %v3968, %v4286
        %v4289 = vrcp.pop %v4072
        %v4290 = vmul.f32 %v4072, %v4289
        %v4291 = vsub.f32 1.0, %v4290
        %v4292 = vmul.f32 %v4289, %v4291
        %v4293 = vadd.f32 %v4289, %v4292
        %vm4294 = vweird.f32 %v4072
        %vm4295 = vweird.f32 %v4289
        %vm4296 = vmor %vm4294, %vm4295
        %v4297 = vsel %vm4296, %v4289, %v4293
        %v4298 = vand.u32 2147483647, %v4072
        %vm4299 = vcmp.eq.f32.partialorder %v4298, 8.507059e+37
        %v4300 = vand.u32 %v4072, 2147483648
        %v4301 = vor.u32 1.1754944e-38, %v4300
        %v4302 = vsel %vm4299, %v4301, %v4297
        %v4303 = vmul.f32 %v3970, %v4302
        %v4304 = vmul.f32 %v3972, %v4302
        %v4305 = vrcp.pop %v4076
        %v4306 = vmul.f32 %v4076, %v4305
        %v4307 = vsub.f32 1.0, %v4306
        %v4308 = vmul.f32 %v4305, %v4307
        %v4309 = vadd.f32 %v4305, %v4308
        %vm4310 = vweird.f32 %v4076
        %vm4311 = vweird.f32 %v4305
        %vm4312 = vmor %vm4310, %vm4311
        %v4313 = vsel %vm4312, %v4305, %v4309
        %v4314 = vand.u32 2147483647, %v4076
        %vm4315 = vcmp.eq.f32.partialorder %v4314, 8.507059e+37
        %v4316 = vand.u32 %v4076, 2147483648
        %v4317 = vor.u32 1.1754944e-38, %v4316
        %v4318 = vsel %vm4315, %v4317, %v4313
        %v4319 = vmul.f32 %v3974, %v4318
        %v4320 = vmul.f32 %v3976, %v4318
        %v4321 = vrcp.pop %v4080
        %v4322 = vmul.f32 %v4080, %v4321
        %v4323 = vsub.f32 1.0, %v4322
        %v4324 = vmul.f32 %v4321, %v4323
        %v4325 = vadd.f32 %v4321, %v4324
        %vm4326 = vweird.f32 %v4080
        %vm4327 = vweird.f32 %v4321
        %vm4328 = vmor %vm4326, %vm4327
        %v4329 = vsel %vm4328, %v4321, %v4325
        %v4330 = vand.u32 2147483647, %v4080
        %vm4331 = vcmp.eq.f32.partialorder %v4330, 8.507059e+37
        %v4332 = vand.u32 %v4080, 2147483648
        %v4333 = vor.u32 1.1754944e-38, %v4332
        %v4334 = vsel %vm4331, %v4333, %v4329
        %v4335 = vmul.f32 %v3978, %v4334
        %v4336 = vmul.f32 %v3980, %v4334
        %v4337 = vrcp.pop %v4084
        %v4338 = vmul.f32 %v4084, %v4337
        %v4339 = vsub.f32 1.0, %v4338
        %v4340 = vmul.f32 %v4337, %v4339
        %v4341 = vadd.f32 %v4337, %v4340
        %vm4342 = vweird.f32 %v4084
        %vm4343 = vweird.f32 %v4337
        %vm4344 = vmor %vm4342, %vm4343
        %v4345 = vsel %vm4344, %v4337, %v4341
        %v4346 = vand.u32 2147483647, %v4084
        %vm4347 = vcmp.eq.f32.partialorder %v4346, 8.507059e+37
        %v4348 = vand.u32 %v4084, 2147483648
        %v4349 = vor.u32 1.1754944e-38, %v4348
        %v4350 = vsel %vm4347, %v4349, %v4345
        %v4351 = vmul.f32 %v3982, %v4350
        %v4352 = vmul.f32 %v3984, %v4350
        %v4353 = vrcp.pop %v4088
        %v4354 = vmul.f32 %v4088, %v4353
        %v4355 = vsub.f32 1.0, %v4354
        %v4356 = vmul.f32 %v4353, %v4355
        %v4357 = vadd.f32 %v4353, %v4356
        %vm4358 = vweird.f32 %v4088
        %vm4359 = vweird.f32 %v4353
        %vm4360 = vmor %vm4358, %vm4359
        %v4361 = vsel %vm4360, %v4353, %v4357
        %v4362 = vand.u32 2147483647, %v4088
        %vm4363 = vcmp.eq.f32.partialorder %v4362, 8.507059e+37
        %v4364 = vand.u32 %v4088, 2147483648
        %v4365 = vor.u32 1.1754944e-38, %v4364
        %v4366 = vsel %vm4363, %v4365, %v4361
        %v4367 = vmul.f32 %v3986, %v4366
        %v4368 = vmul.f32 %v3988, %v4366
        %v4369 = vrcp.pop %v4092
        %v4370 = vmul.f32 %v4092, %v4369
        %v4371 = vsub.f32 1.0, %v4370
        %v4372 = vmul.f32 %v4369, %v4371
        %v4373 = vadd.f32 %v4369, %v4372
        %vm4374 = vweird.f32 %v4092
        %vm4375 = vweird.f32 %v4369
        %vm4376 = vmor %vm4374, %vm4375
        %v4377 = vsel %vm4376, %v4369, %v4373
        %v4378 = vand.u32 2147483647, %v4092
        %vm4379 = vcmp.eq.f32.partialorder %v4378, 8.507059e+37
        %v4380 = vand.u32 %v4092, 2147483648
        %v4381 = vor.u32 1.1754944e-38, %v4380
        %v4382 = vsel %vm4379, %v4381, %v4377
        %v4383 = vmul.f32 %v3990, %v4382
        %v4384 = vmul.f32 %v3992, %v4382
        %v4385 = vrcp.pop %v4096
        %v4386 = vmul.f32 %v4096, %v4385
        %v4387 = vsub.f32 1.0, %v4386
        %v4388 = vmul.f32 %v4385, %v4387
        %v4389 = vadd.f32 %v4385, %v4388
        %vm4390 = vweird.f32 %v4096
        %vm4391 = vweird.f32 %v4385
        %vm4392 = vmor %vm4390, %vm4391
        %v4393 = vsel %vm4392, %v4385, %v4389
        %v4394 = vand.u32 2147483647, %v4096
        %vm4395 = vcmp.eq.f32.partialorder %v4394, 8.507059e+37
        %v4396 = vand.u32 %v4096, 2147483648
        %v4397 = vor.u32 1.1754944e-38, %v4396
        %v4398 = vsel %vm4395, %v4397, %v4393
        %v4399 = vmul.f32 %v3994, %v4398
        %v4400 = vmul.f32 %v3996, %v4398
        %v4401 = vrcp.pop %v4100
        %v4402 = vmul.f32 %v4100, %v4401
        %v4403 = vsub.f32 1.0, %v4402
        %v4404 = vmul.f32 %v4401, %v4403
        %v4405 = vadd.f32 %v4401, %v4404
        %vm4406 = vweird.f32 %v4100
        %vm4407 = vweird.f32 %v4401
        %vm4408 = vmor %vm4406, %vm4407
        %v4409 = vsel %vm4408, %v4401, %v4405
        %v4410 = vand.u32 2147483647, %v4100
        %vm4411 = vcmp.eq.f32.partialorder %v4410, 8.507059e+37
        %v4412 = vand.u32 %v4100, 2147483648
        %v4413 = vor.u32 1.1754944e-38, %v4412
        %v4414 = vsel %vm4411, %v4413, %v4409
        %v4415 = vmul.f32 %v3998, %v4414
        %v4416 = vmul.f32 %v4000, %v4414
        %v4417 = vrcp.pop %v4104
        %v4418 = vmul.f32 %v4104, %v4417
        %v4419 = vsub.f32 1.0, %v4418
        %v4420 = vmul.f32 %v4417, %v4419
        %v4421 = vadd.f32 %v4417, %v4420
        %vm4422 = vweird.f32 %v4104
        %vm4423 = vweird.f32 %v4417
        %vm4424 = vmor %vm4422, %vm4423
        %v4425 = vsel %vm4424, %v4417, %v4421
        %v4426 = vand.u32 2147483647, %v4104
        %vm4427 = vcmp.eq.f32.partialorder %v4426, 8.507059e+37
        %v4428 = vand.u32 %v4104, 2147483648
        %v4429 = vor.u32 1.1754944e-38, %v4428
        %v4430 = vsel %vm4427, %v4429, %v4425
        %v4431 = vmul.f32 %v4002, %v4430
        %v4432 = vmul.f32 %v4004, %v4430
        %v4433 = vrcp.pop %v4108
        %v4434 = vmul.f32 %v4108, %v4433
        %v4435 = vsub.f32 1.0, %v4434
        %v4436 = vmul.f32 %v4433, %v4435
        %v4437 = vadd.f32 %v4433, %v4436
        %vm4438 = vweird.f32 %v4108
        %vm4439 = vweird.f32 %v4433
        %vm4440 = vmor %vm4438, %vm4439
        %v4441 = vsel %vm4440, %v4433, %v4437
        %v4442 = vand.u32 2147483647, %v4108
        %vm4443 = vcmp.eq.f32.partialorder %v4442, 8.507059e+37
        %v4444 = vand.u32 %v4108, 2147483648
        %v4445 = vor.u32 1.1754944e-38, %v4444
        %v4446 = vsel %vm4443, %v4445, %v4441
        %v4447 = vmul.f32 %v4006, %v4446
        %v4448 = vmul.f32 %v4008, %v4446
        %v4449 = vrcp.pop %v4112
        %v4450 = vmul.f32 %v4112, %v4449
        %v4451 = vsub.f32 1.0, %v4450
        %v4452 = vmul.f32 %v4449, %v4451
        %v4453 = vadd.f32 %v4449, %v4452
        %vm4454 = vweird.f32 %v4112
        %vm4455 = vweird.f32 %v4449
        %vm4456 = vmor %vm4454, %vm4455
        %v4457 = vsel %vm4456, %v4449, %v4453
        %v4458 = vand.u32 2147483647, %v4112
        %vm4459 = vcmp.eq.f32.partialorder %v4458, 8.507059e+37
        %v4460 = vand.u32 %v4112, 2147483648
        %v4461 = vor.u32 1.1754944e-38, %v4460
        %v4462 = vsel %vm4459, %v4461, %v4457
        %v4463 = vmul.f32 %v4010, %v4462
        %v4464 = vmul.f32 %v4012, %v4462
        %v4465 = vrcp.pop %v4116
        %v4466 = vmul.f32 %v4116, %v4465
        %v4467 = vsub.f32 1.0, %v4466
        %v4468 = vmul.f32 %v4465, %v4467
        %v4469 = vadd.f32 %v4465, %v4468
        %vm4470 = vweird.f32 %v4116
        %vm4471 = vweird.f32 %v4465
        %vm4472 = vmor %vm4470, %vm4471
        %v4473 = vsel %vm4472, %v4465, %v4469
        %v4474 = vand.u32 2147483647, %v4116
        %vm4475 = vcmp.eq.f32.partialorder %v4474, 8.507059e+37
        %v4476 = vand.u32 %v4116, 2147483648
        %v4477 = vor.u32 1.1754944e-38, %v4476
        %v4478 = vsel %vm4475, %v4477, %v4473
        %v4479 = vmul.f32 %v4014, %v4478
        %v4480 = vmul.f32 %v4016, %v4478
        %v4481 = vrcp.pop %v4120
        %v4482 = vmul.f32 %v4120, %v4481
        %v4483 = vsub.f32 1.0, %v4482
        %v4484 = vmul.f32 %v4481, %v4483
        %v4485 = vadd.f32 %v4481, %v4484
        %vm4486 = vweird.f32 %v4120
        %vm4487 = vweird.f32 %v4481
        %vm4488 = vmor %vm4486, %vm4487
        %v4489 = vsel %vm4488, %v4481, %v4485
        %v4490 = vand.u32 2147483647, %v4120
        %vm4491 = vcmp.eq.f32.partialorder %v4490, 8.507059e+37
        %v4492 = vand.u32 %v4120, 2147483648
        %v4493 = vor.u32 1.1754944e-38, %v4492
        %v4494 = vsel %vm4491, %v4493, %v4489
        %v4495 = vmul.f32 %v4018, %v4494
        %v4496 = vmul.f32 %v4020, %v4494
        %v4497 = vrcp.pop %v4124
        %v4498 = vmul.f32 %v4124, %v4497
        %v4499 = vsub.f32 1.0, %v4498
        %v4500 = vmul.f32 %v4497, %v4499
        %v4501 = vadd.f32 %v4497, %v4500
        %vm4502 = vweird.f32 %v4124
        %vm4503 = vweird.f32 %v4497
        %vm4504 = vmor %vm4502, %vm4503
        %v4505 = vsel %vm4504, %v4497, %v4501
        %v4506 = vand.u32 2147483647, %v4124
        %vm4507 = vcmp.eq.f32.partialorder %v4506, 8.507059e+37
        %v4508 = vand.u32 %v4124, 2147483648
        %v4509 = vor.u32 1.1754944e-38, %v4508
        %v4510 = vsel %vm4507, %v4509, %v4505
        %v4511 = vmul.f32 %v4022, %v4510
        %v4512 = vmul.f32 %v4024, %v4510
        %v4513 = vrcp.pop %v4128
        %v4514 = vmul.f32 %v4128, %v4513
        %v4515 = vsub.f32 1.0, %v4514
        %v4516 = vmul.f32 %v4513, %v4515
        %v4517 = vadd.f32 %v4513, %v4516
        %vm4518 = vweird.f32 %v4128
        %vm4519 = vweird.f32 %v4513
        %vm4520 = vmor %vm4518, %vm4519
        %v4521 = vsel %vm4520, %v4513, %v4517
        %v4522 = vand.u32 2147483647, %v4128
        %vm4523 = vcmp.eq.f32.partialorder %v4522, 8.507059e+37
        %v4524 = vand.u32 %v4128, 2147483648
        %v4525 = vor.u32 1.1754944e-38, %v4524
        %v4526 = vsel %vm4523, %v4525, %v4521
        %v4527 = vmul.f32 %v4026, %v4526
        %v4528 = vmul.f32 %v4028, %v4526
        %v4529 = vpack.c.bf16 %v3248, %v3247
        %v4530 = vpack.c.bf16 %v3250, %v3249
        %v4531 = vpack.c.bf16 %v3252, %v3251
        %v4532 = vpack.c.bf16 %v3254, %v3253
        %v4533 = vpack.c.bf16 %v3256, %v3255
        %v4534 = vpack.c.bf16 %v3258, %v3257
        %v4535 = vpack.c.bf16 %v3260, %v3259
        %v4536 = vpack.c.bf16 %v3262, %v3261
        %v4537 = vpack.c.bf16 %v3264, %v3263
        %v4538 = vpack.c.bf16 %v3266, %v3265
        %v4539 = vpack.c.bf16 %v3268, %v3267
        %v4540 = vpack.c.bf16 %v3270, %v3269
        %v4541 = vpack.c.bf16 %v3271, %v3271
        %v4545 = vunpack.c.l.b16 %v3272
        %v4546 = vunpack.c.l.b16 %v3273
        %v4547 = vunpack.c.l.b16 %v3274
        %v4548 = vpack.c.b16 %v4546, %v4545
        %v4549 = vpack.c.b16 %v4547, %v4547
        %v4552 = vsel %vm3275, %v4529, 0
        %v4555 = vsel %vm3275, %v4530, 0
        %v4558 = vsel %vm3275, %v4531, 0
        %v4561 = vsel %vm3275, %v4532, 0
        %v4564 = vsel %vm3275, %v4533, 0
        %v4567 = vsel %vm3275, %v4534, 0
        %v4570 = vsel %vm3275, %v4535, 0
        %v4573 = vsel %vm3275, %v4536, 0
        %v4576 = vsel %vm3275, %v4537, 0
        %v4579 = vsel %vm3275, %v4538, 0
        %v4582 = vsel %vm3275, %v4539, 0
        %v4585 = vsel %vm3275, %v4540, 0
        %v4588 = vsel %vm3275, %v4541, 0
        %vm4590 = vcmask 1041408
        %v4592 = vsel %vm4590, %v4549, 0
        %4594 = vmatpush.bf16.msra.mxu0 0
        %4595 = vmatpush.bf16.msra.mxu0 0
        %4596 = vmatpush.bf16.msra.mxu0 0
        %4597 = vmatpush.bf16.msra.mxu0 0
        %4598 = vmatpush.bf16.msra.mxu0 0
        %4599 = vmatpush.bf16.msra.mxu0 0
        %4600 = vmatpush.bf16.msra.mxu0 %v4592
        %4601 = vmatpush.bf16.msra.mxu0 %v4548
        %4602 = vmatmul.bf16.gmra.mxu0 %v4552
        %v4603 = vpop.f32.mrf.mxu0
        %v4604 = vadd.f32 0.0, %v4603
        %v4605 = vpop.f32.mrf.mxu0
        %v4606 = vadd.f32 0.0, %v4605
        %4607 = vmatmul.bf16.gmra.mxu0 %v4555
        %v4608 = vpop.f32.mrf.mxu0
        %v4609 = vadd.f32 0.0, %v4608
        %v4610 = vpop.f32.mrf.mxu0
        %v4611 = vadd.f32 0.0, %v4610
        %4612 = vmatmul.bf16.gmra.mxu0 %v4558
        %v4613 = vpop.f32.mrf.mxu0
        %v4614 = vadd.f32 0.0, %v4613
        %v4615 = vpop.f32.mrf.mxu0
        %v4616 = vadd.f32 0.0, %v4615
        %4617 = vmatmul.bf16.gmra.mxu0 %v4561
        %v4618 = vpop.f32.mrf.mxu0
        %v4619 = vadd.f32 0.0, %v4618
        %v4620 = vpop.f32.mrf.mxu0
        %v4621 = vadd.f32 0.0, %v4620
        %4622 = vmatmul.bf16.gmra.mxu0 %v4564
        %v4623 = vpop.f32.mrf.mxu0
        %v4624 = vadd.f32 0.0, %v4623
        %v4625 = vpop.f32.mrf.mxu0
        %v4626 = vadd.f32 0.0, %v4625
        %4627 = vmatmul.bf16.gmra.mxu0 %v4567
        %v4628 = vpop.f32.mrf.mxu0
        %v4629 = vadd.f32 0.0, %v4628
        %v4630 = vpop.f32.mrf.mxu0
        %v4631 = vadd.f32 0.0, %v4630
        %4632 = vmatmul.bf16.gmra.mxu0 %v4570
        %v4633 = vpop.f32.mrf.mxu0
        %v4634 = vadd.f32 0.0, %v4633
        %v4635 = vpop.f32.mrf.mxu0
        %v4636 = vadd.f32 0.0, %v4635
        %4637 = vmatmul.bf16.gmra.mxu0 %v4573
        %v4638 = vpop.f32.mrf.mxu0
        %v4639 = vadd.f32 0.0, %v4638
        %v4640 = vpop.f32.mrf.mxu0
        %v4641 = vadd.f32 0.0, %v4640
        %4642 = vmatmul.bf16.gmra.mxu0 %v4576
        %v4643 = vpop.f32.mrf.mxu0
        %v4644 = vadd.f32 0.0, %v4643
        %v4645 = vpop.f32.mrf.mxu0
        %v4646 = vadd.f32 0.0, %v4645
        %4647 = vmatmul.bf16.gmra.mxu0 %v4579
        %v4648 = vpop.f32.mrf.mxu0
        %v4649 = vadd.f32 0.0, %v4648
        %v4650 = vpop.f32.mrf.mxu0
        %v4651 = vadd.f32 0.0, %v4650
        %4652 = vmatmul.bf16.gmra.mxu0 %v4582
        %v4653 = vpop.f32.mrf.mxu0
        %v4654 = vadd.f32 0.0, %v4653
        %v4655 = vpop.f32.mrf.mxu0
        %v4656 = vadd.f32 0.0, %v4655
        %4657 = vmatmul.bf16.gmra.mxu0 %v4585
        %v4658 = vpop.f32.mrf.mxu0
        %v4659 = vadd.f32 0.0, %v4658
        %v4660 = vpop.f32.mrf.mxu0
        %v4661 = vadd.f32 0.0, %v4660
        %4662 = vmatmul.bf16.gmra.mxu0 %v4588
        %v4663 = vpop.f32.mrf.mxu0
        %v4664 = vadd.f32 0.0, %v4663
        %v4665 = vpop.f32.mrf.mxu0
        %4666 = vdwg.mxu0
        %v4667 = vpack.c.bf16 %v4159, %v4143
        %v4668 = vpack.c.bf16 %v4160, %v4144
        %v4669 = vpack.c.bf16 %v4191, %v4175
        %v4670 = vpack.c.bf16 %v4192, %v4176
        %v4671 = vpack.c.bf16 %v4223, %v4207
        %v4672 = vpack.c.bf16 %v4224, %v4208
        %v4673 = vpack.c.bf16 %v4255, %v4239
        %v4674 = vpack.c.bf16 %v4256, %v4240
        %v4675 = vpack.c.bf16 %v4287, %v4271
        %v4676 = vpack.c.bf16 %v4288, %v4272
        %v4677 = vpack.c.bf16 %v4319, %v4303
        %v4678 = vpack.c.bf16 %v4320, %v4304
        %v4679 = vpack.c.bf16 %v4351, %v4335
        %v4680 = vpack.c.bf16 %v4352, %v4336
        %v4681 = vpack.c.bf16 %v4383, %v4367
        %v4682 = vpack.c.bf16 %v4384, %v4368
        %v4683 = vpack.c.bf16 %v4415, %v4399
        %v4684 = vpack.c.bf16 %v4416, %v4400
        %v4685 = vpack.c.bf16 %v4447, %v4431
        %v4686 = vpack.c.bf16 %v4448, %v4432
        %v4687 = vpack.c.bf16 %v4479, %v4463
        %v4688 = vpack.c.bf16 %v4480, %v4464
        %v4689 = vpack.c.bf16 %v4511, %v4495
        %v4690 = vpack.c.bf16 %v4512, %v4496
        %v4691 = vpack.c.bf16 %v4527, %v4527
        %v4692 = vpack.c.bf16 %v4528, %v4528
        %v4693 = vpack.c.bf16 %v4606, %v4604
        %v4694 = vpack.c.bf16 %v4611, %v4609
        %v4695 = vpack.c.bf16 %v4616, %v4614
        %v4696 = vpack.c.bf16 %v4621, %v4619
        %v4697 = vpack.c.bf16 %v4626, %v4624
        %v4698 = vpack.c.bf16 %v4631, %v4629
        %v4699 = vpack.c.bf16 %v4636, %v4634
        %v4700 = vpack.c.bf16 %v4641, %v4639
        %v4701 = vpack.c.bf16 %v4646, %v4644
        %v4702 = vpack.c.bf16 %v4651, %v4649
        %v4703 = vpack.c.bf16 %v4656, %v4654
        %v4704 = vpack.c.bf16 %v4661, %v4659
        %v4705 = vpack.c.bf16 %v4664, %v4664
        %v4706 = vld [vmem:[%s8] sm:$0x1]
        %v4708 = vperm.slane %v4706, 0
        %v4711 = vsel %vm2109, %v4668, 0
        %v4714 = vsel %vm2109, %v4670, 0
        %v4717 = vsel %vm2109, %v4672, 0
        %v4720 = vsel %vm2109, %v4674, 0
        %v4723 = vsel %vm2109, %v4676, 0
        %v4726 = vsel %vm2109, %v4678, 0
        %v4729 = vsel %vm2109, %v4680, 0
        %v4732 = vsel %vm2109, %v4682, 0
        %v4735 = vsel %vm2109, %v4684, 0
        %v4738 = vsel %vm2109, %v4686, 0
        %v4741 = vsel %vm2109, %v4688, 0
        %v4744 = vsel %vm2109, %v4690, 0
        %v4747 = vsel %vm2109, %v4692, 0
        %v4750 = vsel %vm3097, %v4705, 0
        %4752 = vmatpush.bf16.msra.mxu0 %v4700
        %4753 = vmatpush.bf16.msra.mxu0 %v4699
        %4754 = vmatpush.bf16.msra.mxu0 %v4698
        %4755 = vmatpush.bf16.msra.mxu0 %v4697
        %4756 = vmatpush.bf16.msra.mxu0 %v4696
        %4757 = vmatpush.bf16.msra.mxu0 %v4695
        %4758 = vmatpush.bf16.msra.mxu0 %v4694
        %4759 = vmatpush.bf16.msra.mxu0 %v4693
        %4760 = vmatmul.bf16.gmra.mxu0 %v4667
        %v4761 = vpop.f32.mrf.mxu0
        %v4762 = vadd.f32 %v4708, %v4761
        %v4763 = vpop.f32.mrf.mxu0
        %v4764 = vadd.f32 %v4708, %v4763
        %4765 = vmatmul.bf16.gmra.mxu0 %v4669
        %v4766 = vpop.f32.mrf.mxu0
        %v4767 = vadd.f32 %v4708, %v4766
        %v4768 = vpop.f32.mrf.mxu0
        %v4769 = vadd.f32 %v4708, %v4768
        %4770 = vmatmul.bf16.gmra.mxu0 %v4671
        %v4771 = vpop.f32.mrf.mxu0
        %v4772 = vadd.f32 %v4708, %v4771
        %v4773 = vpop.f32.mrf.mxu0
        %v4774 = vadd.f32 %v4708, %v4773
        %4775 = vmatmul.bf16.gmra.mxu0 %v4673
        %v4776 = vpop.f32.mrf.mxu0
        %v4777 = vadd.f32 %v4708, %v4776
        %v4778 = vpop.f32.mrf.mxu0
        %v4779 = vadd.f32 %v4708, %v4778
        %4780 = vmatmul.bf16.gmra.mxu0 %v4675
        %v4781 = vpop.f32.mrf.mxu0
        %v4782 = vadd.f32 %v4708, %v4781
        %v4783 = vpop.f32.mrf.mxu0
        %v4784 = vadd.f32 %v4708, %v4783
        %4785 = vmatmul.bf16.gmra.mxu0 %v4677
        %v4786 = vpop.f32.mrf.mxu0
        %v4787 = vadd.f32 %v4708, %v4786
        %v4788 = vpop.f32.mrf.mxu0
        %v4789 = vadd.f32 %v4708, %v4788
        %4790 = vmatmul.bf16.gmra.mxu0 %v4679
        %v4791 = vpop.f32.mrf.mxu0
        %v4792 = vadd.f32 %v4708, %v4791
        %v4793 = vpop.f32.mrf.mxu0
        %v4794 = vadd.f32 %v4708, %v4793
        %4795 = vmatmul.bf16.gmra.mxu0 %v4681
        %v4796 = vpop.f32.mrf.mxu0
        %v4797 = vadd.f32 %v4708, %v4796
        %v4798 = vpop.f32.mrf.mxu0
        %v4799 = vadd.f32 %v4708, %v4798
        %4800 = vmatmul.bf16.gmra.mxu0 %v4683
        %v4801 = vpop.f32.mrf.mxu0
        %v4802 = vadd.f32 %v4708, %v4801
        %v4803 = vpop.f32.mrf.mxu0
        %v4804 = vadd.f32 %v4708, %v4803
        %4805 = vmatmul.bf16.gmra.mxu0 %v4685
        %v4806 = vpop.f32.mrf.mxu0
        %v4807 = vadd.f32 %v4708, %v4806
        %v4808 = vpop.f32.mrf.mxu0
        %v4809 = vadd.f32 %v4708, %v4808
        %4810 = vmatmul.bf16.gmra.mxu0 %v4687
        %v4811 = vpop.f32.mrf.mxu0
        %v4812 = vadd.f32 %v4708, %v4811
        %v4813 = vpop.f32.mrf.mxu0
        %v4814 = vadd.f32 %v4708, %v4813
        %4815 = vmatmul.bf16.gmra.mxu0 %v4689
        %v4816 = vpop.f32.mrf.mxu0
        %v4817 = vadd.f32 %v4708, %v4816
        %v4818 = vpop.f32.mrf.mxu0
        %v4819 = vadd.f32 %v4708, %v4818
        %4820 = vmatmul.bf16.gmra.mxu0 %v4691
        %v4821 = vpop.f32.mrf.mxu0
        %v4822 = vadd.f32 %v4708, %v4821
        %v4823 = vpop.f32.mrf.mxu0
        %4824 = vdwg.mxu0
        %4825 = vmatpush.bf16.msra.mxu0 0
        %4826 = vmatpush.bf16.msra.mxu0 0
        %4827 = vmatpush.bf16.msra.mxu0 0
        %4828 = vmatpush.bf16.msra.mxu0 %v4750
        %4829 = vmatpush.bf16.msra.mxu0 %v4704
        %4830 = vmatpush.bf16.msra.mxu0 %v4703
        %4831 = vmatpush.bf16.msra.mxu0 %v4702
        %4832 = vmatpush.bf16.msra.mxu0 %v4701
        %4833 = vmatmul.bf16.gmra.mxu0 %v4711
        %v4834 = vpop.f32.mrf.mxu0
        %v4835 = vadd.f32 %v4762, %v4834
        %v4836 = vpop.f32.mrf.mxu0
        %v4837 = vadd.f32 %v4764, %v4836
        %4838 = vmatmul.bf16.gmra.mxu0 %v4714
        %v4839 = vpop.f32.mrf.mxu0
        %v4840 = vadd.f32 %v4767, %v4839
        %v4841 = vpop.f32.mrf.mxu0
        %v4842 = vadd.f32 %v4769, %v4841
        %4843 = vmatmul.bf16.gmra.mxu0 %v4717
        %v4844 = vpop.f32.mrf.mxu0
        %v4845 = vadd.f32 %v4772, %v4844
        %v4846 = vpop.f32.mrf.mxu0
        %v4847 = vadd.f32 %v4774, %v4846
        %4848 = vmatmul.bf16.gmra.mxu0 %v4720
        %v4849 = vpop.f32.mrf.mxu0
        %v4850 = vadd.f32 %v4777, %v4849
        %v4851 = vpop.f32.mrf.mxu0
        %v4852 = vadd.f32 %v4779, %v4851
        %4853 = vmatmul.bf16.gmra.mxu0 %v4723
        %v4854 = vpop.f32.mrf.mxu0
        %v4855 = vadd.f32 %v4782, %v4854
        %v4856 = vpop.f32.mrf.mxu0
        %v4857 = vadd.f32 %v4784, %v4856
        %4858 = vmatmul.bf16.gmra.mxu0 %v4726
        %v4859 = vpop.f32.mrf.mxu0
        %v4860 = vadd.f32 %v4787, %v4859
        %v4861 = vpop.f32.mrf.mxu0
        %v4862 = vadd.f32 %v4789, %v4861
        %4863 = vmatmul.bf16.gmra.mxu0 %v4729
        %v4864 = vpop.f32.mrf.mxu0
        %v4865 = vadd.f32 %v4792, %v4864
        %v4866 = vpop.f32.mrf.mxu0
        %v4867 = vadd.f32 %v4794, %v4866
        %4868 = vmatmul.bf16.gmra.mxu0 %v4732
        %v4869 = vpop.f32.mrf.mxu0
        %v4870 = vadd.f32 %v4797, %v4869
        %v4871 = vpop.f32.mrf.mxu0
        %v4872 = vadd.f32 %v4799, %v4871
        %4873 = vmatmul.bf16.gmra.mxu0 %v4735
        %v4874 = vpop.f32.mrf.mxu0
        %v4875 = vadd.f32 %v4802, %v4874
        %v4876 = vpop.f32.mrf.mxu0
        %v4877 = vadd.f32 %v4804, %v4876
        %4878 = vmatmul.bf16.gmra.mxu0 %v4738
        %v4879 = vpop.f32.mrf.mxu0
        %v4880 = vadd.f32 %v4807, %v4879
        %v4881 = vpop.f32.mrf.mxu0
        %v4882 = vadd.f32 %v4809, %v4881
        %4883 = vmatmul.bf16.gmra.mxu0 %v4741
        %v4884 = vpop.f32.mrf.mxu0
        %v4885 = vadd.f32 %v4812, %v4884
        %v4886 = vpop.f32.mrf.mxu0
        %v4887 = vadd.f32 %v4814, %v4886
        %4888 = vmatmul.bf16.gmra.mxu0 %v4744
        %v4889 = vpop.f32.mrf.mxu0
        %v4890 = vadd.f32 %v4817, %v4889
        %v4891 = vpop.f32.mrf.mxu0
        %v4892 = vadd.f32 %v4819, %v4891
        %4893 = vmatmul.bf16.gmra.mxu0 %v4747
        %v4894 = vpop.f32.mrf.mxu0
        %v4895 = vadd.f32 %v4822, %v4894
        %v4896 = vpop.f32.mrf.mxu0
        %4897 = vdwg.mxu0
        %v4898 = vmax.f32 %v4835, 0.0
        %v4899 = vmax.f32 %v4837, 0.0
        %v4900 = vmax.f32 %v4840, 0.0
        %v4901 = vmax.f32 %v4842, 0.0
        %v4902 = vmax.f32 %v4845, 0.0
        %v4903 = vmax.f32 %v4847, 0.0
        %v4904 = vmax.f32 %v4850, 0.0
        %v4905 = vmax.f32 %v4852, 0.0
        %v4906 = vmax.f32 %v4855, 0.0
        %v4907 = vmax.f32 %v4857, 0.0
        %v4908 = vmax.f32 %v4860, 0.0
        %v4909 = vmax.f32 %v4862, 0.0
        %v4910 = vmax.f32 %v4865, 0.0
        %v4911 = vmax.f32 %v4867, 0.0
        %v4912 = vmax.f32 %v4870, 0.0
        %v4913 = vmax.f32 %v4872, 0.0
        %v4914 = vmax.f32 %v4875, 0.0
        %v4915 = vmax.f32 %v4877, 0.0
        %v4916 = vmax.f32 %v4880, 0.0
        %v4917 = vmax.f32 %v4882, 0.0
        %v4918 = vmax.f32 %v4885, 0.0
        %v4919 = vmax.f32 %v4887, 0.0
        %v4920 = vmax.f32 %v4890, 0.0
        %v4921 = vmax.f32 %v4892, 0.0
        %v4922 = vmax.f32 %v4895, 0.0
        %v4923 = vld [vmem:[%s9] sm:$0xff]
        %v4924 = vld [vmem:[%s9 + $0x8] sm:$0xff]
        %v4925 = vld [vmem:[%s9 + $0x10] sm:$0xff]
        %v4926 = vld [vmem:[%s9 + $0x18] sm:$0xff]
        %v4927 = vld [vmem:[%s9 + $0x20] sm:$0xff]
        %v4928 = vld [vmem:[%s9 + $0x28] sm:$0xff]
        %v4929 = vld [vmem:[%s9 + $0x30] sm:$0xff]
        %v4930 = vld [vmem:[%s9 + $0x38] sm:$0xff]
        %v4931 = vld [vmem:[%s9 + $0x40] sm:$0xff]
        %v4932 = vld [vmem:[%s9 + $0x48] sm:$0xff]
        %v4933 = vld [vmem:[%s9 + $0x50] sm:$0xff]
        %v4934 = vld [vmem:[%s9 + $0x58] sm:$0xff]
        %v4935 = vld [vmem:[%s9 + $0x60] sm:$0xff]
        %v4936 = vld [vmem:[%s9 + $0x68] sm:$0xff]
        %v4937 = vld [vmem:[%s9 + $0x70] sm:$0xff]
        %v4938 = vld [vmem:[%s9 + $0x78] sm:$0xff]
        %v4939 = vld [vmem:[%s9 + $0x80] sm:$0xff]
        %v4940 = vld [vmem:[%s9 + $0x88] sm:$0xff]
        %v4941 = vld [vmem:[%s9 + $0x90] sm:$0xff]
        %v4942 = vld [vmem:[%s9 + $0x98] sm:$0xff]
        %v4943 = vld [vmem:[%s9 + $0xa0] sm:$0xff]
        %v4944 = vld [vmem:[%s9 + $0xa8] sm:$0xff]
        %v4945 = vld [vmem:[%s9 + $0xb0] sm:$0xff]
        %v4946 = vld [vmem:[%s9 + $0xb8] sm:$0xff]
        %v4947 = vld [vmem:[%s9 + $0xc0] sm:$0xff]
        %v4948 = vmul.f32 %v4898, %v4923
        %v4949 = vmul.f32 %v4899, %v4924
        %v4950 = vmul.f32 %v4900, %v4925
        %v4951 = vmul.f32 %v4901, %v4926
        %v4952 = vmul.f32 %v4902, %v4927
        %v4953 = vmul.f32 %v4903, %v4928
        %v4954 = vmul.f32 %v4904, %v4929
        %v4955 = vmul.f32 %v4905, %v4930
        %v4956 = vmul.f32 %v4906, %v4931
        %v4957 = vmul.f32 %v4907, %v4932
        %v4958 = vmul.f32 %v4908, %v4933
        %v4959 = vmul.f32 %v4909, %v4934
        %v4960 = vmul.f32 %v4910, %v4935
        %v4961 = vmul.f32 %v4911, %v4936
        %v4962 = vmul.f32 %v4912, %v4937
        %v4963 = vmul.f32 %v4913, %v4938
        %v4964 = vmul.f32 %v4914, %v4939
        %v4965 = vmul.f32 %v4915, %v4940
        %v4966 = vmul.f32 %v4916, %v4941
        %v4967 = vmul.f32 %v4917, %v4942
        %v4968 = vmul.f32 %v4918, %v4943
        %v4969 = vmul.f32 %v4919, %v4944
        %v4970 = vmul.f32 %v4920, %v4945
        %v4971 = vmul.f32 %v4921, %v4946
        %v4972 = vmul.f32 %v4922, %v4947
        %vm4973 = vcmask 39936
        %v4974 = vsel %vm4973, %v4948, 0.0
        %4975 = vadd.xlane.f32.xlu0 %v4974
        %v4976 = vpop.xlane.xlu0 %4975
        %v4977 = vsel %vm4973, %v4949, 0.0
        %4978 = vadd.xlane.f32.xlu0 %v4977
        %v4979 = vpop.xlane.xlu0 %4978
        %v4980 = vsel %vm4973, %v4950, 0.0
        %4981 = vadd.xlane.f32.xlu0 %v4980
        %v4982 = vpop.xlane.xlu0 %4981
        %v4983 = vsel %vm4973, %v4951, 0.0
        %4984 = vadd.xlane.f32.xlu0 %v4983
        %v4985 = vpop.xlane.xlu0 %4984
        %v4986 = vsel %vm4973, %v4952, 0.0
        %4987 = vadd.xlane.f32.xlu0 %v4986
        %v4988 = vpop.xlane.xlu0 %4987
        %v4989 = vsel %vm4973, %v4953, 0.0
        %4990 = vadd.xlane.f32.xlu0 %v4989
        %v4991 = vpop.xlane.xlu0 %4990
        %v4992 = vsel %vm4973, %v4954, 0.0
        %4993 = vadd.xlane.f32.xlu0 %v4992
        %v4994 = vpop.xlane.xlu0 %4993
        %v4995 = vsel %vm4973, %v4955, 0.0
        %4996 = vadd.xlane.f32.xlu0 %v4995
        %v4997 = vpop.xlane.xlu0 %4996
        %v4998 = vsel %vm4973, %v4956, 0.0
        %4999 = vadd.xlane.f32.xlu0 %v4998
        %v5000 = vpop.xlane.xlu0 %4999
        %v5001 = vsel %vm4973, %v4957, 0.0
        %5002 = vadd.xlane.f32.xlu0 %v5001
        %v5003 = vpop.xlane.xlu0 %5002
        %v5004 = vsel %vm4973, %v4958, 0.0
        %5005 = vadd.xlane.f32.xlu0 %v5004
        %v5006 = vpop.xlane.xlu0 %5005
        %v5007 = vsel %vm4973, %v4959, 0.0
        %5008 = vadd.xlane.f32.xlu0 %v5007
        %v5009 = vpop.xlane.xlu0 %5008
        %v5010 = vsel %vm4973, %v4960, 0.0
        %5011 = vadd.xlane.f32.xlu0 %v5010
        %v5012 = vpop.xlane.xlu0 %5011
        %v5013 = vsel %vm4973, %v4961, 0.0
        %5014 = vadd.xlane.f32.xlu0 %v5013
        %v5015 = vpop.xlane.xlu0 %5014
        %v5016 = vsel %vm4973, %v4962, 0.0
        %5017 = vadd.xlane.f32.xlu0 %v5016
        %v5018 = vpop.xlane.xlu0 %5017
        %v5019 = vsel %vm4973, %v4963, 0.0
        %5020 = vadd.xlane.f32.xlu0 %v5019
        %v5021 = vpop.xlane.xlu0 %5020
        %v5022 = vsel %vm4973, %v4964, 0.0
        %5023 = vadd.xlane.f32.xlu0 %v5022
        %v5024 = vpop.xlane.xlu0 %5023
        %v5025 = vsel %vm4973, %v4965, 0.0
        %5026 = vadd.xlane.f32.xlu0 %v5025
        %v5027 = vpop.xlane.xlu0 %5026
        %v5028 = vsel %vm4973, %v4966, 0.0
        %5029 = vadd.xlane.f32.xlu0 %v5028
        %v5030 = vpop.xlane.xlu0 %5029
        %v5031 = vsel %vm4973, %v4967, 0.0
        %5032 = vadd.xlane.f32.xlu0 %v5031
        %v5033 = vpop.xlane.xlu0 %5032
        %v5034 = vsel %vm4973, %v4968, 0.0
        %5035 = vadd.xlane.f32.xlu0 %v5034
        %v5036 = vpop.xlane.xlu0 %5035
        %v5037 = vsel %vm4973, %v4969, 0.0
        %5038 = vadd.xlane.f32.xlu0 %v5037
        %v5039 = vpop.xlane.xlu0 %5038
        %v5040 = vsel %vm4973, %v4970, 0.0
        %5041 = vadd.xlane.f32.xlu0 %v5040
        %v5042 = vpop.xlane.xlu0 %5041
        %v5043 = vsel %vm4973, %v4971, 0.0
        %5044 = vadd.xlane.f32.xlu0 %v5043
        %v5045 = vpop.xlane.xlu0 %5044
        %v5046 = vsel %vm4973, %v4972, 0.0
        %5047 = vadd.xlane.f32.xlu0 %v5046
        %v5048 = vpop.xlane.xlu0 %5047
        %s5049 = scalar_lea.vmem %s9, 200
        %v5050 = vld [vmem:[%s5049] sm:$0xff]
        %v5051 = vld [vmem:[%s5049 + $0x8] sm:$0xff]
        %v5052 = vld [vmem:[%s5049 + $0x10] sm:$0xff]
        %v5053 = vld [vmem:[%s5049 + $0x18] sm:$0xff]
        %v5054 = vld [vmem:[%s5049 + $0x20] sm:$0xff]
        %v5055 = vld [vmem:[%s5049 + $0x28] sm:$0xff]
        %v5056 = vld [vmem:[%s5049 + $0x30] sm:$0xff]
        %v5057 = vld [vmem:[%s5049 + $0x38] sm:$0xff]
        %v5058 = vld [vmem:[%s5049 + $0x40] sm:$0xff]
        %v5059 = vld [vmem:[%s5049 + $0x48] sm:$0xff]
        %v5060 = vld [vmem:[%s5049 + $0x50] sm:$0xff]
        %v5061 = vld [vmem:[%s5049 + $0x58] sm:$0xff]
        %v5062 = vld [vmem:[%s5049 + $0x60] sm:$0xff]
        %v5063 = vld [vmem:[%s5049 + $0x68] sm:$0xff]
        %v5064 = vld [vmem:[%s5049 + $0x70] sm:$0xff]
        %v5065 = vld [vmem:[%s5049 + $0x78] sm:$0xff]
        %v5066 = vld [vmem:[%s5049 + $0x80] sm:$0xff]
        %v5067 = vld [vmem:[%s5049 + $0x88] sm:$0xff]
        %v5068 = vld [vmem:[%s5049 + $0x90] sm:$0xff]
        %v5069 = vld [vmem:[%s5049 + $0x98] sm:$0xff]
        %v5070 = vld [vmem:[%s5049 + $0xa0] sm:$0xff]
        %v5071 = vld [vmem:[%s5049 + $0xa8] sm:$0xff]
        %v5072 = vld [vmem:[%s5049 + $0xb0] sm:$0xff]
        %v5073 = vld [vmem:[%s5049 + $0xb8] sm:$0xff]
        %v5074 = vld [vmem:[%s5049 + $0xc0] sm:$0xff]
        %v5075 = vmul.f32 %v4898, %v5050
        %v5076 = vmul.f32 %v4899, %v5051
        %v5077 = vmul.f32 %v4900, %v5052
        %v5078 = vmul.f32 %v4901, %v5053
        %v5079 = vmul.f32 %v4902, %v5054
        %v5080 = vmul.f32 %v4903, %v5055
        %v5081 = vmul.f32 %v4904, %v5056
        %v5082 = vmul.f32 %v4905, %v5057
        %v5083 = vmul.f32 %v4906, %v5058
        %v5084 = vmul.f32 %v4907, %v5059
        %v5085 = vmul.f32 %v4908, %v5060
        %v5086 = vmul.f32 %v4909, %v5061
        %v5087 = vmul.f32 %v4910, %v5062
        %v5088 = vmul.f32 %v4911, %v5063
        %v5089 = vmul.f32 %v4912, %v5064
        %v5090 = vmul.f32 %v4913, %v5065
        %v5091 = vmul.f32 %v4914, %v5066
        %v5092 = vmul.f32 %v4915, %v5067
        %v5093 = vmul.f32 %v4916, %v5068
        %v5094 = vmul.f32 %v4917, %v5069
        %v5095 = vmul.f32 %v4918, %v5070
        %v5096 = vmul.f32 %v4919, %v5071
        %v5097 = vmul.f32 %v4920, %v5072
        %v5098 = vmul.f32 %v4921, %v5073
        %v5099 = vmul.f32 %v4922, %v5074
        %v5100 = vsel %vm4973, %v5075, 0.0
        %5101 = vadd.xlane.f32.xlu0 %v5100
        %v5102 = vpop.xlane.xlu0 %5101
        %v5103 = vsel %vm4973, %v5076, 0.0
        %5104 = vadd.xlane.f32.xlu0 %v5103
        %v5105 = vpop.xlane.xlu0 %5104
        %v5106 = vsel %vm4973, %v5077, 0.0
        %5107 = vadd.xlane.f32.xlu0 %v5106
        %v5108 = vpop.xlane.xlu0 %5107
        %v5109 = vsel %vm4973, %v5078, 0.0
        %5110 = vadd.xlane.f32.xlu0 %v5109
        %v5111 = vpop.xlane.xlu0 %5110
        %v5112 = vsel %vm4973, %v5079, 0.0
        %5113 = vadd.xlane.f32.xlu0 %v5112
        %v5114 = vpop.xlane.xlu0 %5113
        %v5115 = vsel %vm4973, %v5080, 0.0
        %5116 = vadd.xlane.f32.xlu0 %v5115
        %v5117 = vpop.xlane.xlu0 %5116
        %v5118 = vsel %vm4973, %v5081, 0.0
        %5119 = vadd.xlane.f32.xlu0 %v5118
        %v5120 = vpop.xlane.xlu0 %5119
        %v5121 = vsel %vm4973, %v5082, 0.0
        %5122 = vadd.xlane.f32.xlu0 %v5121
        %v5123 = vpop.xlane.xlu0 %5122
        %v5124 = vsel %vm4973, %v5083, 0.0
        %5125 = vadd.xlane.f32.xlu0 %v5124
        %v5126 = vpop.xlane.xlu0 %5125
        %v5127 = vsel %vm4973, %v5084, 0.0
        %5128 = vadd.xlane.f32.xlu0 %v5127
        %v5129 = vpop.xlane.xlu0 %5128
        %v5130 = vsel %vm4973, %v5085, 0.0
        %5131 = vadd.xlane.f32.xlu0 %v5130
        %v5132 = vpop.xlane.xlu0 %5131
        %v5133 = vsel %vm4973, %v5086, 0.0
        %5134 = vadd.xlane.f32.xlu0 %v5133
        %v5135 = vpop.xlane.xlu0 %5134
        %v5136 = vsel %vm4973, %v5087, 0.0
        %5137 = vadd.xlane.f32.xlu0 %v5136
        %v5138 = vpop.xlane.xlu0 %5137
        %v5139 = vsel %vm4973, %v5088, 0.0
        %5140 = vadd.xlane.f32.xlu0 %v5139
        %v5141 = vpop.xlane.xlu0 %5140
        %v5142 = vsel %vm4973, %v5089, 0.0
        %5143 = vadd.xlane.f32.xlu0 %v5142
        %v5144 = vpop.xlane.xlu0 %5143
        %v5145 = vsel %vm4973, %v5090, 0.0
        %5146 = vadd.xlane.f32.xlu0 %v5145
        %v5147 = vpop.xlane.xlu0 %5146
        %v5148 = vsel %vm4973, %v5091, 0.0
        %5149 = vadd.xlane.f32.xlu0 %v5148
        %v5150 = vpop.xlane.xlu0 %5149
        %v5151 = vsel %vm4973, %v5092, 0.0
        %5152 = vadd.xlane.f32.xlu0 %v5151
        %v5153 = vpop.xlane.xlu0 %5152
        %v5154 = vsel %vm4973, %v5093, 0.0
        %5155 = vadd.xlane.f32.xlu0 %v5154
        %v5156 = vpop.xlane.xlu0 %5155
        %v5157 = vsel %vm4973, %v5094, 0.0
        %5158 = vadd.xlane.f32.xlu0 %v5157
        %v5159 = vpop.xlane.xlu0 %5158
        %v5160 = vsel %vm4973, %v5095, 0.0
        %5161 = vadd.xlane.f32.xlu0 %v5160
        %v5162 = vpop.xlane.xlu0 %5161
        %v5163 = vsel %vm4973, %v5096, 0.0
        %5164 = vadd.xlane.f32.xlu0 %v5163
        %v5165 = vpop.xlane.xlu0 %5164
        %v5166 = vsel %vm4973, %v5097, 0.0
        %5167 = vadd.xlane.f32.xlu0 %v5166
        %v5168 = vpop.xlane.xlu0 %5167
        %v5169 = vsel %vm4973, %v5098, 0.0
        %5170 = vadd.xlane.f32.xlu0 %v5169
        %v5171 = vpop.xlane.xlu0 %5170
        %v5172 = vsel %vm4973, %v5099, 0.0
        %5173 = vadd.xlane.f32.xlu0 %v5172
        %v5174 = vpop.xlane.xlu0 %5173
        %v5175 = vadd.f32 %v4976, %v4979
        %v5176 = vadd.f32 %v5175, %v4982
        %v5177 = vadd.f32 %v5176, %v4985
        %v5178 = vadd.f32 %v5177, %v4988
        %v5179 = vadd.f32 %v5178, %v4991
        %v5180 = vadd.f32 %v5179, %v4994
        %v5181 = vadd.f32 %v5180, %v4997
        %v5182 = vadd.f32 %v5181, %v5000
        %v5183 = vadd.f32 %v5182, %v5003
        %v5184 = vadd.f32 %v5183, %v5006
        %v5185 = vadd.f32 %v5184, %v5009
        %v5186 = vadd.f32 %v5185, %v5012
        %v5187 = vadd.f32 %v5186, %v5015
        %v5188 = vadd.f32 %v5187, %v5018
        %v5189 = vadd.f32 %v5188, %v5021
        %v5190 = vadd.f32 %v5189, %v5024
        %v5191 = vadd.f32 %v5190, %v5027
        %v5192 = vadd.f32 %v5191, %v5030
        %v5193 = vadd.f32 %v5192, %v5033
        %v5194 = vadd.f32 %v5193, %v5036
        %v5195 = vadd.f32 %v5194, %v5039
        %v5196 = vadd.f32 %v5195, %v5042
        %v5197 = vadd.f32 %v5196, %v5045
        %v5198 = vadd.f32 %v5197, %v5048
        %v5199 = vrot.slane %v5198, 4
        %v5200 = vadd.f32 %v5198, %v5199
        %v5201 = vrot.slane %v5200, 2
        %v5202 = vadd.f32 %v5200, %v5201
        %v5203 = vrot.slane %v5202, 1
        %v5204 = vadd.f32 %v5202, %v5203
        %v5205 = vadd.f32 %v5102, %v5105
        %v5206 = vadd.f32 %v5205, %v5108
        %v5207 = vadd.f32 %v5206, %v5111
        %v5208 = vadd.f32 %v5207, %v5114
        %v5209 = vadd.f32 %v5208, %v5117
        %v5210 = vadd.f32 %v5209, %v5120
        %v5211 = vadd.f32 %v5210, %v5123
        %v5212 = vadd.f32 %v5211, %v5126
        %v5213 = vadd.f32 %v5212, %v5129
        %v5214 = vadd.f32 %v5213, %v5132
        %v5215 = vadd.f32 %v5214, %v5135
        %v5216 = vadd.f32 %v5215, %v5138
        %v5217 = vadd.f32 %v5216, %v5141
        %v5218 = vadd.f32 %v5217, %v5144
        %v5219 = vadd.f32 %v5218, %v5147
        %v5220 = vadd.f32 %v5219, %v5150
        %v5221 = vadd.f32 %v5220, %v5153
        %v5222 = vadd.f32 %v5221, %v5156
        %v5223 = vadd.f32 %v5222, %v5159
        %v5224 = vadd.f32 %v5223, %v5162
        %v5225 = vadd.f32 %v5224, %v5165
        %v5226 = vadd.f32 %v5225, %v5168
        %v5227 = vadd.f32 %v5226, %v5171
        %v5228 = vadd.f32 %v5227, %v5174
        %v5229 = vrot.slane %v5228, 4
        %v5230 = vadd.f32 %v5228, %v5229
        %v5231 = vrot.slane %v5230, 2
        %v5232 = vadd.f32 %v5230, %v5231
        %v5233 = vrot.slane %v5232, 1
        %v5234 = vadd.f32 %v5232, %v5233
        %v5235 = vlaneseq
        %v5236 = vand.u32 %v5235, 127
        %vm5237 = vcmp.eq.s32.totalorder %v5236, 0
        %v5238 = vsel %vm5237, %v5204, %v5234
        %v5239 = vld [vmem:[%s10] sm:$0x1]
        %v5240 = vadd.f32 %v5238, %v5239
        %vm5241 = vcmask 8192
        %v5242 = vsel %vm5241, %v5240, -inf
        %5243 = vmax.xlane.f32.xlu0 %v5242
        %v5244 = vpop.xlane.xlu0 %5243
        %v5245 = vsub.f32 %v5240, %v5244
        %v5246 = vmul.f32 %v5245, 1.442695
        %v5247 = vpow.pop %v5246
        %v5248 = vsel %vm5241, %v5247, 0.0
        %5249 = vadd.xlane.f32.xlu0 %v5248
        %v5250 = vpop.xlane.xlu0 %5249
        %v5251 = vrcp.pop %v5250
        %v5252 = vmul.f32 %v5250, %v5251
        %v5253 = vsub.f32 1.0, %v5252
        %v5254 = vmul.f32 %v5251, %v5253
        %v5255 = vadd.f32 %v5251, %v5254
        %vm5256 = vweird.f32 %v5250
        %vm5257 = vweird.f32 %v5251
        %vm5258 = vmor %vm5256, %vm5257
        %v5259 = vsel %vm5258, %v5251, %v5255
        %v5260 = vand.u32 2147483647, %v5250
        %vm5261 = vcmp.eq.f32.partialorder %v5260, 8.507059e+37
        %v5262 = vand.u32 %v5250, 2147483648
        %v5263 = vor.u32 1.1754944e-38, %v5262
        %v5264 = vsel %vm5261, %v5263, %v5259
        %v5265 = vmul.f32 %v5247, %v5264
        %5266 = vst.msk [vmem:[%s378] sm:$0x1] %vm5241, %v5265
        %s5267 = sand.u32 %s269, 1
        %s5268 = scalar_lea.sflag [#allocation3], %s5267
        %s5269 = sand.u32 %s269, 1
        %s5270 = scalar_lea.vmem [#allocation2], %s5269
        // Predicated region
        $region65: #{sagcn_forward.1} parent=63 // pred_check
          %p5271 = pneg %p279
        $region66: #{sagcn_forward.1} parent=63 // pred_check_branch
          %5273 = sbr.rel (%p5271) target = $region68
        $region67: #{sagcn_forward.1} parent=63 // pred_region
          %5275 = vsyncadd %s5268, 0
          %s5276 = scalar_lea.hbm %s11, %s25
          %s5278 = sshll.u32 %s5270, 4
          %s5279 = int_to_ptr.vmem [resolvable:$true] %s5278
          %s5280 = sshll.u32 %s5276, 4
          %s5281 = int_to_ptr.hbm [resolvable:$true] %s5280
          %5283 = dma.vmem_to_hbm [thread:$0]  %s5279, 16, %s5281, %s5268
        $region68: #{sagcn_forward.1} parent=63 // pred_fallthru
          _
      $region64: #{sagcn_forward.1} parent=5 // pred_fallthru
        _
      %p5284 = scmp.le.s32.totalorder 2, %s20
      // Predicated region
      $region69: #{sagcn_forward.1} parent=5 // pred_check
        %p5285 = pneg %p5284
      $region70: #{sagcn_forward.1} parent=5 // pred_check_branch
        %5287 = sbr.rel (%p5285) target = $region72
      $region71: #{sagcn_forward.1} parent=5 // pred_region
        %s5288 = ssub.s32 %s20, 2
        // Predicated region
        $region73: #{sagcn_forward.1} parent=71 // pred_check
          %p5289 = pneg %p285
        $region74: #{sagcn_forward.1} parent=71 // pred_check_branch
          %5291 = sbr.rel (%p5289) target = $region76
        $region75: #{sagcn_forward.1} parent=71 // pred_region
          %s5292 = sand.u32 %s270, 1
          %s5293 = scalar_lea.sflag [#allocation3], %s5292
          %s5294 = sand.u32 %s270, 1
          %s5295 = scalar_lea.vmem [#allocation2], %s5294
          %5297 = dma.done %s5293, 16
        $region76: #{sagcn_forward.1} parent=71 // pred_fallthru
          _
      $region72: #{sagcn_forward.1} parent=5 // pred_fallthru
        _
    $region6: #{sagcn_forward.1} parent=1 // loop_footer
      %s24 = sadd.s32 1, %s20
    $region7: #{sagcn_forward.1} parent=1 // loop_footer_branch
      %19 = sbr.rel target = $region3
    $region8: #{sagcn_forward.1} parent=1 // loop_exit
      _
    %5298 = vsyncpa [#allocation3], 1
    %s5299 = scalar_lea.sflag [#allocation3], 1
    %5300 = vsyncpa %s5299, 1

</llo_original>
